<compile_context>
chip_gen: v7x
topology: tpu7x:2x2x1
jax: 0.10.0
libtpu: 0.0.40
codegen_flags: <defaults>
</compile_context>

<pallas_src>
import functools

import jax
import jax.numpy as jnp
from jax.experimental import pallas as pl
from jax.experimental.pallas import tpu as pltpu


# --------------------------------------------------------------------------
# Kernels
# --------------------------------------------------------------------------
def _expand_kernel(x_ref, w_ref, scale_ref, bias_ref, o_ref):
    """1x1 expand conv (rows x Cin @ Cin x Cexp on the MXU) + folded BN + ReLU."""
    y = jnp.dot(x_ref[...], w_ref[...], preferred_element_type=jnp.float32)
    y = y * scale_ref[...] + bias_ref[...]          # (1, Cexp) lane broadcast
    o_ref[...] = jnp.maximum(y, 0.0).astype(o_ref.dtype)


def _depthwise_kernel(x_ref, w_ref, scale_ref, bias_ref, y_ref, pool_ref, *, K, H, W):
    """KxK depthwise conv (stride 1) + folded BN + ReLU, with the SE global
    average pool fused as a second output (channels on the lane axis)."""
    x = x_ref[0]                                    # (H+2p, W+2p, C)
    w = w_ref[...]                                  # (K*K, C)
    C = x.shape[-1]
    acc = jnp.zeros((H, W, C), jnp.float32)
    # Static, fully unrolled K*K tap accumulation (pure VPU work).
    for kh in range(K):
        for kw in range(K):
            idx = kh * K + kw
            tap = w[idx:idx + 1, :].reshape(1, 1, C)
            acc = acc + x[kh:kh + H, kw:kw + W, :] * tap
    y = jnp.maximum(acc * scale_ref[...] + bias_ref[...], 0.0)
    y_ref[0] = y.astype(y_ref.dtype)
    # Fused squeeze (global average pool) for the SE branch.
    s = jnp.sum(y, axis=0, keepdims=True)           # (1, W, C)
    s = jnp.sum(s, axis=1, keepdims=True)           # (1, 1, C)
    pool_ref[...] = (s * (1.0 / (H * W))).astype(pool_ref.dtype)


def _se_gate_kernel(p_ref, w1_ref, b1_ref, w2_ref, b2_ref, o_ref):
    """SE excitation MLP: FC -> swish -> FC -> sigmoid, over all batches at once."""
    h = jnp.dot(p_ref[...], w1_ref[...], preferred_element_type=jnp.float32) + b1_ref[...]
    h = h * jax.nn.sigmoid(h)                       # Swish
    g = jnp.dot(h, w2_ref[...], preferred_element_type=jnp.float32) + b2_ref[...]
    o_ref[...] = jax.nn.sigmoid(g).astype(o_ref.dtype)


def _project_kernel(use_se, residual, *refs):
    """SE gating + 1x1 project conv + folded BN + ReLU (+ residual add)."""
    refs = list(refs)
    y_ref = refs.pop(0)
    g_ref = refs.pop(0) if use_se else None
    w_ref, scale_ref, bias_ref = refs.pop(0), refs.pop(0), refs.pop(0)
    sc_ref = refs.pop(0) if residual else None
    o_ref = refs.pop(0)

    y = y_ref[0]                                    # (HW, Cexp)
    if use_se:
        y = y * g_ref[0]                            # (1, Cexp) lane broadcast
    z = jnp.dot(y, w_ref[...], preferred_element_type=jnp.float32)
    z = jnp.maximum(z * scale_ref[...] + bias_ref[...], 0.0)
    if residual:
        z = z + sc_ref[0]                           # DropConnect is identity
    o_ref[0] = z.astype(o_ref.dtype)


# --------------------------------------------------------------------------
# Wrapper
# --------------------------------------------------------------------------
def _fold_bn(gamma, beta, mean, var, eps=1e-4):
    """Fold inference-mode BatchNorm into per-channel scale/bias."""
    scale = gamma * jax.lax.rsqrt(var + eps)
    return scale.astype(jnp.float32), (beta - mean * scale).astype(jnp.float32)


def mbconv_forward(x, P, *, out_channels, expand_ratio, strides=1,
                   kernel_size=3, se_ratio=None):
    """Pallas forward for MBConvBlock.  x: (B, Cin, H, W) NCHW float32."""
    if strides != 1:
        # TODO(synk): strided depthwise not implemented in-kernel.
        raise NotImplementedError("strides > 1 not supported by this Pallas port")

    f32 = jnp.float32
    B, Cin, H, W = x.shape
    use_expand = expand_ratio != 1
    use_se = (se_ratio is not None) and (0.0 < se_ratio <= 1.0)
    residual = (Cin == out_channels) and (strides == 1)
    Cexp = Cin * expand_ratio if use_expand else Cin
    K = kernel_size
    pad = K // 2
    par = pltpu.CompilerParams(dimension_semantics=("parallel",))

    # Layout plumbing: NCHW -> NHWC so channels land on the lane axis.
    xh = jnp.transpose(x, (0, 2, 3, 1)).astype(f32)          # (B, H, W, Cin)

    # ---- 1) expand 1x1 conv + BN + ReLU (row-tiled matmul) -----------------
    if use_expand:
        we_t = P["we"].reshape(Cexp, Cin).T.astype(f32)       # (Cin, Cexp)
        s_e, b_e = _fold_bn(*P["bn_e"])
        s_e, b_e = s_e.reshape(1, Cexp), b_e.reshape(1, Cexp)
        N = B * H * W
        tr = min(N, 256)                                      # sublane-aligned row tile
        x2d = xh.reshape(N, Cin)
        exp2d = pl.pallas_call(
            _expand_kernel,
            out_shape=jax.ShapeDtypeStruct((N, Cexp), f32),
            grid=(pl.cdiv(N, tr),),
            in_specs=[pl.BlockSpec((tr, Cin), lambda i: (i, 0)),
                      pl.BlockSpec((Cin, Cexp), lambda i: (0, 0)),
                      pl.BlockSpec((1, Cexp), lambda i: (0, 0)),
                      pl.BlockSpec((1, Cexp), lambda i: (0, 0))],
            out_specs=pl.BlockSpec((tr, Cexp), lambda i: (i, 0)),
            compiler_params=par,
        )(x2d, we_t, s_e, b_e)
        xe = exp2d.reshape(B, H, W, Cexp)
    else:
        xe = xh

    # ---- 2) depthwise KxK conv + BN + ReLU (+ fused SE avg-pool) -----------
    xp = jnp.pad(xe, ((0, 0), (pad, pad), (pad, pad), (0, 0)))   # spatial halo
    Hp, Wp = H + 2 * pad, W + 2 * pad
    wd_t = P["wd"].reshape(Cexp, K * K).T.astype(f32)         # (K*K, Cexp)
    s_d, b_d = _fold_bn(*P["bn_d"])
    s_d, b_d = s_d.reshape(1, 1, Cexp), b_d.reshape(1, 1, Cexp)
    y, pooled = pl.pallas_call(
        functools.partial(_depthwise_kernel, K=K, H=H, W=W),
        out_shape=(jax.ShapeDtypeStruct((B, H, W, Cexp), f32),
                   jax.ShapeDtypeStruct((B, 1, Cexp), f32)),
        grid=(B,),
        in_specs=[pl.BlockSpec((1, Hp, Wp, Cexp), lambda b: (b, 0, 0, 0)),
                  pl.BlockSpec((K * K, Cexp), lambda b: (0, 0)),
                  pl.BlockSpec((1, 1, Cexp), lambda b: (0, 0, 0)),
                  pl.BlockSpec((1, 1, Cexp), lambda b: (0, 0, 0))],
        out_specs=(pl.BlockSpec((1, H, W, Cexp), lambda b: (b, 0, 0, 0)),
                   pl.BlockSpec((1, 1, Cexp), lambda b: (b, 0, 0))),
        compiler_params=par,
    )(xp, wd_t, s_d, b_d)

    # ---- 3) SE gate (tiny MLP over the pooled vectors, all batches at once) -
    if use_se:
        Cred = max(1, int(Cexp * se_ratio))
        w1_t = P["w1"].reshape(Cred, Cexp).T.astype(f32)      # (Cexp, Cred)
        w2_t = P["w2"].reshape(Cexp, Cred).T.astype(f32)      # (Cred, Cexp)
        b1 = P["b1"].reshape(1, Cred).astype(f32)
        b2 = P["b2"].reshape(1, Cexp).astype(f32)
        gate = pl.pallas_call(
            _se_gate_kernel,
            out_shape=jax.ShapeDtypeStruct((B, Cexp), f32),
        )(pooled.reshape(B, Cexp), w1_t, b1, w2_t, b2)
        gate3 = gate.reshape(B, 1, Cexp)

    # ---- 4) SE apply + project 1x1 conv + BN + ReLU (+ residual) -----------
    wp_t = P["wp"].reshape(out_channels, Cexp).T.astype(f32)  # (Cexp, Cout)
    s_p, b_p = _fold_bn(*P["bn_p"])
    s_p, b_p = s_p.reshape(1, out_channels), b_p.reshape(1, out_channels)
    HW = H * W
    args = [y.reshape(B, HW, Cexp)]
    in_specs = [pl.BlockSpec((1, HW, Cexp), lambda b: (b, 0, 0))]
    if use_se:
        args.append(gate3)
        in_specs.append(pl.BlockSpec((1, 1, Cexp), lambda b: (b, 0, 0)))
    args += [wp_t, s_p, b_p]
    in_specs += [pl.BlockSpec((Cexp, out_channels), lambda b: (0, 0)),
                 pl.BlockSpec((1, out_channels), lambda b: (0, 0)),
                 pl.BlockSpec((1, out_channels), lambda b: (0, 0))]
    if residual:
        args.append(xh.reshape(B, HW, Cin))
        in_specs.append(pl.BlockSpec((1, HW, Cin), lambda b: (b, 0, 0)))

    out = pl.pallas_call(
        functools.partial(_project_kernel, use_se, residual),
        out_shape=jax.ShapeDtypeStruct((B, HW, out_channels), f32),
        grid=(B,),
        in_specs=in_specs,
        out_specs=pl.BlockSpec((1, HW, out_channels), lambda b: (b, 0, 0)),
        compiler_params=par,
    )(*args)

    # Layout plumbing: back to NCHW.
    return out.reshape(B, H, W, out_channels).transpose(0, 3, 1, 2)


# --------------------------------------------------------------------------
# Pure-JAX reference (no Pallas) for correctness checking
# --------------------------------------------------------------------------
def mbconv_ref(x, P, *, out_channels, expand_ratio, strides, kernel_size, se_ratio):
    eps = 1e-4
    hp = jax.lax.Precision.HIGHEST
    B, Cin, H, W = x.shape

    def bn_act(y, bnp):
        gamma, beta, mean, var = bnp
        yn = (y - mean[None, :, None, None]) * jax.lax.rsqrt(var + eps)[None, :, None, None]
        return jax.nn.relu(yn * gamma[None, :, None, None] + beta[None, :, None, None])

    shortcut = x
    h = x
    if expand_ratio != 1:
        h = jnp.einsum("oc,bchw->bohw", P["we"].reshape(-1, Cin), h, precision=hp)
        h = bn_act(h, P["bn_e"])
    Cexp = h.shape[1]
    pad = kernel_size // 2
    h = jax.lax.conv_general_dilated(
        h, P["wd"], window_strides=(strides, strides),
        padding=[(pad, pad), (pad, pad)],
        dimension_numbers=("NCHW", "OIHW", "NCHW"),
        feature_group_count=Cexp, precision=hp)
    h = bn_act(h, P["bn_d"])
    if se_ratio is not None and 0.0 < se_ratio <= 1.0:
        pooled = jnp.mean(h, axis=(2, 3), keepdims=True)
        a = jnp.einsum("rc,bcij->brij", P["w1"].reshape(-1, Cexp), pooled,
                       precision=hp) + P["b1"][None, :, None, None]
        a = a * jax.nn.sigmoid(a)
        g = jnp.einsum("cr,brij->bcij", P["w2"].reshape(Cexp, -1), a,
                       precision=hp) + P["b2"][None, :, None, None]
        h = h * jax.nn.sigmoid(g)
    h = jnp.einsum("oc,bchw->bohw", P["wp"].reshape(out_channels, Cexp), h, precision=hp)
    h = bn_act(h, P["bn_p"])
    if Cin == out_channels and strides == 1:
        h = h + shortcut
    return h


# --------------------------------------------------------------------------
# Demo
# --------------------------------------------------------------------------
if __name__ == "__main__":
    key = jax.random.PRNGKey(0)
    B, Cin, H, W = 2, 8, 16, 16
    Cout, expand_ratio, K, strides, se_ratio = 8, 4, 3, 1, 0.25
    Cexp = Cin * expand_ratio
    Cred = max(1, int(Cexp * se_ratio))

    ks = jax.random.split(key, 16)

    def nrm(k, shape, s=0.3):
        return s * jax.random.normal(k, shape, jnp.float32)

    def bn_params(k, c):
        k1, k2, k3, k4 = jax.random.split(k, 4)
        gamma = 1.0 + 0.1 * jax.random.normal(k1, (c,), jnp.float32)
        beta = 0.1 * jax.random.normal(k2, (c,), jnp.float32)
        mean = 0.1 * jax.random.normal(k3, (c,), jnp.float32)
        var = jax.random.uniform(k4, (c,), jnp.float32, minval=0.5, maxval=1.5)
        return (gamma, beta, mean, var)

    x = jax.random.normal(ks[0], (B, Cin, H, W), jnp.float32)
    P = dict(
        we=nrm(ks[1], (Cexp, Cin, 1, 1)),          # expand 1x1 conv weight (OIHW)
        wd=nrm(ks[2], (Cexp, 1, K, K)),            # depthwise conv weight (OIHW, groups=Cexp)
        wp=nrm(ks[3], (Cout, Cexp, 1, 1)),         # project 1x1 conv weight
        w1=nrm(ks[4], (Cred, Cexp, 1, 1)),         # SE reduce conv
        b1=nrm(ks[5], (Cred,), 0.1),
        w2=nrm(ks[6], (Cexp, Cred, 1, 1)),         # SE expand conv
        b2=nrm(ks[7], (Cexp,), 0.1),
        bn_e=bn_params(ks[8], Cexp),
        bn_d=bn_params(ks[9], Cexp),
        bn_p=bn_params(ks[10], Cout),
    )

    fwd = jax.jit(functools.partial(
        mbconv_forward, out_channels=Cout, expand_ratio=expand_ratio,
        strides=strides, kernel_size=K, se_ratio=se_ratio))

    y = jax.block_until_ready(fwd(x, P))

    y_ref = mbconv_ref(x, P, out_channels=Cout, expand_ratio=expand_ratio,
                       strides=strides, kernel_size=K, se_ratio=se_ratio)

    assert y.shape == (B, Cout, H, W)
    max_err = float(jnp.max(jnp.abs(y - y_ref)))
    assert bool(jnp.allclose(y, y_ref, atol=2e-2, rtol=2e-2)), max_err

    print("KERNEL_OK")
</pallas_src>

<mosaic_0001>
module attributes {stable_mosaic.version = 11 : i64} {
  func.func @_expand_kernel(%arg0: i32, %arg1: memref<256x8xf32, #tpu.memory_space<vmem>>, %arg2: memref<8x32xf32, #tpu.memory_space<vmem>>, %arg3: memref<1x32xf32, #tpu.memory_space<vmem>>, %arg4: memref<1x32xf32, #tpu.memory_space<vmem>>, %arg5: memref<256x32xf32, #tpu.memory_space<vmem>>) attributes {dimension_semantics = [#tpu.dimension_semantics<parallel>], iteration_bounds = array<i64: 2>, scalar_prefetch = 0 : i64, scratch_operands = 0 : i64, tpu.core_type = #tpu.core_type<tc>, window_params = [{transform_indices = @transform_0, window_bounds = array<i64: 256, 8>}, {pipeline_mode = #tpu.pipeline_mode<synchronous>, transform_indices = @transform_1, window_bounds = array<i64: 8, 32>}, {pipeline_mode = #tpu.pipeline_mode<synchronous>, transform_indices = @transform_2, window_bounds = array<i64: 1, 32>}, {pipeline_mode = #tpu.pipeline_mode<synchronous>, transform_indices = @transform_3, window_bounds = array<i64: 1, 32>}, {transform_indices = @transform_4, window_bounds = array<i64: 256, 32>}]} {
    %c0 = arith.constant 0 : index
    %c0_0 = arith.constant 0 : index
    %0 = vector.load %arg1[%c0, %c0_0] : memref<256x8xf32, #tpu.memory_space<vmem>>, vector<256x8xf32>
    %c0_1 = arith.constant 0 : index
    %c0_2 = arith.constant 0 : index
    %1 = vector.load %arg2[%c0_1, %c0_2] : memref<8x32xf32, #tpu.memory_space<vmem>>, vector<8x32xf32>
    %cst = arith.constant dense<0.000000e+00> : vector<256x32xf32>
    %2 = tpu.matmul %0, %1, %cst {dimension_numbers = #tpu.dot_dimension_numbers<[1], [0], [0], [1], [0, 0, 1, 1], [], []>} : vector<256x8xf32>, vector<8x32xf32>, vector<256x32xf32> -> vector<256x32xf32>
    %c0_3 = arith.constant 0 : index
    %c0_4 = arith.constant 0 : index
    %3 = vector.load %arg3[%c0_3, %c0_4] : memref<1x32xf32, #tpu.memory_space<vmem>>, vector<1x32xf32>
    %4 = vector.broadcast %3 : vector<1x32xf32> to vector<256x32xf32>
    %5 = arith.mulf %2, %4 : vector<256x32xf32>
    %c0_5 = arith.constant 0 : index
    %c0_6 = arith.constant 0 : index
    %6 = vector.load %arg4[%c0_5, %c0_6] : memref<1x32xf32, #tpu.memory_space<vmem>>, vector<1x32xf32>
    %7 = vector.broadcast %6 : vector<1x32xf32> to vector<256x32xf32>
    %8 = arith.addf %5, %7 : vector<256x32xf32>
    %cst_7 = arith.constant 0.000000e+00 : f32
    %9 = vector.broadcast %cst_7 : f32 to vector<256x32xf32>
    %10 = arith.maximumf %8, %9 : vector<256x32xf32>
    %c0_8 = arith.constant 0 : index
    %c0_9 = arith.constant 0 : index
    %11 = vector.load %arg5[%c0_8, %c0_9] : memref<256x32xf32, #tpu.memory_space<vmem>>, vector<256x32xf32>
    tpu.vector_store %arg5[%c0_8, %c0_9], %10 {strides = array<i32>} : memref<256x32xf32, #tpu.memory_space<vmem>>, vector<256x32xf32>,
    return
  }
  func.func @transform_0(%arg0: i32) -> (i32, i32) {
    %c0_i32 = arith.constant 0 : i32
    %c0_i32_0 = arith.constant 0 : i32
    return %arg0, %c0_i32 : i32, i32
  }
  func.func @transform_1(%arg0: i32) -> (i32, i32) {
    %c0_i32 = arith.constant 0 : i32
    %c0_i32_0 = arith.constant 0 : i32
    %c0_i32_1 = arith.constant 0 : i32
    return %c0_i32, %c0_i32_0 : i32, i32
  }
  func.func @transform_2(%arg0: i32) -> (i32, i32) {
    %c0_i32 = arith.constant 0 : i32
    %c0_i32_0 = arith.constant 0 : i32
    %c0_i32_1 = arith.constant 0 : i32
    return %c0_i32, %c0_i32_0 : i32, i32
  }
  func.func @transform_3(%arg0: i32) -> (i32, i32) {
    %c0_i32 = arith.constant 0 : i32
    %c0_i32_0 = arith.constant 0 : i32
    %c0_i32_1 = arith.constant 0 : i32
    return %c0_i32, %c0_i32_0 : i32, i32
  }
  func.func @transform_4(%arg0: i32) -> (i32, i32) {
    %c0_i32 = arith.constant 0 : i32
    %c0_i32_0 = arith.constant 0 : i32
    return %arg0, %c0_i32 : i32, i32
  }
}

module attributes {stable_mosaic.version = 11 : i64} {
  func.func @_depthwise_kernel(%arg0: i32, %arg1: memref<1x18x18x32xf32, #tpu.memory_space<vmem>>, %arg2: memref<9x32xf32, #tpu.memory_space<vmem>>, %arg3: memref<1x1x32xf32, #tpu.memory_space<vmem>>, %arg4: memref<1x1x32xf32, #tpu.memory_space<vmem>>, %arg5: memref<1x16x16x32xf32, #tpu.memory_space<vmem>>, %arg6: memref<1x1x32xf32, #tpu.memory_space<vmem>>) attributes {dimension_semantics = [#tpu.dimension_semantics<parallel>], iteration_bounds = array<i64: 2>, scalar_prefetch = 0 : i64, scratch_operands = 0 : i64, tpu.core_type = #tpu.core_type<tc>, window_params = [{transform_indices = @transform_0, window_bounds = array<i64: 1, 18, 18, 32>}, {pipeline_mode = #tpu.pipeline_mode<synchronous>, transform_indices = @transform_1, window_bounds = array<i64: 9, 32>}, {pipeline_mode = #tpu.pipeline_mode<synchronous>, transform_indices = @transform_2, window_bounds = array<i64: 1, 1, 32>}, {pipeline_mode = #tpu.pipeline_mode<synchronous>, transform_indices = @transform_3, window_bounds = array<i64: 1, 1, 32>}, {transform_indices = @transform_4, window_bounds = array<i64: 1, 16, 16, 32>}, {transform_indices = @transform_5, window_bounds = array<i64: 1, 1, 32>}]} {
    %c0 = arith.constant 0 : index
    %c0_0 = arith.constant 0 : index
    %c0_1 = arith.constant 0 : index
    %c0_2 = arith.constant 0 : index
    %0 = vector.load %arg1[%c0, %c0_0, %c0_1, %c0_2] : memref<1x18x18x32xf32, #tpu.memory_space<vmem>>, vector<1x18x18x32xf32>
    %1 = vector.shape_cast %0 : vector<1x18x18x32xf32> to vector<18x18x32xf32>
    %c0_3 = arith.constant 0 : index
    %c0_4 = arith.constant 0 : index
    %2 = vector.load %arg2[%c0_3, %c0_4] : memref<9x32xf32, #tpu.memory_space<vmem>>, vector<9x32xf32>
    %cst = arith.constant 0.000000e+00 : f32
    %3 = vector.broadcast %cst : f32 to vector<16x16x32xf32>
    %4 = vector.extract_strided_slice %2 {offsets = [0, 0], sizes = [1, 32], strides = [1, 1]} : vector<9x32xf32> to vector<1x32xf32>
    %5 = vector.shape_cast %4 : vector<1x32xf32> to vector<1x1x32xf32>
    %6 = vector.extract_strided_slice %1 {offsets = [0, 0, 0], sizes = [16, 16, 32], strides = [1, 1, 1]} : vector<18x18x32xf32> to vector<16x16x32xf32>
    %7 = vector.broadcast %5 : vector<1x1x32xf32> to vector<16x16x32xf32>
    %8 = arith.mulf %6, %7 : vector<16x16x32xf32>
    %9 = arith.addf %3, %8 : vector<16x16x32xf32>
    %10 = vector.extract_strided_slice %2 {offsets = [1, 0], sizes = [1, 32], strides = [1, 1]} : vector<9x32xf32> to vector<1x32xf32>
    %11 = vector.shape_cast %10 : vector<1x32xf32> to vector<1x1x32xf32>
    %12 = vector.extract_strided_slice %1 {offsets = [0, 1, 0], sizes = [16, 16, 32], strides = [1, 1, 1]} : vector<18x18x32xf32> to vector<16x16x32xf32>
    %13 = vector.broadcast %11 : vector<1x1x32xf32> to vector<16x16x32xf32>
    %14 = arith.mulf %12, %13 : vector<16x16x32xf32>
    %15 = arith.addf %9, %14 : vector<16x16x32xf32>
    %16 = vector.extract_strided_slice %2 {offsets = [2, 0], sizes = [1, 32], strides = [1, 1]} : vector<9x32xf32> to vector<1x32xf32>
    %17 = vector.shape_cast %16 : vector<1x32xf32> to vector<1x1x32xf32>
    %18 = vector.extract_strided_slice %1 {offsets = [0, 2, 0], sizes = [16, 16, 32], strides = [1, 1, 1]} : vector<18x18x32xf32> to vector<16x16x32xf32>
    %19 = vector.broadcast %17 : vector<1x1x32xf32> to vector<16x16x32xf32>
    %20 = arith.mulf %18, %19 : vector<16x16x32xf32>
    %21 = arith.addf %15, %20 : vector<16x16x32xf32>
    %22 = vector.extract_strided_slice %2 {offsets = [3, 0], sizes = [1, 32], strides = [1, 1]} : vector<9x32xf32> to vector<1x32xf32>
    %23 = vector.shape_cast %22 : vector<1x32xf32> to vector<1x1x32xf32>
    %24 = vector.extract_strided_slice %1 {offsets = [1, 0, 0], sizes = [16, 16, 32], strides = [1, 1, 1]} : vector<18x18x32xf32> to vector<16x16x32xf32>
    %25 = vector.broadcast %23 : vector<1x1x32xf32> to vector<16x16x32xf32>
    %26 = arith.mulf %24, %25 : vector<16x16x32xf32>
    %27 = arith.addf %21, %26 : vector<16x16x32xf32>
    %28 = vector.extract_strided_slice %2 {offsets = [4, 0], sizes = [1, 32], strides = [1, 1]} : vector<9x32xf32> to vector<1x32xf32>
    %29 = vector.shape_cast %28 : vector<1x32xf32> to vector<1x1x32xf32>
    %30 = vector.extract_strided_slice %1 {offsets = [1, 1, 0], sizes = [16, 16, 32], strides = [1, 1, 1]} : vector<18x18x32xf32> to vector<16x16x32xf32>
    %31 = vector.broadcast %29 : vector<1x1x32xf32> to vector<16x16x32xf32>
    %32 = arith.mulf %30, %31 : vector<16x16x32xf32>
    %33 = arith.addf %27, %32 : vector<16x16x32xf32>
    %34 = vector.extract_strided_slice %2 {offsets = [5, 0], sizes = [1, 32], strides = [1, 1]} : vector<9x32xf32> to vector<1x32xf32>
    %35 = vector.shape_cast %34 : vector<1x32xf32> to vector<1x1x32xf32>
    %36 = vector.extract_strided_slice %1 {offsets = [1, 2, 0], sizes = [16, 16, 32], strides = [1, 1, 1]} : vector<18x18x32xf32> to vector<16x16x32xf32>
    %37 = vector.broadcast %35 : vector<1x1x32xf32> to vector<16x16x32xf32>
    %38 = arith.mulf %36, %37 : vector<16x16x32xf32>
    %39 = arith.addf %33, %38 : vector<16x16x32xf32>
    %40 = vector.extract_strided_slice %2 {offsets = [6, 0], sizes = [1, 32], strides = [1, 1]} : vector<9x32xf32> to vector<1x32xf32>
    %41 = vector.shape_cast %40 : vector<1x32xf32> to vector<1x1x32xf32>
    %42 = vector.extract_strided_slice %1 {offsets = [2, 0, 0], sizes = [16, 16, 32], strides = [1, 1, 1]} : vector<18x18x32xf32> to vector<16x16x32xf32>
    %43 = vector.broadcast %41 : vector<1x1x32xf32> to vector<16x16x32xf32>
    %44 = arith.mulf %42, %43 : vector<16x16x32xf32>
    %45 = arith.addf %39, %44 : vector<16x16x32xf32>
    %46 = vector.extract_strided_slice %2 {offsets = [7, 0], sizes = [1, 32], strides = [1, 1]} : vector<9x32xf32> to vector<1x32xf32>
    %47 = vector.shape_cast %46 : vector<1x32xf32> to vector<1x1x32xf32>
    %48 = vector.extract_strided_slice %1 {offsets = [2, 1, 0], sizes = [16, 16, 32], strides = [1, 1, 1]} : vector<18x18x32xf32> to vector<16x16x32xf32>
    %49 = vector.broadcast %47 : vector<1x1x32xf32> to vector<16x16x32xf32>
    %50 = arith.mulf %48, %49 : vector<16x16x32xf32>
    %51 = arith.addf %45, %50 : vector<16x16x32xf32>
    %52 = vector.extract_strided_slice %2 {offsets = [8, 0], sizes = [1, 32], strides = [1, 1]} : vector<9x32xf32> to vector<1x32xf32>
    %53 = vector.shape_cast %52 : vector<1x32xf32> to vector<1x1x32xf32>
    %54 = vector.extract_strided_slice %1 {offsets = [2, 2, 0], sizes = [16, 16, 32], strides = [1, 1, 1]} : vector<18x18x32xf32> to vector<16x16x32xf32>
    %55 = vector.broadcast %53 : vector<1x1x32xf32> to vector<16x16x32xf32>
    %56 = arith.mulf %54, %55 : vector<16x16x32xf32>
    %57 = arith.addf %51, %56 : vector<16x16x32xf32>
    %c0_5 = arith.constant 0 : index
    %c0_6 = arith.constant 0 : index
    %c0_7 = arith.constant 0 : index
    %58 = vector.load %arg3[%c0_5, %c0_6, %c0_7] : memref<1x1x32xf32, #tpu.memory_space<vmem>>, vector<1x1x32xf32>
    %59 = vector.broadcast %58 : vector<1x1x32xf32> to vector<16x16x32xf32>
    %60 = arith.mulf %57, %59 : vector<16x16x32xf32>
    %c0_8 = arith.constant 0 : index
    %c0_9 = arith.constant 0 : index
    %c0_10 = arith.constant 0 : index
    %61 = vector.load %arg4[%c0_8, %c0_9, %c0_10] : memref<1x1x32xf32, #tpu.memory_space<vmem>>, vector<1x1x32xf32>
    %62 = vector.broadcast %61 : vector<1x1x32xf32> to vector<16x16x32xf32>
    %63 = arith.addf %60, %62 : vector<16x16x32xf32>
    %cst_11 = arith.constant 0.000000e+00 : f32
    %64 = vector.broadcast %cst_11 : f32 to vector<16x16x32xf32>
    %65 = arith.maximumf %63, %64 : vector<16x16x32xf32>
    %c0_12 = arith.constant 0 : index
    %c0_13 = arith.constant 0 : index
    %c0_14 = arith.constant 0 : index
    %c0_15 = arith.constant 0 : index
    %66 = vector.load %arg5[%c0_12, %c0_13, %c0_14, %c0_15] : memref<1x16x16x32xf32, #tpu.memory_space<vmem>>, vector<1x16x16x32xf32>
    %67 = vector.shape_cast %66 : vector<1x16x16x32xf32> to vector<16x16x32xf32>
    %68 = vector.shape_cast %65 : vector<16x16x32xf32> to vector<1x16x16x32xf32>
    tpu.vector_store %arg5[%c0_12, %c0_13, %c0_14, %c0_15], %68 {strides = array<i32>} : memref<1x16x16x32xf32, #tpu.memory_space<vmem>>, vector<1x16x16x32xf32>,
    %cst_16 = arith.constant dense<0.000000e+00> : vector<16x32xf32>
    %69 = vector.multi_reduction <add>, %65, %cst_16 [0] : vector<16x16x32xf32> to vector<16x32xf32>
    %70 = vector.shape_cast %69 : vector<16x32xf32> to vector<1x16x32xf32>
    %cst_17 = arith.constant dense<0.000000e+00> : vector<1x32xf32>
    %71 = vector.multi_reduction <add>, %70, %cst_17 [1] : vector<1x16x32xf32> to vector<1x32xf32>
    %72 = vector.shape_cast %71 : vector<1x32xf32> to vector<1x1x32xf32>
    %cst_18 = arith.constant 3.906250e-03 : f32
    %73 = vector.broadcast %cst_18 : f32 to vector<1x1x32xf32>
    %74 = arith.mulf %72, %73 : vector<1x1x32xf32>
    %c0_19 = arith.constant 0 : index
    %c0_20 = arith.constant 0 : index
    %c0_21 = arith.constant 0 : index
    %75 = vector.load %arg6[%c0_19, %c0_20, %c0_21] : memref<1x1x32xf32, #tpu.memory_space<vmem>>, vector<1x1x32xf32>
    tpu.vector_store %arg6[%c0_19, %c0_20, %c0_21], %74 {strides = array<i32>} : memref<1x1x32xf32, #tpu.memory_space<vmem>>, vector<1x1x32xf32>,
    return
  }
  func.func @transform_0(%arg0: i32) -> (i32, i32, i32, i32) {
    %c0_i32 = arith.constant 0 : i32
    %c0_i32_0 = arith.constant 0 : i32
    %c0_i32_1 = arith.constant 0 : i32
    %c0_i32_2 = arith.constant 0 : i32
    return %arg0, %c0_i32, %c0_i32_0, %c0_i32_1 : i32, i32, i32, i32
  }
  func.func @transform_1(%arg0: i32) -> (i32, i32) {
    %c0_i32 = arith.constant 0 : i32
    %c0_i32_0 = arith.constant 0 : i32
    %c0_i32_1 = arith.constant 0 : i32
    return %c0_i32, %c0_i32_0 : i32, i32
  }
  func.func @transform_2(%arg0: i32) -> (i32, i32, i32) {
    %c0_i32 = arith.constant 0 : i32
    %c0_i32_0 = arith.constant 0 : i32
    %c0_i32_1 = arith.constant 0 : i32
    %c0_i32_2 = arith.constant 0 : i32
    return %c0_i32, %c0_i32_0, %c0_i32_1 : i32, i32, i32
  }
  func.func @transform_3(%arg0: i32) -> (i32, i32, i32) {
    %c0_i32 = arith.constant 0 : i32
    %c0_i32_0 = arith.constant 0 : i32
    %c0_i32_1 = arith.constant 0 : i32
    %c0_i32_2 = arith.constant 0 : i32
    return %c0_i32, %c0_i32_0, %c0_i32_1 : i32, i32, i32
  }
  func.func @transform_4(%arg0: i32) -> (i32, i32, i32, i32) {
    %c0_i32 = arith.constant 0 : i32
    %c0_i32_0 = arith.constant 0 : i32
    %c0_i32_1 = arith.constant 0 : i32
    %c0_i32_2 = arith.constant 0 : i32
    return %arg0, %c0_i32, %c0_i32_0, %c0_i32_1 : i32, i32, i32, i32
  }
  func.func @transform_5(%arg0: i32) -> (i32, i32, i32) {
    %c0_i32 = arith.constant 0 : i32
    %c0_i32_0 = arith.constant 0 : i32
    %c0_i32_1 = arith.constant 0 : i32
    return %arg0, %c0_i32, %c0_i32_0 : i32, i32, i32
  }
}

module attributes {stable_mosaic.version = 11 : i64} {
  func.func @_project_kernel(%arg0: i32, %arg1: memref<1x256x32xf32, #tpu.memory_space<vmem>>, %arg2: memref<1x1x32xf32, #tpu.memory_space<vmem>>, %arg3: memref<32x8xf32, #tpu.memory_space<vmem>>, %arg4: memref<1x8xf32, #tpu.memory_space<vmem>>, %arg5: memref<1x8xf32, #tpu.memory_space<vmem>>, %arg6: memref<1x256x8xf32, #tpu.memory_space<vmem>>, %arg7: memref<1x256x8xf32, #tpu.memory_space<vmem>>) attributes {dimension_semantics = [#tpu.dimension_semantics<parallel>], iteration_bounds = array<i64: 2>, scalar_prefetch = 0 : i64, scratch_operands = 0 : i64, tpu.core_type = #tpu.core_type<tc>, window_params = [{transform_indices = @transform_0, window_bounds = array<i64: 1, 256, 32>}, {transform_indices = @transform_1, window_bounds = array<i64: 1, 1, 32>}, {pipeline_mode = #tpu.pipeline_mode<synchronous>, transform_indices = @transform_2, window_bounds = array<i64: 32, 8>}, {pipeline_mode = #tpu.pipeline_mode<synchronous>, transform_indices = @transform_3, window_bounds = array<i64: 1, 8>}, {pipeline_mode = #tpu.pipeline_mode<synchronous>, transform_indices = @transform_4, window_bounds = array<i64: 1, 8>}, {transform_indices = @transform_5, window_bounds = array<i64: 1, 256, 8>}, {transform_indices = @transform_6, window_bounds = array<i64: 1, 256, 8>}]} {
    %c0 = arith.constant 0 : index
    %c0_0 = arith.constant 0 : index
    %c0_1 = arith.constant 0 : index
    %0 = vector.load %arg1[%c0, %c0_0, %c0_1] : memref<1x256x32xf32, #tpu.memory_space<vmem>>, vector<1x256x32xf32>
    %1 = vector.shape_cast %0 : vector<1x256x32xf32> to vector<256x32xf32>
    %c0_2 = arith.constant 0 : index
    %c0_3 = arith.constant 0 : index
    %c0_4 = arith.constant 0 : index
    %2 = vector.load %arg2[%c0_2, %c0_3, %c0_4] : memref<1x1x32xf32, #tpu.memory_space<vmem>>, vector<1x1x32xf32>
    %3 = vector.shape_cast %2 : vector<1x1x32xf32> to vector<1x32xf32>
    %4 = vector.broadcast %3 : vector<1x32xf32> to vector<256x32xf32>
    %5 = arith.mulf %1, %4 : vector<256x32xf32>
    %c0_5 = arith.constant 0 : index
    %c0_6 = arith.constant 0 : index
    %6 = vector.load %arg3[%c0_5, %c0_6] : memref<32x8xf32, #tpu.memory_space<vmem>>, vector<32x8xf32>
    %cst = arith.constant dense<0.000000e+00> : vector<256x8xf32>
    %7 = tpu.matmul %5, %6, %cst {dimension_numbers = #tpu.dot_dimension_numbers<[1], [0], [0], [1], [0, 0, 1, 1], [], []>} : vector<256x32xf32>, vector<32x8xf32>, vector<256x8xf32> -> vector<256x8xf32>
    %c0_7 = arith.constant 0 : index
    %c0_8 = arith.constant 0 : index
    %8 = vector.load %arg4[%c0_7, %c0_8] : memref<1x8xf32, #tpu.memory_space<vmem>>, vector<1x8xf32>
    %9 = vector.broadcast %8 : vector<1x8xf32> to vector<256x8xf32>
    %10 = arith.mulf %7, %9 : vector<256x8xf32>
    %c0_9 = arith.constant 0 : index
    %c0_10 = arith.constant 0 : index
    %11 = vector.load %arg5[%c0_9, %c0_10] : memref<1x8xf32, #tpu.memory_space<vmem>>, vector<1x8xf32>
    %12 = vector.broadcast %11 : vector<1x8xf32> to vector<256x8xf32>
    %13 = arith.addf %10, %12 : vector<256x8xf32>
    %cst_11 = arith.constant 0.000000e+00 : f32
    %14 = vector.broadcast %cst_11 : f32 to vector<256x8xf32>
    %15 = arith.maximumf %13, %14 : vector<256x8xf32>
    %c0_12 = arith.constant 0 : index
    %c0_13 = arith.constant 0 : index
    %c0_14 = arith.constant 0 : index
    %16 = vector.load %arg6[%c0_12, %c0_13, %c0_14] : memref<1x256x8xf32, #tpu.memory_space<vmem>>, vector<1x256x8xf32>
    %17 = vector.shape_cast %16 : vector<1x256x8xf32> to vector<256x8xf32>
    %18 = arith.addf %15, %17 : vector<256x8xf32>
    %c0_15 = arith.constant 0 : index
    %c0_16 = arith.constant 0 : index
    %c0_17 = arith.constant 0 : index
    %19 = vector.load %arg7[%c0_15, %c0_16, %c0_17] : memref<1x256x8xf32, #tpu.memory_space<vmem>>, vector<1x256x8xf32>
    %20 = vector.shape_cast %19 : vector<1x256x8xf32> to vector<256x8xf32>
    %21 = vector.shape_cast %18 : vector<256x8xf32> to vector<1x256x8xf32>
    tpu.vector_store %arg7[%c0_15, %c0_16, %c0_17], %21 {strides = array<i32>} : memref<1x256x8xf32, #tpu.memory_space<vmem>>, vector<1x256x8xf32>,
    return
  }
  func.func @transform_0(%arg0: i32) -> (i32, i32, i32) {
    %c0_i32 = arith.constant 0 : i32
    %c0_i32_0 = arith.constant 0 : i32
    %c0_i32_1 = arith.constant 0 : i32
    return %arg0, %c0_i32, %c0_i32_0 : i32, i32, i32
  }
  func.func @transform_1(%arg0: i32) -> (i32, i32, i32) {
    %c0_i32 = arith.constant 0 : i32
    %c0_i32_0 = arith.constant 0 : i32
    %c0_i32_1 = arith.constant 0 : i32
    return %arg0, %c0_i32, %c0_i32_0 : i32, i32, i32
  }
  func.func @transform_2(%arg0: i32) -> (i32, i32) {
    %c0_i32 = arith.constant 0 : i32
    %c0_i32_0 = arith.constant 0 : i32
    %c0_i32_1 = arith.constant 0 : i32
    return %c0_i32, %c0_i32_0 : i32, i32
  }
  func.func @transform_3(%arg0: i32) -> (i32, i32) {
    %c0_i32 = arith.constant 0 : i32
    %c0_i32_0 = arith.constant 0 : i32
    %c0_i32_1 = arith.constant 0 : i32
    return %c0_i32, %c0_i32_0 : i32, i32
  }
  func.func @transform_4(%arg0: i32) -> (i32, i32) {
    %c0_i32 = arith.constant 0 : i32
    %c0_i32_0 = arith.constant 0 : i32
    %c0_i32_1 = arith.constant 0 : i32
    return %c0_i32, %c0_i32_0 : i32, i32
  }
  func.func @transform_5(%arg0: i32) -> (i32, i32, i32) {
    %c0_i32 = arith.constant 0 : i32
    %c0_i32_0 = arith.constant 0 : i32
    %c0_i32_1 = arith.constant 0 : i32
    return %arg0, %c0_i32, %c0_i32_0 : i32, i32, i32
  }
  func.func @transform_6(%arg0: i32) -> (i32, i32, i32) {
    %c0_i32 = arith.constant 0 : i32
    %c0_i32_0 = arith.constant 0 : i32
    %c0_i32_1 = arith.constant 0 : i32
    return %arg0, %c0_i32, %c0_i32_0 : i32, i32, i32
  }
}

module attributes {stable_mosaic.version = 11 : i64} {
  func.func @_se_gate_kernel(%arg0: memref<2x32xf32, #tpu.memory_space<vmem>>, %arg1: memref<32x8xf32, #tpu.memory_space<vmem>>, %arg2: memref<1x8xf32, #tpu.memory_space<vmem>>, %arg3: memref<8x32xf32, #tpu.memory_space<vmem>>, %arg4: memref<1x32xf32, #tpu.memory_space<vmem>>, %arg5: memref<2x32xf32, #tpu.memory_space<vmem>>) attributes {dimension_semantics = [], scalar_prefetch = 0 : i64, scratch_operands = 0 : i64, tpu.core_type = #tpu.core_type<tc>} {
    %c0 = arith.constant 0 : index
    %c0_0 = arith.constant 0 : index
    %0 = vector.load %arg0[%c0, %c0_0] : memref<2x32xf32, #tpu.memory_space<vmem>>, vector<2x32xf32>
    %c0_1 = arith.constant 0 : index
    %c0_2 = arith.constant 0 : index
    %1 = vector.load %arg1[%c0_1, %c0_2] : memref<32x8xf32, #tpu.memory_space<vmem>>, vector<32x8xf32>
    %cst = arith.constant dense<0.000000e+00> : vector<2x8xf32>
    %2 = tpu.matmul %0, %1, %cst {dimension_numbers = #tpu.dot_dimension_numbers<[1], [0], [0], [1], [0, 0, 1, 1], [], []>} : vector<2x32xf32>, vector<32x8xf32>, vector<2x8xf32> -> vector<2x8xf32>
    %c0_3 = arith.constant 0 : index
    %c0_4 = arith.constant 0 : index
    %3 = vector.load %arg2[%c0_3, %c0_4] : memref<1x8xf32, #tpu.memory_space<vmem>>, vector<1x8xf32>
    %4 = vector.broadcast %3 : vector<1x8xf32> to vector<2x8xf32>
    %5 = arith.addf %2, %4 : vector<2x8xf32>
    %6 = arith.negf %5 : vector<2x8xf32>
    %7 = math.exp %6 : vector<2x8xf32>
    %cst_5 = arith.constant 1.000000e+00 : f32
    %8 = vector.broadcast %cst_5 : f32 to vector<2x8xf32>
    %9 = arith.addf %8, %7 : vector<2x8xf32>
    %10 = arith.divf %8, %9 : vector<2x8xf32>
    %11 = arith.mulf %5, %10 : vector<2x8xf32>
    %c0_6 = arith.constant 0 : index
    %c0_7 = arith.constant 0 : index
    %12 = vector.load %arg3[%c0_6, %c0_7] : memref<8x32xf32, #tpu.memory_space<vmem>>, vector<8x32xf32>
    %cst_8 = arith.constant dense<0.000000e+00> : vector<2x32xf32>
    %13 = tpu.matmul %11, %12, %cst_8 {dimension_numbers = #tpu.dot_dimension_numbers<[1], [0], [0], [1], [0, 0, 1, 1], [], []>} : vector<2x8xf32>, vector<8x32xf32>, vector<2x32xf32> -> vector<2x32xf32>
    %c0_9 = arith.constant 0 : index
    %c0_10 = arith.constant 0 : index
    %14 = vector.load %arg4[%c0_9, %c0_10] : memref<1x32xf32, #tpu.memory_space<vmem>>, vector<1x32xf32>
    %15 = vector.broadcast %14 : vector<1x32xf32> to vector<2x32xf32>
    %16 = arith.addf %13, %15 : vector<2x32xf32>
    %17 = arith.negf %16 : vector<2x32xf32>
    %18 = math.exp %17 : vector<2x32xf32>
    %cst_11 = arith.constant 1.000000e+00 : f32
    %19 = vector.broadcast %cst_11 : f32 to vector<2x32xf32>
    %20 = arith.addf %19, %18 : vector<2x32xf32>
    %21 = arith.divf %19, %20 : vector<2x32xf32>
    %c0_12 = arith.constant 0 : index
    %c0_13 = arith.constant 0 : index
    %22 = vector.load %arg5[%c0_12, %c0_13] : memref<2x32xf32, #tpu.memory_space<vmem>>, vector<2x32xf32>
    tpu.vector_store %arg5[%c0_12, %c0_13], %21 {strides = array<i32>} : memref<2x32xf32, #tpu.memory_space<vmem>>, vector<2x32xf32>,
    return
  }
}

</mosaic_0001>

<llo_original>
// kernel: mbconv_forward.4
$region0: #{mbconv_forward.4}
  #allocation0 [shape = 'u32[]', space=smem, size = 0x4, offset = 0x4, fixed_abs, tag = 'smem constant byte address 0x4 - core index']
  #allocation1 [shape = 'u32[144,128]{1,0:T(1,128)}', space=vmem, size = 0x12000, scoped, tag = 'internal scratch']
  %s0 = inlined_call_operand.vmem [shape: f32[512,8], index: 0, kind: input, shape index: {}]
  %s1 = inlined_call_operand.vmem [shape: f32[8,32], index: 1, kind: input, shape index: {}]
  %s2 = inlined_call_operand.vmem [shape: f32[1,32], index: 2, kind: input, shape index: {}]
  %s3 = inlined_call_operand.vmem [shape: f32[1,32], index: 3, kind: input, shape index: {}]
  %s4 = inlined_call_operand.vmem [shape: f32[512,32], index: 4, kind: output, shape index: {}]
  %s5 = sld [smem:[#allocation0]]
  $region49: #{mbconv_forward.4} parent=0
    _
  %s7 = ssub.s32 1, %s5
  %s8 = scalar_select 0, %s7, %s5
  loop: start=0, step=1, limit=4
  $region2: #{mbconv_forward.4} parent=0 // loop_pre_header
    _
  $region3: #{mbconv_forward.4} parent=0 // loop_header
    %s10 = sphi 0, %s14
    %p11 = scmp.ge.s32.totalorder %s10, 4
    %s20 = sphi 0, %s22
    %s23 = sphi 0, %s20
    %s24 = sphi 0, %s23
    %s40 = sphi 0, %s24
    %s44 = sphi 0, %s44
    %s46 = sphi 0, %s44
    %s47 = sphi 0, %s46
    %s61 = sphi 0, %s47
    %s65 = sphi 0, %s65
    %s67 = sphi 0, %s65
    %s68 = sphi 0, %s67
    %s82 = sphi 0, %s68
    %s86 = sphi 0, %s86
    %s88 = sphi 0, %s86
    %s89 = sphi 0, %s88
    %s103 = sphi 0, %s89
    %s109 = sphi 0, %s111
    %s112 = sphi 0, %s109
    %s113 = sphi 0, %s112
    %s129 = sphi 0, %s113
  $region4: #{mbconv_forward.4} parent=0 // loop_header_branch
    %13 = sbr.rel (%p11) target = $region8
  $region5: #{mbconv_forward.4} parent=0 // loop_body
    %s15 = ssub.s32 %s10, 1
    %s16 = ssub.s32 %s10, 2
    %s17 = sadd.s32 %s10, 1
    %s18 = ssub.s32 %s10, %s17
    %p19 = scmp.eq.s32.totalorder %s18, 0
    %s21 = sadd.s32 %s20, 1
    %s22 = scalar_select %p19, %s20, %s21
    %p25 = pneg %p19
    %p26 = scmp.eq.s32.totalorder %s10, 1
    %p27 = por %p25, %p26
    %p28 = scmp.ne.s32.totalorder %s20, %s23
    %p29 = scmp.eq.s32.totalorder %s10, 0
    %p30 = por %p28, %p29
    %p31 = scmp.ne.s32.totalorder %s20, %s23
    %p32 = scmp.eq.s32.totalorder %s15, 1
    %p33 = por %p31, %p32
    %p34 = scmp.ne.s32.totalorder %s23, %s24
    %p35 = scmp.eq.s32.totalorder %s15, 0
    %p36 = por %p34, %p35
    %p37 = scmp.ne.s32.totalorder %s23, %s24
    %p38 = scmp.eq.s32.totalorder %s16, 1
    %p39 = por %p37, %p38
    %p41 = scmp.ne.s32.totalorder %s24, %s40
    %p42 = scmp.eq.s32.totalorder %s16, 0
    %p43 = por %p41, %p42
    %s45 = sadd.s32 %s44, 1
    %p48 = scmp.eq.s32.totalorder %s10, 1
    %p49 = scmp.ne.s32.totalorder %s44, %s46
    %p50 = scmp.eq.s32.totalorder %s10, 0
    %p51 = por %p49, %p50
    %p52 = scmp.ne.s32.totalorder %s44, %s46
    %p53 = scmp.eq.s32.totalorder %s15, 1
    %p54 = por %p52, %p53
    %p55 = scmp.ne.s32.totalorder %s46, %s47
    %p56 = scmp.eq.s32.totalorder %s15, 0
    %p57 = por %p55, %p56
    %p58 = scmp.ne.s32.totalorder %s46, %s47
    %p59 = scmp.eq.s32.totalorder %s16, 1
    %p60 = por %p58, %p59
    %p62 = scmp.ne.s32.totalorder %s47, %s61
    %p63 = scmp.eq.s32.totalorder %s16, 0
    %p64 = por %p62, %p63
    %s66 = sadd.s32 %s65, 1
    %p69 = scmp.eq.s32.totalorder %s10, 1
    %p70 = scmp.ne.s32.totalorder %s65, %s67
    %p71 = scmp.eq.s32.totalorder %s10, 0
    %p72 = por %p70, %p71
    %p73 = scmp.ne.s32.totalorder %s65, %s67
    %p74 = scmp.eq.s32.totalorder %s15, 1
    %p75 = por %p73, %p74
    %p76 = scmp.ne.s32.totalorder %s67, %s68
    %p77 = scmp.eq.s32.totalorder %s15, 0
    %p78 = por %p76, %p77
    %p79 = scmp.ne.s32.totalorder %s67, %s68
    %p80 = scmp.eq.s32.totalorder %s16, 1
    %p81 = por %p79, %p80
    %p83 = scmp.ne.s32.totalorder %s68, %s82
    %p84 = scmp.eq.s32.totalorder %s16, 0
    %p85 = por %p83, %p84
    %s87 = sadd.s32 %s86, 1
    %p90 = scmp.eq.s32.totalorder %s10, 1
    %p91 = scmp.ne.s32.totalorder %s86, %s88
    %p92 = scmp.eq.s32.totalorder %s10, 0
    %p93 = por %p91, %p92
    %p94 = scmp.ne.s32.totalorder %s86, %s88
    %p95 = scmp.eq.s32.totalorder %s15, 1
    %p96 = por %p94, %p95
    %p97 = scmp.ne.s32.totalorder %s88, %s89
    %p98 = scmp.eq.s32.totalorder %s15, 0
    %p99 = por %p97, %p98
    %p100 = scmp.ne.s32.totalorder %s88, %s89
    %p101 = scmp.eq.s32.totalorder %s16, 1
    %p102 = por %p100, %p101
    %p104 = scmp.ne.s32.totalorder %s89, %s103
    %p105 = scmp.eq.s32.totalorder %s16, 0
    %p106 = por %p104, %p105
    %s107 = ssub.s32 %s10, %s17
    %p108 = scmp.eq.s32.totalorder %s107, 0
    %s110 = sadd.s32 %s109, 1
    %s111 = scalar_select %p108, %s109, %s110
    %p114 = pneg %p108
    %p115 = scmp.eq.s32.totalorder %s10, 1
    %p116 = por %p114, %p115
    %p117 = scmp.ne.s32.totalorder %s109, %s112
    %p118 = scmp.eq.s32.totalorder %s10, 0
    %p119 = por %p117, %p118
    %p120 = scmp.ne.s32.totalorder %s109, %s112
    %p121 = scmp.eq.s32.totalorder %s15, 1
    %p122 = por %p120, %p121
    %p123 = scmp.ne.s32.totalorder %s112, %s113
    %p124 = scmp.eq.s32.totalorder %s15, 0
    %p125 = por %p123, %p124
    %p126 = scmp.ne.s32.totalorder %s112, %s113
    %p127 = scmp.eq.s32.totalorder %s16, 1
    %p128 = por %p126, %p127
    %p130 = scmp.ne.s32.totalorder %s113, %s129
    %p131 = scmp.eq.s32.totalorder %s16, 0
    %p132 = por %p130, %p131
    %p133 = scmp.le.s32.totalorder 1, %s10
    %p134 = scmp.lt.s32.totalorder %s10, 3
    %p135 = pnand %p133, %p134
    %p136 = pneg %p135
    // Predicated region
    $region9: #{mbconv_forward.4} parent=5 // pred_check
      _
    $region10: #{mbconv_forward.4} parent=5 // pred_check_branch
      %138 = sbr.rel (%p135) target = $region12
    $region11: #{mbconv_forward.4} parent=5 // pred_region
      %s139 = ssub.s32 %s10, 1
      // Predicated region
      $region13: #{mbconv_forward.4} parent=11 // pred_check
        %p140 = pneg %p57
      $region14: #{mbconv_forward.4} parent=11 // pred_check_branch
        %142 = sbr.rel (%p140) target = $region16
      $region15: #{mbconv_forward.4} parent=11 // pred_region
        _
      $region16: #{mbconv_forward.4} parent=11 // pred_fallthru
        _
      // Predicated region
      $region17: #{mbconv_forward.4} parent=11 // pred_check
        %p143 = pneg %p78
      $region18: #{mbconv_forward.4} parent=11 // pred_check_branch
        %145 = sbr.rel (%p143) target = $region20
      $region19: #{mbconv_forward.4} parent=11 // pred_region
        _
      $region20: #{mbconv_forward.4} parent=11 // pred_fallthru
        _
      // Predicated region
      $region21: #{mbconv_forward.4} parent=11 // pred_check
        %p146 = pneg %p99
      $region22: #{mbconv_forward.4} parent=11 // pred_check_branch
        %148 = sbr.rel (%p146) target = $region24
      $region23: #{mbconv_forward.4} parent=11 // pred_region
        _
      $region24: #{mbconv_forward.4} parent=11 // pred_fallthru
        _
    $region12: #{mbconv_forward.4} parent=5 // pred_fallthru
      _
    %p149 = scmp.lt.s32.totalorder %s10, 2
    // Predicated region
    $region25: #{mbconv_forward.4} parent=5 // pred_check
      %p150 = pneg %p149
    $region26: #{mbconv_forward.4} parent=5 // pred_check_branch
      %152 = sbr.rel (%p150) target = $region28
    $region27: #{mbconv_forward.4} parent=5 // pred_region
      // Predicated region
      $region29: #{mbconv_forward.4} parent=27 // pred_check
        %p153 = pneg %p30
      $region30: #{mbconv_forward.4} parent=27 // pred_check_branch
        %155 = sbr.rel (%p153) target = $region32
      $region31: #{mbconv_forward.4} parent=27 // pred_region
        %s156 = smul.u32 32, %s10
        %p157 = scmp.lt.s32.totalorder %s156, 63
        %s158 = scalar_select %p157, %s156, 63
        %s159 = smul.addr %s158, 8
        %s160 = scalar_lea.vmem %s0, %s159
        %s161 = smul.u32 32, %s10
      $region32: #{mbconv_forward.4} parent=27 // pred_fallthru
        _
    $region28: #{mbconv_forward.4} parent=5 // pred_fallthru
      _
    %p162 = scmp.le.s32.totalorder 1, %s10
    %p163 = scmp.lt.s32.totalorder %s10, 3
    %p164 = pnand %p162, %p163
    %p165 = pneg %p164
    // Predicated region
    $region33: #{mbconv_forward.4} parent=5 // pred_check
      _
    $region34: #{mbconv_forward.4} parent=5 // pred_check_branch
      %167 = sbr.rel (%p164) target = $region36
    $region35: #{mbconv_forward.4} parent=5 // pred_region
      %s168 = ssub.s32 %s10, 1
      %s169 = smul.u32 32, %s15
      %p170 = scmp.lt.s32.totalorder %s169, 63
      %s171 = scalar_select %p170, %s169, 63
      %s172 = smul.addr %s171, 8
      %s173 = scalar_lea.vmem %s0, %s172
      %p174 = pneg %p36
      %p175 = pneg %p33
      %p176 = pneg %p57
      %p177 = pneg %p54
      %p178 = pneg %p78
      %p179 = pneg %p75
      %p180 = pneg %p99
      %p181 = pneg %p96
      %p182 = pneg %p125
      %p183 = pneg %p122
      %s184 = smul.u32 32, %s15
      %p185 = scmp.lt.s32.totalorder %s184, 63
      %s186 = scalar_select %p185, %s184, 63
      %s187 = smul.addr %s186, 8
      %s188 = scalar_lea.vmem %s4, %s187
      %s189 = smul.u32 32, %s15
      %p190 = scmp.lt.s32.totalorder %s189, 63
      %s191 = scalar_select %p190, %s189, 63
      %s192 = smul.addr %s191, 8
      %s193 = scalar_lea.vmem %s0, %s192
      %s194 = smul.u32 32, %s15
      %s195 = smul.u32 32, %s15
      %p196 = scmp.lt.s32.totalorder %s195, 63
      %s197 = scalar_select %p196, %s195, 63
      %s198 = smul.addr %s197, 8
      %s199 = scalar_lea.vmem %s4, %s198
      %s200 = smul.u32 32, %s15
      %v201 = vld [vmem:[%s193] sm:$0xff]
      %v202 = vld [vmem:[%s193 + $0x8] sm:$0xff]
      %v203 = vld [vmem:[%s193 + $0x10] sm:$0xff]
      %v204 = vld [vmem:[%s193 + $0x18] sm:$0xff]
      %v205 = vld [vmem:[%s193 + $0x20] sm:$0xff]
      %v206 = vld [vmem:[%s193 + $0x28] sm:$0xff]
      %v207 = vld [vmem:[%s193 + $0x30] sm:$0xff]
      %v208 = vld [vmem:[%s193 + $0x38] sm:$0xff]
      %v209 = vld [vmem:[%s193 + $0x40] sm:$0xff]
      %v210 = vld [vmem:[%s193 + $0x48] sm:$0xff]
      %v211 = vld [vmem:[%s193 + $0x50] sm:$0xff]
      %v212 = vld [vmem:[%s193 + $0x58] sm:$0xff]
      %v213 = vld [vmem:[%s193 + $0x60] sm:$0xff]
      %v214 = vld [vmem:[%s193 + $0x68] sm:$0xff]
      %v215 = vld [vmem:[%s193 + $0x70] sm:$0xff]
      %v216 = vld [vmem:[%s193 + $0x78] sm:$0xff]
      %v217 = vld [vmem:[%s193 + $0x80] sm:$0xff]
      %v218 = vld [vmem:[%s193 + $0x88] sm:$0xff]
      %v219 = vld [vmem:[%s193 + $0x90] sm:$0xff]
      %v220 = vld [vmem:[%s193 + $0x98] sm:$0xff]
      %v221 = vld [vmem:[%s193 + $0xa0] sm:$0xff]
      %v222 = vld [vmem:[%s193 + $0xa8] sm:$0xff]
      %v223 = vld [vmem:[%s193 + $0xb0] sm:$0xff]
      %v224 = vld [vmem:[%s193 + $0xb8] sm:$0xff]
      %v225 = vld [vmem:[%s193 + $0xc0] sm:$0xff]
      %v226 = vld [vmem:[%s193 + $0xc8] sm:$0xff]
      %v227 = vld [vmem:[%s193 + $0xd0] sm:$0xff]
      %v228 = vld [vmem:[%s193 + $0xd8] sm:$0xff]
      %v229 = vld [vmem:[%s193 + $0xe0] sm:$0xff]
      %v230 = vld [vmem:[%s193 + $0xe8] sm:$0xff]
      %v231 = vld [vmem:[%s193 + $0xf0] sm:$0xff]
      %v232 = vld [vmem:[%s193 + $0xf8] sm:$0xff]
      %v233 = vld [vmem:[%s1] sm:$0xff]
      %vm234 = vcmask 64512
      %v236 = vsel %vm234, %v201, 0
      %v239 = vsel %vm234, %v202, 0
      %v242 = vsel %vm234, %v203, 0
      %v245 = vsel %vm234, %v204, 0
      %v248 = vsel %vm234, %v205, 0
      %v251 = vsel %vm234, %v206, 0
      %v254 = vsel %vm234, %v207, 0
      %v257 = vsel %vm234, %v208, 0
      %v260 = vsel %vm234, %v209, 0
      %v263 = vsel %vm234, %v210, 0
      %v266 = vsel %vm234, %v211, 0
      %v269 = vsel %vm234, %v212, 0
      %v272 = vsel %vm234, %v213, 0
      %v275 = vsel %vm234, %v214, 0
      %v278 = vsel %vm234, %v215, 0
      %v281 = vsel %vm234, %v216, 0
      %v284 = vsel %vm234, %v217, 0
      %v287 = vsel %vm234, %v218, 0
      %v290 = vsel %vm234, %v219, 0
      %v293 = vsel %vm234, %v220, 0
      %v296 = vsel %vm234, %v221, 0
      %v299 = vsel %vm234, %v222, 0
      %v302 = vsel %vm234, %v223, 0
      %v305 = vsel %vm234, %v224, 0
      %v308 = vsel %vm234, %v225, 0
      %v311 = vsel %vm234, %v226, 0
      %v314 = vsel %vm234, %v227, 0
      %v317 = vsel %vm234, %v228, 0
      %v320 = vsel %vm234, %v229, 0
      %v323 = vsel %vm234, %v230, 0
      %v326 = vsel %vm234, %v231, 0
      %v329 = vsel %vm234, %v232, 0
      %331 = vmatprep.subr.mxu0 0.0
      %332 = vmatpush1.msra.mxu0 %v233
      %333 = vmatprep.subr.mxu0 0.0
      %334 = vmatpush1.msra.mxu0 0.0
      %335 = vmatprep.subr.mxu0 0.0
      %336 = vmatpush1.msra.mxu0 0.0
      %337 = vmatprep.subr.mxu0 0.0
      %338 = vmatpush1.msra.mxu0 0.0
      %339 = vmatprep.subr.mxu0 0.0
      %340 = vmatpush1.msra.mxu0 0.0
      %341 = vmatprep.subr.mxu0 0.0
      %342 = vmatpush1.msra.mxu0 0.0
      %343 = vmatprep.subr.mxu0 0.0
      %344 = vmatpush1.msra.mxu0 0.0
      %345 = vmatprep.subr.mxu0 0.0
      %346 = vmatpush1.msra.mxu0 0.0
      %347 = vmatprep.subr.mxu0 0.0
      %348 = vmatpush1.msra.mxu0 0.0
      %349 = vmatprep.subr.mxu0 0.0
      %350 = vmatpush1.msra.mxu0 0.0
      %351 = vmatprep.subr.mxu0 0.0
      %352 = vmatpush1.msra.mxu0 0.0
      %353 = vmatprep.subr.mxu0 0.0
      %354 = vmatpush1.msra.mxu0 0.0
      %355 = vmatprep.subr.mxu0 0.0
      %356 = vmatpush1.msra.mxu0 0.0
      %357 = vmatprep.subr.mxu0 0.0
      %358 = vmatpush1.msra.mxu0 0.0
      %359 = vmatprep.subr.mxu0 0.0
      %360 = vmatpush1.msra.mxu0 0.0
      %361 = vmatprep.subr.mxu0 0.0
      %362 = vmatpush1.msra.mxu0 0.0
      %363 = vmatprep.subr.mxu0 0.0
      %364 = vmatpush1.msra.mxu0 0.0
      %365 = vmatprep.subr.mxu0 0.0
      %366 = vmatpush1.msra.mxu0 0.0
      %367 = vmatprep.subr.mxu0 0.0
      %368 = vmatpush1.msra.mxu0 0.0
      %369 = vmatprep.subr.mxu0 0.0
      %370 = vmatpush1.msra.mxu0 0.0
      %371 = vmatprep.subr.mxu0 0.0
      %372 = vmatpush1.msra.mxu0 0.0
      %373 = vmatprep.subr.mxu0 0.0
      %374 = vmatpush1.msra.mxu0 0.0
      %375 = vmatprep.subr.mxu0 0.0
      %376 = vmatpush1.msra.mxu0 0.0
      %377 = vmatprep.subr.mxu0 0.0
      %378 = vmatpush1.msra.mxu0 0.0
      %379 = vmatprep.subr.mxu0 0.0
      %380 = vmatpush1.msra.mxu0 0.0
      %381 = vmatprep.subr.mxu0 0.0
      %382 = vmatpush1.msra.mxu0 0.0
      %383 = vmatprep.subr.mxu0 0.0
      %384 = vmatpush1.msra.mxu0 0.0
      %385 = vmatprep.subr.mxu0 0.0
      %386 = vmatpush1.msra.mxu0 0.0
      %387 = vmatprep.subr.mxu0 0.0
      %388 = vmatpush1.msra.mxu0 0.0
      %389 = vmatprep.subr.mxu0 0.0
      %390 = vmatpush1.msra.mxu0 0.0
      %391 = vmatprep.subr.mxu0 0.0
      %392 = vmatpush1.msra.mxu0 0.0
      %393 = vmatprep.subr.mxu0 0.0
      %394 = vmatpush1.msra.mxu0 0.0
      %395 = vmatprep.mubr.f32.mxu0 0.0
      %396 = vmatmul.mubr.f32.gmra.mrb[0].mxu0 %v236
      %v397 = vpop.f32.mrb[0].mxu0
      %v398 = vadd.f32 0.0, %v397
      %v399 = vpop.f32.mrb[0].mxu0
      %400 = vmatprep.mubr.f32.mxu0 0.0
      %401 = vmatmul.mubr.f32.gmra.mrb[0].mxu0 %v239
      %v402 = vpop.f32.mrb[0].mxu0
      %v403 = vadd.f32 0.0, %v402
      %v404 = vpop.f32.mrb[0].mxu0
      %405 = vmatprep.mubr.f32.mxu0 0.0
      %406 = vmatmul.mubr.f32.gmra.mrb[0].mxu0 %v242
      %v407 = vpop.f32.mrb[0].mxu0
      %v408 = vadd.f32 0.0, %v407
      %v409 = vpop.f32.mrb[0].mxu0
      %410 = vmatprep.mubr.f32.mxu0 0.0
      %411 = vmatmul.mubr.f32.gmra.mrb[0].mxu0 %v245
      %v412 = vpop.f32.mrb[0].mxu0
      %v413 = vadd.f32 0.0, %v412
      %v414 = vpop.f32.mrb[0].mxu0
      %415 = vmatprep.mubr.f32.mxu0 0.0
      %416 = vmatmul.mubr.f32.gmra.mrb[0].mxu0 %v248
      %v417 = vpop.f32.mrb[0].mxu0
      %v418 = vadd.f32 0.0, %v417
      %v419 = vpop.f32.mrb[0].mxu0
      %420 = vmatprep.mubr.f32.mxu0 0.0
      %421 = vmatmul.mubr.f32.gmra.mrb[0].mxu0 %v251
      %v422 = vpop.f32.mrb[0].mxu0
      %v423 = vadd.f32 0.0, %v422
      %v424 = vpop.f32.mrb[0].mxu0
      %425 = vmatprep.mubr.f32.mxu0 0.0
      %426 = vmatmul.mubr.f32.gmra.mrb[0].mxu0 %v254
      %v427 = vpop.f32.mrb[0].mxu0
      %v428 = vadd.f32 0.0, %v427
      %v429 = vpop.f32.mrb[0].mxu0
      %430 = vmatprep.mubr.f32.mxu0 0.0
      %431 = vmatmul.mubr.f32.gmra.mrb[0].mxu0 %v257
      %v432 = vpop.f32.mrb[0].mxu0
      %v433 = vadd.f32 0.0, %v432
      %v434 = vpop.f32.mrb[0].mxu0
      %435 = vmatprep.mubr.f32.mxu0 0.0
      %436 = vmatmul.mubr.f32.gmra.mrb[0].mxu0 %v260
      %v437 = vpop.f32.mrb[0].mxu0
      %v438 = vadd.f32 0.0, %v437
      %v439 = vpop.f32.mrb[0].mxu0
      %440 = vmatprep.mubr.f32.mxu0 0.0
      %441 = vmatmul.mubr.f32.gmra.mrb[0].mxu0 %v263
      %v442 = vpop.f32.mrb[0].mxu0
      %v443 = vadd.f32 0.0, %v442
      %v444 = vpop.f32.mrb[0].mxu0
      %445 = vmatprep.mubr.f32.mxu0 0.0
      %446 = vmatmul.mubr.f32.gmra.mrb[0].mxu0 %v266
      %v447 = vpop.f32.mrb[0].mxu0
      %v448 = vadd.f32 0.0, %v447
      %v449 = vpop.f32.mrb[0].mxu0
      %450 = vmatprep.mubr.f32.mxu0 0.0
      %451 = vmatmul.mubr.f32.gmra.mrb[0].mxu0 %v269
      %v452 = vpop.f32.mrb[0].mxu0
      %v453 = vadd.f32 0.0, %v452
      %v454 = vpop.f32.mrb[0].mxu0
      %455 = vmatprep.mubr.f32.mxu0 0.0
      %456 = vmatmul.mubr.f32.gmra.mrb[0].mxu0 %v272
      %v457 = vpop.f32.mrb[0].mxu0
      %v458 = vadd.f32 0.0, %v457
      %v459 = vpop.f32.mrb[0].mxu0
      %460 = vmatprep.mubr.f32.mxu0 0.0
      %461 = vmatmul.mubr.f32.gmra.mrb[0].mxu0 %v275
      %v462 = vpop.f32.mrb[0].mxu0
      %v463 = vadd.f32 0.0, %v462
      %v464 = vpop.f32.mrb[0].mxu0
      %465 = vmatprep.mubr.f32.mxu0 0.0
      %466 = vmatmul.mubr.f32.gmra.mrb[0].mxu0 %v278
      %v467 = vpop.f32.mrb[0].mxu0
      %v468 = vadd.f32 0.0, %v467
      %v469 = vpop.f32.mrb[0].mxu0
      %470 = vmatprep.mubr.f32.mxu0 0.0
      %471 = vmatmul.mubr.f32.gmra.mrb[0].mxu0 %v281
      %v472 = vpop.f32.mrb[0].mxu0
      %v473 = vadd.f32 0.0, %v472
      %v474 = vpop.f32.mrb[0].mxu0
      %475 = vmatprep.mubr.f32.mxu0 0.0
      %476 = vmatmul.mubr.f32.gmra.mrb[0].mxu0 %v284
      %v477 = vpop.f32.mrb[0].mxu0
      %v478 = vadd.f32 0.0, %v477
      %v479 = vpop.f32.mrb[0].mxu0
      %480 = vmatprep.mubr.f32.mxu0 0.0
      %481 = vmatmul.mubr.f32.gmra.mrb[0].mxu0 %v287
      %v482 = vpop.f32.mrb[0].mxu0
      %v483 = vadd.f32 0.0, %v482
      %v484 = vpop.f32.mrb[0].mxu0
      %485 = vmatprep.mubr.f32.mxu0 0.0
      %486 = vmatmul.mubr.f32.gmra.mrb[0].mxu0 %v290
      %v487 = vpop.f32.mrb[0].mxu0
      %v488 = vadd.f32 0.0, %v487
      %v489 = vpop.f32.mrb[0].mxu0
      %490 = vmatprep.mubr.f32.mxu0 0.0
      %491 = vmatmul.mubr.f32.gmra.mrb[0].mxu0 %v293
      %v492 = vpop.f32.mrb[0].mxu0
      %v493 = vadd.f32 0.0, %v492
      %v494 = vpop.f32.mrb[0].mxu0
      %495 = vmatprep.mubr.f32.mxu0 0.0
      %496 = vmatmul.mubr.f32.gmra.mrb[0].mxu0 %v296
      %v497 = vpop.f32.mrb[0].mxu0
      %v498 = vadd.f32 0.0, %v497
      %v499 = vpop.f32.mrb[0].mxu0
      %500 = vmatprep.mubr.f32.mxu0 0.0
      %501 = vmatmul.mubr.f32.gmra.mrb[0].mxu0 %v299
      %v502 = vpop.f32.mrb[0].mxu0
      %v503 = vadd.f32 0.0, %v502
      %v504 = vpop.f32.mrb[0].mxu0
      %505 = vmatprep.mubr.f32.mxu0 0.0
      %506 = vmatmul.mubr.f32.gmra.mrb[0].mxu0 %v302
      %v507 = vpop.f32.mrb[0].mxu0
      %v508 = vadd.f32 0.0, %v507
      %v509 = vpop.f32.mrb[0].mxu0
      %510 = vmatprep.mubr.f32.mxu0 0.0
      %511 = vmatmul.mubr.f32.gmra.mrb[0].mxu0 %v305
      %v512 = vpop.f32.mrb[0].mxu0
      %v513 = vadd.f32 0.0, %v512
      %v514 = vpop.f32.mrb[0].mxu0
      %515 = vmatprep.mubr.f32.mxu0 0.0
      %516 = vmatmul.mubr.f32.gmra.mrb[0].mxu0 %v308
      %v517 = vpop.f32.mrb[0].mxu0
      %v518 = vadd.f32 0.0, %v517
      %v519 = vpop.f32.mrb[0].mxu0
      %520 = vmatprep.mubr.f32.mxu0 0.0
      %521 = vmatmul.mubr.f32.gmra.mrb[0].mxu0 %v311
      %v522 = vpop.f32.mrb[0].mxu0
      %v523 = vadd.f32 0.0, %v522
      %v524 = vpop.f32.mrb[0].mxu0
      %525 = vmatprep.mubr.f32.mxu0 0.0
      %526 = vmatmul.mubr.f32.gmra.mrb[0].mxu0 %v314
      %v527 = vpop.f32.mrb[0].mxu0
      %v528 = vadd.f32 0.0, %v527
      %v529 = vpop.f32.mrb[0].mxu0
      %530 = vmatprep.mubr.f32.mxu0 0.0
      %531 = vmatmul.mubr.f32.gmra.mrb[0].mxu0 %v317
      %v532 = vpop.f32.mrb[0].mxu0
      %v533 = vadd.f32 0.0, %v532
      %v534 = vpop.f32.mrb[0].mxu0
      %535 = vmatprep.mubr.f32.mxu0 0.0
      %536 = vmatmul.mubr.f32.gmra.mrb[0].mxu0 %v320
      %v537 = vpop.f32.mrb[0].mxu0
      %v538 = vadd.f32 0.0, %v537
      %v539 = vpop.f32.mrb[0].mxu0
      %540 = vmatprep.mubr.f32.mxu0 0.0
      %541 = vmatmul.mubr.f32.gmra.mrb[0].mxu0 %v323
      %v542 = vpop.f32.mrb[0].mxu0
      %v543 = vadd.f32 0.0, %v542
      %v544 = vpop.f32.mrb[0].mxu0
      %545 = vmatprep.mubr.f32.mxu0 0.0
      %546 = vmatmul.mubr.f32.gmra.mrb[0].mxu0 %v326
      %v547 = vpop.f32.mrb[0].mxu0
      %v548 = vadd.f32 0.0, %v547
      %v549 = vpop.f32.mrb[0].mxu0
      %550 = vmatprep.mubr.f32.mxu0 0.0
      %551 = vmatmul.mubr.f32.gmra.mrb[0].mxu0 %v329
      %v552 = vpop.f32.mrb[0].mxu0
      %v553 = vadd.f32 0.0, %v552
      %v554 = vpop.f32.mrb[0].mxu0
      %555 = vdwg.mxu0
      %v556 = vld [vmem:[%s2] sm:$0x1]
      %v558 = vlaneseq
      %v559 = vshrl.u32 %v558, 7
      %v560 = vsub.s32 0, %v559
      %v561 = vrot.slane %v556, %v560
      %v563 = vmul.f32 %v398, %v561
      %v564 = vmul.f32 %v403, %v561
      %v565 = vmul.f32 %v408, %v561
      %v566 = vmul.f32 %v413, %v561
      %v567 = vmul.f32 %v418, %v561
      %v568 = vmul.f32 %v423, %v561
      %v569 = vmul.f32 %v428, %v561
      %v570 = vmul.f32 %v433, %v561
      %v571 = vmul.f32 %v438, %v561
      %v572 = vmul.f32 %v443, %v561
      %v573 = vmul.f32 %v448, %v561
      %v574 = vmul.f32 %v453, %v561
      %v575 = vmul.f32 %v458, %v561
      %v576 = vmul.f32 %v463, %v561
      %v577 = vmul.f32 %v468, %v561
      %v578 = vmul.f32 %v473, %v561
      %v579 = vmul.f32 %v478, %v561
      %v580 = vmul.f32 %v483, %v561
      %v581 = vmul.f32 %v488, %v561
      %v582 = vmul.f32 %v493, %v561
      %v583 = vmul.f32 %v498, %v561
      %v584 = vmul.f32 %v503, %v561
      %v585 = vmul.f32 %v508, %v561
      %v586 = vmul.f32 %v513, %v561
      %v587 = vmul.f32 %v518, %v561
      %v588 = vmul.f32 %v523, %v561
      %v589 = vmul.f32 %v528, %v561
      %v590 = vmul.f32 %v533, %v561
      %v591 = vmul.f32 %v538, %v561
      %v592 = vmul.f32 %v543, %v561
      %v593 = vmul.f32 %v548, %v561
      %v594 = vmul.f32 %v553, %v561
      %v595 = vld [vmem:[%s3] sm:$0x1]
      %v597 = vlaneseq
      %v598 = vshrl.u32 %v597, 7
      %v599 = vsub.s32 0, %v598
      %v600 = vrot.slane %v595, %v599
      %v602 = vadd.f32 %v563, %v600
      %v603 = vadd.f32 %v564, %v600
      %v604 = vadd.f32 %v565, %v600
      %v605 = vadd.f32 %v566, %v600
      %v606 = vadd.f32 %v567, %v600
      %v607 = vadd.f32 %v568, %v600
      %v608 = vadd.f32 %v569, %v600
      %v609 = vadd.f32 %v570, %v600
      %v610 = vadd.f32 %v571, %v600
      %v611 = vadd.f32 %v572, %v600
      %v612 = vadd.f32 %v573, %v600
      %v613 = vadd.f32 %v574, %v600
      %v614 = vadd.f32 %v575, %v600
      %v615 = vadd.f32 %v576, %v600
      %v616 = vadd.f32 %v577, %v600
      %v617 = vadd.f32 %v578, %v600
      %v618 = vadd.f32 %v579, %v600
      %v619 = vadd.f32 %v580, %v600
      %v620 = vadd.f32 %v581, %v600
      %v621 = vadd.f32 %v582, %v600
      %v622 = vadd.f32 %v583, %v600
      %v623 = vadd.f32 %v584, %v600
      %v624 = vadd.f32 %v585, %v600
      %v625 = vadd.f32 %v586, %v600
      %v626 = vadd.f32 %v587, %v600
      %v627 = vadd.f32 %v588, %v600
      %v628 = vadd.f32 %v589, %v600
      %v629 = vadd.f32 %v590, %v600
      %v630 = vadd.f32 %v591, %v600
      %v631 = vadd.f32 %v592, %v600
      %v632 = vadd.f32 %v593, %v600
      %v633 = vadd.f32 %v594, %v600
      %v634 = vmax.f32 %v602, 0.0
      %v635 = vmax.f32 %v603, 0.0
      %v636 = vmax.f32 %v604, 0.0
      %v637 = vmax.f32 %v605, 0.0
      %v638 = vmax.f32 %v606, 0.0
      %v639 = vmax.f32 %v607, 0.0
      %v640 = vmax.f32 %v608, 0.0
      %v641 = vmax.f32 %v609, 0.0
      %v642 = vmax.f32 %v610, 0.0
      %v643 = vmax.f32 %v611, 0.0
      %v644 = vmax.f32 %v612, 0.0
      %v645 = vmax.f32 %v613, 0.0
      %v646 = vmax.f32 %v614, 0.0
      %v647 = vmax.f32 %v615, 0.0
      %v648 = vmax.f32 %v616, 0.0
      %v649 = vmax.f32 %v617, 0.0
      %v650 = vmax.f32 %v618, 0.0
      %v651 = vmax.f32 %v619, 0.0
      %v652 = vmax.f32 %v620, 0.0
      %v653 = vmax.f32 %v621, 0.0
      %v654 = vmax.f32 %v622, 0.0
      %v655 = vmax.f32 %v623, 0.0
      %v656 = vmax.f32 %v624, 0.0
      %v657 = vmax.f32 %v625, 0.0
      %v658 = vmax.f32 %v626, 0.0
      %v659 = vmax.f32 %v627, 0.0
      %v660 = vmax.f32 %v628, 0.0
      %v661 = vmax.f32 %v629, 0.0
      %v662 = vmax.f32 %v630, 0.0
      %v663 = vmax.f32 %v631, 0.0
      %v664 = vmax.f32 %v632, 0.0
      %v665 = vmax.f32 %v633, 0.0
      %vm666 = vcmask 261120
      %667 = vst.msk [vmem:[%s199] sm:$0xff] %vm666, %v634
      %668 = vst.msk [vmem:[%s199 + $0x8] sm:$0xff] %vm666, %v635
      %669 = vst.msk [vmem:[%s199 + $0x10] sm:$0xff] %vm666, %v636
      %670 = vst.msk [vmem:[%s199 + $0x18] sm:$0xff] %vm666, %v637
      %671 = vst.msk [vmem:[%s199 + $0x20] sm:$0xff] %vm666, %v638
      %672 = vst.msk [vmem:[%s199 + $0x28] sm:$0xff] %vm666, %v639
      %673 = vst.msk [vmem:[%s199 + $0x30] sm:$0xff] %vm666, %v640
      %674 = vst.msk [vmem:[%s199 + $0x38] sm:$0xff] %vm666, %v641
      %675 = vst.msk [vmem:[%s199 + $0x40] sm:$0xff] %vm666, %v642
      %676 = vst.msk [vmem:[%s199 + $0x48] sm:$0xff] %vm666, %v643
      %677 = vst.msk [vmem:[%s199 + $0x50] sm:$0xff] %vm666, %v644
      %678 = vst.msk [vmem:[%s199 + $0x58] sm:$0xff] %vm666, %v645
      %679 = vst.msk [vmem:[%s199 + $0x60] sm:$0xff] %vm666, %v646
      %680 = vst.msk [vmem:[%s199 + $0x68] sm:$0xff] %vm666, %v647
      %681 = vst.msk [vmem:[%s199 + $0x70] sm:$0xff] %vm666, %v648
      %682 = vst.msk [vmem:[%s199 + $0x78] sm:$0xff] %vm666, %v649
      %683 = vst.msk [vmem:[%s199 + $0x80] sm:$0xff] %vm666, %v650
      %684 = vst.msk [vmem:[%s199 + $0x88] sm:$0xff] %vm666, %v651
      %685 = vst.msk [vmem:[%s199 + $0x90] sm:$0xff] %vm666, %v652
      %686 = vst.msk [vmem:[%s199 + $0x98] sm:$0xff] %vm666, %v653
      %687 = vst.msk [vmem:[%s199 + $0xa0] sm:$0xff] %vm666, %v654
      %688 = vst.msk [vmem:[%s199 + $0xa8] sm:$0xff] %vm666, %v655
      %689 = vst.msk [vmem:[%s199 + $0xb0] sm:$0xff] %vm666, %v656
      %690 = vst.msk [vmem:[%s199 + $0xb8] sm:$0xff] %vm666, %v657
      %691 = vst.msk [vmem:[%s199 + $0xc0] sm:$0xff] %vm666, %v658
      %692 = vst.msk [vmem:[%s199 + $0xc8] sm:$0xff] %vm666, %v659
      %693 = vst.msk [vmem:[%s199 + $0xd0] sm:$0xff] %vm666, %v660
      %694 = vst.msk [vmem:[%s199 + $0xd8] sm:$0xff] %vm666, %v661
      %695 = vst.msk [vmem:[%s199 + $0xe0] sm:$0xff] %vm666, %v662
      %696 = vst.msk [vmem:[%s199 + $0xe8] sm:$0xff] %vm666, %v663
      %697 = vst.msk [vmem:[%s199 + $0xf0] sm:$0xff] %vm666, %v664
      %698 = vst.msk [vmem:[%s199 + $0xf8] sm:$0xff] %vm666, %v665
      %s699 = smul.u32 32, %s15
      %p700 = scmp.lt.s32.totalorder %s699, 63
      %s701 = scalar_select %p700, %s699, 63
      %s702 = smul.addr %s701, 8
      %s703 = scalar_lea.vmem %s4, %s702
      // Predicated region
      $region37: #{mbconv_forward.4} parent=35 // pred_check
        %p704 = pneg %p122
      $region38: #{mbconv_forward.4} parent=35 // pred_check_branch
        %706 = sbr.rel (%p704) target = $region40
      $region39: #{mbconv_forward.4} parent=35 // pred_region
        %s707 = smul.u32 32, %s15
      $region40: #{mbconv_forward.4} parent=35 // pred_fallthru
        _
    $region36: #{mbconv_forward.4} parent=5 // pred_fallthru
      _
    %p708 = scmp.le.s32.totalorder 2, %s10
    // Predicated region
    $region41: #{mbconv_forward.4} parent=5 // pred_check
      %p709 = pneg %p708
    $region42: #{mbconv_forward.4} parent=5 // pred_check_branch
      %711 = sbr.rel (%p709) target = $region44
    $region43: #{mbconv_forward.4} parent=5 // pred_region
      %s712 = ssub.s32 %s10, 2
      // Predicated region
      $region45: #{mbconv_forward.4} parent=43 // pred_check
        %p713 = pneg %p128
      $region46: #{mbconv_forward.4} parent=43 // pred_check_branch
        %715 = sbr.rel (%p713) target = $region48
      $region47: #{mbconv_forward.4} parent=43 // pred_region
        %s716 = smul.u32 32, %s16
        %p717 = scmp.lt.s32.totalorder %s716, 63
        %s718 = scalar_select %p717, %s716, 63
        %s719 = smul.addr %s718, 8
        %s720 = scalar_lea.vmem %s4, %s719
      $region48: #{mbconv_forward.4} parent=43 // pred_fallthru
        _
    $region44: #{mbconv_forward.4} parent=5 // pred_fallthru
      _
  $region6: #{mbconv_forward.4} parent=0 // loop_footer
    %s14 = sadd.s32 1, %s10
  $region7: #{mbconv_forward.4} parent=0 // loop_footer_branch
    %9 = sbr.rel target = $region3
  $region8: #{mbconv_forward.4} parent=0 // loop_exit
    _

// kernel: mbconv_forward.6
$region0: #{mbconv_forward.6}
  #allocation0 [shape = 'u32[]', space=smem, size = 0x4, offset = 0x4, fixed_abs, tag = 'smem constant byte address 0x4 - core index']
  #allocation1 [shape = 'u32[144,128]{1,0:T(1,128)}', space=vmem, size = 0x12000, scoped, tag = 'internal scratch']
  %s0 = inlined_call_operand.vmem [shape: f32[2,32], index: 0, kind: input, shape index: {}]
  %s1 = inlined_call_operand.vmem [shape: f32[32,8], index: 1, kind: input, shape index: {}]
  %s2 = inlined_call_operand.vmem [shape: f32[1,8], index: 2, kind: input, shape index: {}]
  %s3 = inlined_call_operand.vmem [shape: f32[8,32], index: 3, kind: input, shape index: {}]
  %s4 = inlined_call_operand.vmem [shape: f32[1,32], index: 4, kind: input, shape index: {}]
  %s5 = inlined_call_operand.vmem [shape: f32[2,32], index: 5, kind: output, shape index: {}]
  %s6 = sld [smem:[#allocation0]]
  $region30: #{mbconv_forward.6} parent=0
    _
  %s8 = ssub.s32 1, %s6
  %s9 = scalar_select 0, %s8, %s6
  // Predicated region
  $region2: #{mbconv_forward.6} parent=0 // pred_check
    _
  $region3: #{mbconv_forward.6} parent=0 // pred_check_branch
    %11 = sbr.rel (0) target = $region5
  $region4: #{mbconv_forward.6} parent=0 // pred_region
    _
  $region5: #{mbconv_forward.6} parent=0 // pred_fallthru
    _
  // Predicated region
  $region6: #{mbconv_forward.6} parent=0 // pred_check
    _
  $region7: #{mbconv_forward.6} parent=0 // pred_check_branch
    %13 = sbr.rel (0) target = $region9
  $region8: #{mbconv_forward.6} parent=0 // pred_region
    _
  $region9: #{mbconv_forward.6} parent=0 // pred_fallthru
    _
  // Predicated region
  $region10: #{mbconv_forward.6} parent=0 // pred_check
    _
  $region11: #{mbconv_forward.6} parent=0 // pred_check_branch
    %15 = sbr.rel (0) target = $region13
  $region12: #{mbconv_forward.6} parent=0 // pred_region
    _
  $region13: #{mbconv_forward.6} parent=0 // pred_fallthru
    _
  // Predicated region
  $region14: #{mbconv_forward.6} parent=0 // pred_check
    _
  $region15: #{mbconv_forward.6} parent=0 // pred_check_branch
    %17 = sbr.rel (0) target = $region17
  $region16: #{mbconv_forward.6} parent=0 // pred_region
    _
  $region17: #{mbconv_forward.6} parent=0 // pred_fallthru
    _
  // Predicated region
  $region18: #{mbconv_forward.6} parent=0 // pred_check
    _
  $region19: #{mbconv_forward.6} parent=0 // pred_check_branch
    %19 = sbr.rel (0) target = $region21
  $region20: #{mbconv_forward.6} parent=0 // pred_region
    _
  $region21: #{mbconv_forward.6} parent=0 // pred_fallthru
    _
  %v20 = vld [vmem:[%s0] sm:$0x3]
  %v21 = vld [vmem:[%s1] sm:$0xff]
  %v22 = vld [vmem:[%s1 + $0x8] sm:$0xff]
  %v23 = vld [vmem:[%s1 + $0x10] sm:$0xff]
  %v24 = vld [vmem:[%s1 + $0x18] sm:$0xff]
  %v25 = vld [vmem:[%s2] sm:$0x1]
  %v27 = vlaneseq
  %v28 = vshrl.u32 %v27, 7
  %v29 = vsub.s32 0, %v28
  %v30 = vrot.slane %v25, %v29
  %vm32 = vcmask 261120
  %v34 = vsel %vm32, %v20, 0
  %36 = vmatprep.subr.mxu0 0.0
  %37 = vmatpush1.msra.mxu0 %v21
  %38 = vmatprep.subr.mxu0 0.0
  %39 = vmatpush1.msra.mxu0 %v22
  %40 = vmatprep.subr.mxu0 0.0
  %41 = vmatpush1.msra.mxu0 %v23
  %42 = vmatprep.subr.mxu0 0.0
  %43 = vmatpush1.msra.mxu0 %v24
  %44 = vmatprep.subr.mxu0 0.0
  %45 = vmatpush1.msra.mxu0 0.0
  %46 = vmatprep.subr.mxu0 0.0
  %47 = vmatpush1.msra.mxu0 0.0
  %48 = vmatprep.subr.mxu0 0.0
  %49 = vmatpush1.msra.mxu0 0.0
  %50 = vmatprep.subr.mxu0 0.0
  %51 = vmatpush1.msra.mxu0 0.0
  %52 = vmatprep.subr.mxu0 0.0
  %53 = vmatpush1.msra.mxu0 0.0
  %54 = vmatprep.subr.mxu0 0.0
  %55 = vmatpush1.msra.mxu0 0.0
  %56 = vmatprep.subr.mxu0 0.0
  %57 = vmatpush1.msra.mxu0 0.0
  %58 = vmatprep.subr.mxu0 0.0
  %59 = vmatpush1.msra.mxu0 0.0
  %60 = vmatprep.subr.mxu0 0.0
  %61 = vmatpush1.msra.mxu0 0.0
  %62 = vmatprep.subr.mxu0 0.0
  %63 = vmatpush1.msra.mxu0 0.0
  %64 = vmatprep.subr.mxu0 0.0
  %65 = vmatpush1.msra.mxu0 0.0
  %66 = vmatprep.subr.mxu0 0.0
  %67 = vmatpush1.msra.mxu0 0.0
  %68 = vmatprep.subr.mxu0 0.0
  %69 = vmatpush1.msra.mxu0 0.0
  %70 = vmatprep.subr.mxu0 0.0
  %71 = vmatpush1.msra.mxu0 0.0
  %72 = vmatprep.subr.mxu0 0.0
  %73 = vmatpush1.msra.mxu0 0.0
  %74 = vmatprep.subr.mxu0 0.0
  %75 = vmatpush1.msra.mxu0 0.0
  %76 = vmatprep.subr.mxu0 0.0
  %77 = vmatpush1.msra.mxu0 0.0
  %78 = vmatprep.subr.mxu0 0.0
  %79 = vmatpush1.msra.mxu0 0.0
  %80 = vmatprep.subr.mxu0 0.0
  %81 = vmatpush1.msra.mxu0 0.0
  %82 = vmatprep.subr.mxu0 0.0
  %83 = vmatpush1.msra.mxu0 0.0
  %84 = vmatprep.subr.mxu0 0.0
  %85 = vmatpush1.msra.mxu0 0.0
  %86 = vmatprep.subr.mxu0 0.0
  %87 = vmatpush1.msra.mxu0 0.0
  %88 = vmatprep.subr.mxu0 0.0
  %89 = vmatpush1.msra.mxu0 0.0
  %90 = vmatprep.subr.mxu0 0.0
  %91 = vmatpush1.msra.mxu0 0.0
  %92 = vmatprep.subr.mxu0 0.0
  %93 = vmatpush1.msra.mxu0 0.0
  %94 = vmatprep.subr.mxu0 0.0
  %95 = vmatpush1.msra.mxu0 0.0
  %96 = vmatprep.subr.mxu0 0.0
  %97 = vmatpush1.msra.mxu0 0.0
  %98 = vmatprep.subr.mxu0 0.0
  %99 = vmatpush1.msra.mxu0 0.0
  %100 = vmatprep.mubr.f32.mxu0 0.0
  %101 = vmatmul.mubr.f32.gmra.mrb[0].mxu0 %v34
  %v102 = vpop.f32.mrb[0].mxu0
  %v103 = vadd.f32 %v30, %v102
  %v104 = vpop.f32.mrb[0].mxu0
  %105 = vdwg.mxu0
  %v106 = vxor.u32 %v103, 2147483648
  %v107 = vmul.f32 %v106, 1.442695
  %v108 = vpow.pop %v107
  %v109 = vadd.f32 %v108, 1.0
  %v110 = vrcp.pop %v109
  %v111 = vmul.f32 1.0, %v110
  %v112 = vmul.f32 %v103, %v111
  %v113 = vld [vmem:[%s3] sm:$0xff]
  %v114 = vld [vmem:[%s4] sm:$0x1]
  %v116 = vlaneseq
  %v117 = vshrl.u32 %v116, 7
  %v118 = vsub.s32 0, %v117
  %v119 = vrot.slane %v114, %v118
  %vm121 = vcmask 64512
  %v123 = vsel %vm121, %v112, 0
  %125 = vmatprep.subr.mxu0 0.0
  %126 = vmatpush1.msra.mxu0 %v113
  %127 = vmatprep.subr.mxu0 0.0
  %128 = vmatpush1.msra.mxu0 0.0
  %129 = vmatprep.subr.mxu0 0.0
  %130 = vmatpush1.msra.mxu0 0.0
  %131 = vmatprep.subr.mxu0 0.0
  %132 = vmatpush1.msra.mxu0 0.0
  %133 = vmatprep.subr.mxu0 0.0
  %134 = vmatpush1.msra.mxu0 0.0
  %135 = vmatprep.subr.mxu0 0.0
  %136 = vmatpush1.msra.mxu0 0.0
  %137 = vmatprep.subr.mxu0 0.0
  %138 = vmatpush1.msra.mxu0 0.0
  %139 = vmatprep.subr.mxu0 0.0
  %140 = vmatpush1.msra.mxu0 0.0
  %141 = vmatprep.subr.mxu0 0.0
  %142 = vmatpush1.msra.mxu0 0.0
  %143 = vmatprep.subr.mxu0 0.0
  %144 = vmatpush1.msra.mxu0 0.0
  %145 = vmatprep.subr.mxu0 0.0
  %146 = vmatpush1.msra.mxu0 0.0
  %147 = vmatprep.subr.mxu0 0.0
  %148 = vmatpush1.msra.mxu0 0.0
  %149 = vmatprep.subr.mxu0 0.0
  %150 = vmatpush1.msra.mxu0 0.0
  %151 = vmatprep.subr.mxu0 0.0
  %152 = vmatpush1.msra.mxu0 0.0
  %153 = vmatprep.subr.mxu0 0.0
  %154 = vmatpush1.msra.mxu0 0.0
  %155 = vmatprep.subr.mxu0 0.0
  %156 = vmatpush1.msra.mxu0 0.0
  %157 = vmatprep.subr.mxu0 0.0
  %158 = vmatpush1.msra.mxu0 0.0
  %159 = vmatprep.subr.mxu0 0.0
  %160 = vmatpush1.msra.mxu0 0.0
  %161 = vmatprep.subr.mxu0 0.0
  %162 = vmatpush1.msra.mxu0 0.0
  %163 = vmatprep.subr.mxu0 0.0
  %164 = vmatpush1.msra.mxu0 0.0
  %165 = vmatprep.subr.mxu0 0.0
  %166 = vmatpush1.msra.mxu0 0.0
  %167 = vmatprep.subr.mxu0 0.0
  %168 = vmatpush1.msra.mxu0 0.0
  %169 = vmatprep.subr.mxu0 0.0
  %170 = vmatpush1.msra.mxu0 0.0
  %171 = vmatprep.subr.mxu0 0.0
  %172 = vmatpush1.msra.mxu0 0.0
  %173 = vmatprep.subr.mxu0 0.0
  %174 = vmatpush1.msra.mxu0 0.0
  %175 = vmatprep.subr.mxu0 0.0
  %176 = vmatpush1.msra.mxu0 0.0
  %177 = vmatprep.subr.mxu0 0.0
  %178 = vmatpush1.msra.mxu0 0.0
  %179 = vmatprep.subr.mxu0 0.0
  %180 = vmatpush1.msra.mxu0 0.0
  %181 = vmatprep.subr.mxu0 0.0
  %182 = vmatpush1.msra.mxu0 0.0
  %183 = vmatprep.subr.mxu0 0.0
  %184 = vmatpush1.msra.mxu0 0.0
  %185 = vmatprep.subr.mxu0 0.0
  %186 = vmatpush1.msra.mxu0 0.0
  %187 = vmatprep.subr.mxu0 0.0
  %188 = vmatpush1.msra.mxu0 0.0
  %189 = vmatprep.mubr.f32.mxu0 0.0
  %190 = vmatmul.mubr.f32.gmra.mrb[0].mxu0 %v123
  %v191 = vpop.f32.mrb[0].mxu0
  %v192 = vadd.f32 %v119, %v191
  %v193 = vpop.f32.mrb[0].mxu0
  %194 = vdwg.mxu0
  %v195 = vxor.u32 %v192, 2147483648
  %v196 = vmul.f32 %v195, 1.442695
  %v197 = vpow.pop %v196
  %v198 = vadd.f32 %v197, 1.0
  %v199 = vrcp.pop %v198
  %v200 = vmul.f32 1.0, %v199
  %vm201 = vcmask 254976
  %202 = vst.msk [vmem:[%s5] sm:$0x3] %vm201, %v200
  // Predicated region
  $region22: #{mbconv_forward.6} parent=0 // pred_check
    _
  $region23: #{mbconv_forward.6} parent=0 // pred_check_branch
    %204 = sbr.rel (0) target = $region25
  $region24: #{mbconv_forward.6} parent=0 // pred_region
    _
  $region25: #{mbconv_forward.6} parent=0 // pred_fallthru
    _
  // Predicated region
  $region26: #{mbconv_forward.6} parent=0 // pred_check
    _
  $region27: #{mbconv_forward.6} parent=0 // pred_check_branch
    %206 = sbr.rel (0) target = $region29
  $region28: #{mbconv_forward.6} parent=0 // pred_region
    _
  $region29: #{mbconv_forward.6} parent=0 // pred_fallthru
    _

// kernel: mbconv_forward.7
$region0: #{mbconv_forward.7}
  #allocation0 [shape = 'u32[]', space=smem, size = 0x4, offset = 0x4, fixed_abs, tag = 'smem constant byte address 0x4 - core index']
  #allocation1 [shape = 'u32[144,128]{1,0:T(1,128)}', space=vmem, size = 0x12000, scoped, tag = 'internal scratch']
  %s0 = inlined_call_operand.vmem [shape: f32[2,256,32], index: 0, kind: input, shape index: {}]
  %s1 = inlined_call_operand.vmem [shape: f32[2,1,32], index: 1, kind: input, shape index: {}]
  %s2 = inlined_call_operand.vmem [shape: f32[32,8], index: 2, kind: input, shape index: {}]
  %s3 = inlined_call_operand.vmem [shape: f32[1,8], index: 3, kind: input, shape index: {}]
  %s4 = inlined_call_operand.vmem [shape: f32[1,8], index: 4, kind: input, shape index: {}]
  %s5 = inlined_call_operand.vmem [shape: f32[2,256,8], index: 5, kind: input, shape index: {}]
  %s6 = inlined_call_operand.vmem [shape: f32[2,256,8], index: 6, kind: output, shape index: {}]
  %s7 = sld [smem:[#allocation0]]
  $region57: #{mbconv_forward.7} parent=0
    _
  %s9 = ssub.s32 1, %s7
  %s10 = scalar_select 0, %s9, %s7
  loop: start=0, step=1, limit=4
  $region2: #{mbconv_forward.7} parent=0 // loop_pre_header
    _
  $region3: #{mbconv_forward.7} parent=0 // loop_header
    %s12 = sphi 0, %s16
    %p13 = scmp.ge.s32.totalorder %s12, 4
    %s22 = sphi 0, %s24
    %s25 = sphi 0, %s22
    %s26 = sphi 0, %s25
    %s42 = sphi 0, %s26
    %s48 = sphi 0, %s50
    %s51 = sphi 0, %s48
    %s52 = sphi 0, %s51
    %s68 = sphi 0, %s52
    %s72 = sphi 0, %s72
    %s74 = sphi 0, %s72
    %s75 = sphi 0, %s74
    %s89 = sphi 0, %s75
    %s93 = sphi 0, %s93
    %s95 = sphi 0, %s93
    %s96 = sphi 0, %s95
    %s110 = sphi 0, %s96
    %s114 = sphi 0, %s114
    %s116 = sphi 0, %s114
    %s117 = sphi 0, %s116
    %s131 = sphi 0, %s117
    %s137 = sphi 0, %s139
    %s140 = sphi 0, %s137
    %s141 = sphi 0, %s140
    %s157 = sphi 0, %s141
    %s163 = sphi 0, %s165
    %s166 = sphi 0, %s163
    %s167 = sphi 0, %s166
    %s183 = sphi 0, %s167
  $region4: #{mbconv_forward.7} parent=0 // loop_header_branch
    %15 = sbr.rel (%p13) target = $region8
  $region5: #{mbconv_forward.7} parent=0 // loop_body
    %s17 = ssub.s32 %s12, 1
    %s18 = ssub.s32 %s12, 2
    %s19 = sadd.s32 %s12, 1
    %s20 = ssub.s32 %s12, %s19
    %p21 = scmp.eq.s32.totalorder %s20, 0
    %s23 = sadd.s32 %s22, 1
    %s24 = scalar_select %p21, %s22, %s23
    %p27 = pneg %p21
    %p28 = scmp.eq.s32.totalorder %s12, 1
    %p29 = por %p27, %p28
    %p30 = scmp.ne.s32.totalorder %s22, %s25
    %p31 = scmp.eq.s32.totalorder %s12, 0
    %p32 = por %p30, %p31
    %p33 = scmp.ne.s32.totalorder %s22, %s25
    %p34 = scmp.eq.s32.totalorder %s17, 1
    %p35 = por %p33, %p34
    %p36 = scmp.ne.s32.totalorder %s25, %s26
    %p37 = scmp.eq.s32.totalorder %s17, 0
    %p38 = por %p36, %p37
    %p39 = scmp.ne.s32.totalorder %s25, %s26
    %p40 = scmp.eq.s32.totalorder %s18, 1
    %p41 = por %p39, %p40
    %p43 = scmp.ne.s32.totalorder %s26, %s42
    %p44 = scmp.eq.s32.totalorder %s18, 0
    %p45 = por %p43, %p44
    %s46 = ssub.s32 %s12, %s19
    %p47 = scmp.eq.s32.totalorder %s46, 0
    %s49 = sadd.s32 %s48, 1
    %s50 = scalar_select %p47, %s48, %s49
    %p53 = pneg %p47
    %p54 = scmp.eq.s32.totalorder %s12, 1
    %p55 = por %p53, %p54
    %p56 = scmp.ne.s32.totalorder %s48, %s51
    %p57 = scmp.eq.s32.totalorder %s12, 0
    %p58 = por %p56, %p57
    %p59 = scmp.ne.s32.totalorder %s48, %s51
    %p60 = scmp.eq.s32.totalorder %s17, 1
    %p61 = por %p59, %p60
    %p62 = scmp.ne.s32.totalorder %s51, %s52
    %p63 = scmp.eq.s32.totalorder %s17, 0
    %p64 = por %p62, %p63
    %p65 = scmp.ne.s32.totalorder %s51, %s52
    %p66 = scmp.eq.s32.totalorder %s18, 1
    %p67 = por %p65, %p66
    %p69 = scmp.ne.s32.totalorder %s52, %s68
    %p70 = scmp.eq.s32.totalorder %s18, 0
    %p71 = por %p69, %p70
    %s73 = sadd.s32 %s72, 1
    %p76 = scmp.eq.s32.totalorder %s12, 1
    %p77 = scmp.ne.s32.totalorder %s72, %s74
    %p78 = scmp.eq.s32.totalorder %s12, 0
    %p79 = por %p77, %p78
    %p80 = scmp.ne.s32.totalorder %s72, %s74
    %p81 = scmp.eq.s32.totalorder %s17, 1
    %p82 = por %p80, %p81
    %p83 = scmp.ne.s32.totalorder %s74, %s75
    %p84 = scmp.eq.s32.totalorder %s17, 0
    %p85 = por %p83, %p84
    %p86 = scmp.ne.s32.totalorder %s74, %s75
    %p87 = scmp.eq.s32.totalorder %s18, 1
    %p88 = por %p86, %p87
    %p90 = scmp.ne.s32.totalorder %s75, %s89
    %p91 = scmp.eq.s32.totalorder %s18, 0
    %p92 = por %p90, %p91
    %s94 = sadd.s32 %s93, 1
    %p97 = scmp.eq.s32.totalorder %s12, 1
    %p98 = scmp.ne.s32.totalorder %s93, %s95
    %p99 = scmp.eq.s32.totalorder %s12, 0
    %p100 = por %p98, %p99
    %p101 = scmp.ne.s32.totalorder %s93, %s95
    %p102 = scmp.eq.s32.totalorder %s17, 1
    %p103 = por %p101, %p102
    %p104 = scmp.ne.s32.totalorder %s95, %s96
    %p105 = scmp.eq.s32.totalorder %s17, 0
    %p106 = por %p104, %p105
    %p107 = scmp.ne.s32.totalorder %s95, %s96
    %p108 = scmp.eq.s32.totalorder %s18, 1
    %p109 = por %p107, %p108
    %p111 = scmp.ne.s32.totalorder %s96, %s110
    %p112 = scmp.eq.s32.totalorder %s18, 0
    %p113 = por %p111, %p112
    %s115 = sadd.s32 %s114, 1
    %p118 = scmp.eq.s32.totalorder %s12, 1
    %p119 = scmp.ne.s32.totalorder %s114, %s116
    %p120 = scmp.eq.s32.totalorder %s12, 0
    %p121 = por %p119, %p120
    %p122 = scmp.ne.s32.totalorder %s114, %s116
    %p123 = scmp.eq.s32.totalorder %s17, 1
    %p124 = por %p122, %p123
    %p125 = scmp.ne.s32.totalorder %s116, %s117
    %p126 = scmp.eq.s32.totalorder %s17, 0
    %p127 = por %p125, %p126
    %p128 = scmp.ne.s32.totalorder %s116, %s117
    %p129 = scmp.eq.s32.totalorder %s18, 1
    %p130 = por %p128, %p129
    %p132 = scmp.ne.s32.totalorder %s117, %s131
    %p133 = scmp.eq.s32.totalorder %s18, 0
    %p134 = por %p132, %p133
    %s135 = ssub.s32 %s12, %s19
    %p136 = scmp.eq.s32.totalorder %s135, 0
    %s138 = sadd.s32 %s137, 1
    %s139 = scalar_select %p136, %s137, %s138
    %p142 = pneg %p136
    %p143 = scmp.eq.s32.totalorder %s12, 1
    %p144 = por %p142, %p143
    %p145 = scmp.ne.s32.totalorder %s137, %s140
    %p146 = scmp.eq.s32.totalorder %s12, 0
    %p147 = por %p145, %p146
    %p148 = scmp.ne.s32.totalorder %s137, %s140
    %p149 = scmp.eq.s32.totalorder %s17, 1
    %p150 = por %p148, %p149
    %p151 = scmp.ne.s32.totalorder %s140, %s141
    %p152 = scmp.eq.s32.totalorder %s17, 0
    %p153 = por %p151, %p152
    %p154 = scmp.ne.s32.totalorder %s140, %s141
    %p155 = scmp.eq.s32.totalorder %s18, 1
    %p156 = por %p154, %p155
    %p158 = scmp.ne.s32.totalorder %s141, %s157
    %p159 = scmp.eq.s32.totalorder %s18, 0
    %p160 = por %p158, %p159
    %s161 = ssub.s32 %s12, %s19
    %p162 = scmp.eq.s32.totalorder %s161, 0
    %s164 = sadd.s32 %s163, 1
    %s165 = scalar_select %p162, %s163, %s164
    %p168 = pneg %p162
    %p169 = scmp.eq.s32.totalorder %s12, 1
    %p170 = por %p168, %p169
    %p171 = scmp.ne.s32.totalorder %s163, %s166
    %p172 = scmp.eq.s32.totalorder %s12, 0
    %p173 = por %p171, %p172
    %p174 = scmp.ne.s32.totalorder %s163, %s166
    %p175 = scmp.eq.s32.totalorder %s17, 1
    %p176 = por %p174, %p175
    %p177 = scmp.ne.s32.totalorder %s166, %s167
    %p178 = scmp.eq.s32.totalorder %s17, 0
    %p179 = por %p177, %p178
    %p180 = scmp.ne.s32.totalorder %s166, %s167
    %p181 = scmp.eq.s32.totalorder %s18, 1
    %p182 = por %p180, %p181
    %p184 = scmp.ne.s32.totalorder %s167, %s183
    %p185 = scmp.eq.s32.totalorder %s18, 0
    %p186 = por %p184, %p185
    %p187 = scmp.le.s32.totalorder 1, %s12
    %p188 = scmp.lt.s32.totalorder %s12, 3
    %p189 = pnand %p187, %p188
    %p190 = pneg %p189
    // Predicated region
    $region9: #{mbconv_forward.7} parent=5 // pred_check
      _
    $region10: #{mbconv_forward.7} parent=5 // pred_check_branch
      %192 = sbr.rel (%p189) target = $region12
    $region11: #{mbconv_forward.7} parent=5 // pred_region
      %s193 = ssub.s32 %s12, 1
      // Predicated region
      $region13: #{mbconv_forward.7} parent=11 // pred_check
        %p194 = pneg %p85
      $region14: #{mbconv_forward.7} parent=11 // pred_check_branch
        %196 = sbr.rel (%p194) target = $region16
      $region15: #{mbconv_forward.7} parent=11 // pred_region
        _
      $region16: #{mbconv_forward.7} parent=11 // pred_fallthru
        _
      // Predicated region
      $region17: #{mbconv_forward.7} parent=11 // pred_check
        %p197 = pneg %p106
      $region18: #{mbconv_forward.7} parent=11 // pred_check_branch
        %199 = sbr.rel (%p197) target = $region20
      $region19: #{mbconv_forward.7} parent=11 // pred_region
        _
      $region20: #{mbconv_forward.7} parent=11 // pred_fallthru
        _
      // Predicated region
      $region21: #{mbconv_forward.7} parent=11 // pred_check
        %p200 = pneg %p127
      $region22: #{mbconv_forward.7} parent=11 // pred_check_branch
        %202 = sbr.rel (%p200) target = $region24
      $region23: #{mbconv_forward.7} parent=11 // pred_region
        _
      $region24: #{mbconv_forward.7} parent=11 // pred_fallthru
        _
    $region12: #{mbconv_forward.7} parent=5 // pred_fallthru
      _
    %p203 = scmp.lt.s32.totalorder %s12, 2
    // Predicated region
    $region25: #{mbconv_forward.7} parent=5 // pred_check
      %p204 = pneg %p203
    $region26: #{mbconv_forward.7} parent=5 // pred_check_branch
      %206 = sbr.rel (%p204) target = $region28
    $region27: #{mbconv_forward.7} parent=5 // pred_region
      // Predicated region
      $region29: #{mbconv_forward.7} parent=27 // pred_check
        %p207 = pneg %p32
      $region30: #{mbconv_forward.7} parent=27 // pred_check_branch
        %209 = sbr.rel (%p207) target = $region32
      $region31: #{mbconv_forward.7} parent=27 // pred_region
        %p210 = scmp.lt.s32.totalorder %s12, 1
        %s211 = scalar_select %p210, %s12, 1
        %s212 = smul.addr %s211, 32
        %s213 = smul.addr %s212, 8
        %s214 = scalar_lea.vmem %s0, %s213
      $region32: #{mbconv_forward.7} parent=27 // pred_fallthru
        _
      // Predicated region
      $region33: #{mbconv_forward.7} parent=27 // pred_check
        %p215 = pneg %p58
      $region34: #{mbconv_forward.7} parent=27 // pred_check_branch
        %217 = sbr.rel (%p215) target = $region36
      $region35: #{mbconv_forward.7} parent=27 // pred_region
        %p218 = scmp.lt.s32.totalorder %s12, 1
        %s219 = scalar_select %p218, %s12, 1
        %s220 = scalar_lea.vmem %s1, %s219
      $region36: #{mbconv_forward.7} parent=27 // pred_fallthru
        _
      // Predicated region
      $region37: #{mbconv_forward.7} parent=27 // pred_check
        %p221 = pneg %p147
      $region38: #{mbconv_forward.7} parent=27 // pred_check_branch
        %223 = sbr.rel (%p221) target = $region40
      $region39: #{mbconv_forward.7} parent=27 // pred_region
        %p224 = scmp.lt.s32.totalorder %s12, 1
        %s225 = scalar_select %p224, %s12, 1
        %s226 = smul.addr %s225, 32
        %s227 = smul.addr %s226, 8
        %s228 = scalar_lea.vmem %s5, %s227
      $region40: #{mbconv_forward.7} parent=27 // pred_fallthru
        _
    $region28: #{mbconv_forward.7} parent=5 // pred_fallthru
      _
    %p229 = scmp.le.s32.totalorder 1, %s12
    %p230 = scmp.lt.s32.totalorder %s12, 3
    %p231 = pnand %p229, %p230
    %p232 = pneg %p231
    // Predicated region
    $region41: #{mbconv_forward.7} parent=5 // pred_check
      _
    $region42: #{mbconv_forward.7} parent=5 // pred_check_branch
      %234 = sbr.rel (%p231) target = $region44
    $region43: #{mbconv_forward.7} parent=5 // pred_region
      %s235 = ssub.s32 %s12, 1
      %p236 = scmp.lt.s32.totalorder %s17, 1
      %s237 = scalar_select %p236, %s17, 1
      %s238 = smul.addr %s237, 32
      %s239 = smul.addr %s238, 8
      %s240 = scalar_lea.vmem %s0, %s239
      %p241 = pneg %p38
      %p242 = pneg %p35
      %p243 = scmp.lt.s32.totalorder %s17, 1
      %s244 = scalar_select %p243, %s17, 1
      %s245 = scalar_lea.vmem %s1, %s244
      %p246 = pneg %p64
      %p247 = pneg %p61
      %p248 = pneg %p85
      %p249 = pneg %p82
      %p250 = pneg %p106
      %p251 = pneg %p103
      %p252 = pneg %p127
      %p253 = pneg %p124
      %p254 = scmp.lt.s32.totalorder %s17, 1
      %s255 = scalar_select %p254, %s17, 1
      %s256 = smul.addr %s255, 32
      %s257 = smul.addr %s256, 8
      %s258 = scalar_lea.vmem %s5, %s257
      %p259 = pneg %p153
      %p260 = pneg %p150
      %p261 = pneg %p179
      %p262 = pneg %p176
      %p263 = scmp.lt.s32.totalorder %s17, 1
      %s264 = scalar_select %p263, %s17, 1
      %s265 = smul.addr %s264, 32
      %s266 = smul.addr %s265, 8
      %s267 = scalar_lea.vmem %s6, %s266
      %p268 = scmp.lt.s32.totalorder %s17, 1
      %s269 = scalar_select %p268, %s17, 1
      %s270 = smul.addr %s269, 32
      %s271 = smul.addr %s270, 8
      %s272 = scalar_lea.vmem %s0, %s271
      %p273 = scmp.lt.s32.totalorder %s17, 1
      %s274 = scalar_select %p273, %s17, 1
      %s275 = scalar_lea.vmem %s1, %s274
      %p276 = scmp.lt.s32.totalorder %s17, 1
      %s277 = scalar_select %p276, %s17, 1
      %s278 = smul.addr %s277, 32
      %s279 = smul.addr %s278, 8
      %s280 = scalar_lea.vmem %s5, %s279
      %p281 = scmp.lt.s32.totalorder %s17, 1
      %s282 = scalar_select %p281, %s17, 1
      %s283 = smul.addr %s282, 32
      %s284 = smul.addr %s283, 8
      %s285 = scalar_lea.vmem %s6, %s284
      %v286 = vld [vmem:[%s272] sm:$0xff]
      %v287 = vld [vmem:[%s272 + $0x8] sm:$0xff]
      %v288 = vld [vmem:[%s272 + $0x10] sm:$0xff]
      %v289 = vld [vmem:[%s272 + $0x18] sm:$0xff]
      %v290 = vld [vmem:[%s272 + $0x20] sm:$0xff]
      %v291 = vld [vmem:[%s272 + $0x28] sm:$0xff]
      %v292 = vld [vmem:[%s272 + $0x30] sm:$0xff]
      %v293 = vld [vmem:[%s272 + $0x38] sm:$0xff]
      %v294 = vld [vmem:[%s272 + $0x40] sm:$0xff]
      %v295 = vld [vmem:[%s272 + $0x48] sm:$0xff]
      %v296 = vld [vmem:[%s272 + $0x50] sm:$0xff]
      %v297 = vld [vmem:[%s272 + $0x58] sm:$0xff]
      %v298 = vld [vmem:[%s272 + $0x60] sm:$0xff]
      %v299 = vld [vmem:[%s272 + $0x68] sm:$0xff]
      %v300 = vld [vmem:[%s272 + $0x70] sm:$0xff]
      %v301 = vld [vmem:[%s272 + $0x78] sm:$0xff]
      %v302 = vld [vmem:[%s272 + $0x80] sm:$0xff]
      %v303 = vld [vmem:[%s272 + $0x88] sm:$0xff]
      %v304 = vld [vmem:[%s272 + $0x90] sm:$0xff]
      %v305 = vld [vmem:[%s272 + $0x98] sm:$0xff]
      %v306 = vld [vmem:[%s272 + $0xa0] sm:$0xff]
      %v307 = vld [vmem:[%s272 + $0xa8] sm:$0xff]
      %v308 = vld [vmem:[%s272 + $0xb0] sm:$0xff]
      %v309 = vld [vmem:[%s272 + $0xb8] sm:$0xff]
      %v310 = vld [vmem:[%s272 + $0xc0] sm:$0xff]
      %v311 = vld [vmem:[%s272 + $0xc8] sm:$0xff]
      %v312 = vld [vmem:[%s272 + $0xd0] sm:$0xff]
      %v313 = vld [vmem:[%s272 + $0xd8] sm:$0xff]
      %v314 = vld [vmem:[%s272 + $0xe0] sm:$0xff]
      %v315 = vld [vmem:[%s272 + $0xe8] sm:$0xff]
      %v316 = vld [vmem:[%s272 + $0xf0] sm:$0xff]
      %v317 = vld [vmem:[%s272 + $0xf8] sm:$0xff]
      %v318 = vld [vmem:[%s275] sm:$0x1]
      %v320 = vlaneseq
      %v321 = vshrl.u32 %v320, 7
      %v322 = vsub.s32 0, %v321
      %v323 = vrot.slane %v318, %v322
      %v325 = vmul.f32 %v286, %v323
      %v326 = vmul.f32 %v287, %v323
      %v327 = vmul.f32 %v288, %v323
      %v328 = vmul.f32 %v289, %v323
      %v329 = vmul.f32 %v290, %v323
      %v330 = vmul.f32 %v291, %v323
      %v331 = vmul.f32 %v292, %v323
      %v332 = vmul.f32 %v293, %v323
      %v333 = vmul.f32 %v294, %v323
      %v334 = vmul.f32 %v295, %v323
      %v335 = vmul.f32 %v296, %v323
      %v336 = vmul.f32 %v297, %v323
      %v337 = vmul.f32 %v298, %v323
      %v338 = vmul.f32 %v299, %v323
      %v339 = vmul.f32 %v300, %v323
      %v340 = vmul.f32 %v301, %v323
      %v341 = vmul.f32 %v302, %v323
      %v342 = vmul.f32 %v303, %v323
      %v343 = vmul.f32 %v304, %v323
      %v344 = vmul.f32 %v305, %v323
      %v345 = vmul.f32 %v306, %v323
      %v346 = vmul.f32 %v307, %v323
      %v347 = vmul.f32 %v308, %v323
      %v348 = vmul.f32 %v309, %v323
      %v349 = vmul.f32 %v310, %v323
      %v350 = vmul.f32 %v311, %v323
      %v351 = vmul.f32 %v312, %v323
      %v352 = vmul.f32 %v313, %v323
      %v353 = vmul.f32 %v314, %v323
      %v354 = vmul.f32 %v315, %v323
      %v355 = vmul.f32 %v316, %v323
      %v356 = vmul.f32 %v317, %v323
      %v357 = vld [vmem:[%s2] sm:$0xff]
      %v358 = vld [vmem:[%s2 + $0x8] sm:$0xff]
      %v359 = vld [vmem:[%s2 + $0x10] sm:$0xff]
      %v360 = vld [vmem:[%s2 + $0x18] sm:$0xff]
      %vm361 = vcmask 261120
      %v363 = vsel %vm361, %v325, 0
      %v366 = vsel %vm361, %v326, 0
      %v369 = vsel %vm361, %v327, 0
      %v372 = vsel %vm361, %v328, 0
      %v375 = vsel %vm361, %v329, 0
      %v378 = vsel %vm361, %v330, 0
      %v381 = vsel %vm361, %v331, 0
      %v384 = vsel %vm361, %v332, 0
      %v387 = vsel %vm361, %v333, 0
      %v390 = vsel %vm361, %v334, 0
      %v393 = vsel %vm361, %v335, 0
      %v396 = vsel %vm361, %v336, 0
      %v399 = vsel %vm361, %v337, 0
      %v402 = vsel %vm361, %v338, 0
      %v405 = vsel %vm361, %v339, 0
      %v408 = vsel %vm361, %v340, 0
      %v411 = vsel %vm361, %v341, 0
      %v414 = vsel %vm361, %v342, 0
      %v417 = vsel %vm361, %v343, 0
      %v420 = vsel %vm361, %v344, 0
      %v423 = vsel %vm361, %v345, 0
      %v426 = vsel %vm361, %v346, 0
      %v429 = vsel %vm361, %v347, 0
      %v432 = vsel %vm361, %v348, 0
      %v435 = vsel %vm361, %v349, 0
      %v438 = vsel %vm361, %v350, 0
      %v441 = vsel %vm361, %v351, 0
      %v444 = vsel %vm361, %v352, 0
      %v447 = vsel %vm361, %v353, 0
      %v450 = vsel %vm361, %v354, 0
      %v453 = vsel %vm361, %v355, 0
      %v456 = vsel %vm361, %v356, 0
      %458 = vmatprep.subr.mxu0 0.0
      %459 = vmatpush1.msra.mxu0 %v357
      %460 = vmatprep.subr.mxu0 0.0
      %461 = vmatpush1.msra.mxu0 %v358
      %462 = vmatprep.subr.mxu0 0.0
      %463 = vmatpush1.msra.mxu0 %v359
      %464 = vmatprep.subr.mxu0 0.0
      %465 = vmatpush1.msra.mxu0 %v360
      %466 = vmatprep.subr.mxu0 0.0
      %467 = vmatpush1.msra.mxu0 0.0
      %468 = vmatprep.subr.mxu0 0.0
      %469 = vmatpush1.msra.mxu0 0.0
      %470 = vmatprep.subr.mxu0 0.0
      %471 = vmatpush1.msra.mxu0 0.0
      %472 = vmatprep.subr.mxu0 0.0
      %473 = vmatpush1.msra.mxu0 0.0
      %474 = vmatprep.subr.mxu0 0.0
      %475 = vmatpush1.msra.mxu0 0.0
      %476 = vmatprep.subr.mxu0 0.0
      %477 = vmatpush1.msra.mxu0 0.0
      %478 = vmatprep.subr.mxu0 0.0
      %479 = vmatpush1.msra.mxu0 0.0
      %480 = vmatprep.subr.mxu0 0.0
      %481 = vmatpush1.msra.mxu0 0.0
      %482 = vmatprep.subr.mxu0 0.0
      %483 = vmatpush1.msra.mxu0 0.0
      %484 = vmatprep.subr.mxu0 0.0
      %485 = vmatpush1.msra.mxu0 0.0
      %486 = vmatprep.subr.mxu0 0.0
      %487 = vmatpush1.msra.mxu0 0.0
      %488 = vmatprep.subr.mxu0 0.0
      %489 = vmatpush1.msra.mxu0 0.0
      %490 = vmatprep.subr.mxu0 0.0
      %491 = vmatpush1.msra.mxu0 0.0
      %492 = vmatprep.subr.mxu0 0.0
      %493 = vmatpush1.msra.mxu0 0.0
      %494 = vmatprep.subr.mxu0 0.0
      %495 = vmatpush1.msra.mxu0 0.0
      %496 = vmatprep.subr.mxu0 0.0
      %497 = vmatpush1.msra.mxu0 0.0
      %498 = vmatprep.subr.mxu0 0.0
      %499 = vmatpush1.msra.mxu0 0.0
      %500 = vmatprep.subr.mxu0 0.0
      %501 = vmatpush1.msra.mxu0 0.0
      %502 = vmatprep.subr.mxu0 0.0
      %503 = vmatpush1.msra.mxu0 0.0
      %504 = vmatprep.subr.mxu0 0.0
      %505 = vmatpush1.msra.mxu0 0.0
      %506 = vmatprep.subr.mxu0 0.0
      %507 = vmatpush1.msra.mxu0 0.0
      %508 = vmatprep.subr.mxu0 0.0
      %509 = vmatpush1.msra.mxu0 0.0
      %510 = vmatprep.subr.mxu0 0.0
      %511 = vmatpush1.msra.mxu0 0.0
      %512 = vmatprep.subr.mxu0 0.0
      %513 = vmatpush1.msra.mxu0 0.0
      %514 = vmatprep.subr.mxu0 0.0
      %515 = vmatpush1.msra.mxu0 0.0
      %516 = vmatprep.subr.mxu0 0.0
      %517 = vmatpush1.msra.mxu0 0.0
      %518 = vmatprep.subr.mxu0 0.0
      %519 = vmatpush1.msra.mxu0 0.0
      %520 = vmatprep.subr.mxu0 0.0
      %521 = vmatpush1.msra.mxu0 0.0
      %522 = vmatprep.mubr.f32.mxu0 0.0
      %523 = vmatmul.mubr.f32.gmra.mrb[0].mxu0 %v363
      %v524 = vpop.f32.mrb[0].mxu0
      %v525 = vadd.f32 0.0, %v524
      %v526 = vpop.f32.mrb[0].mxu0
      %527 = vmatprep.mubr.f32.mxu0 0.0
      %528 = vmatmul.mubr.f32.gmra.mrb[0].mxu0 %v366
      %v529 = vpop.f32.mrb[0].mxu0
      %v530 = vadd.f32 0.0, %v529
      %v531 = vpop.f32.mrb[0].mxu0
      %532 = vmatprep.mubr.f32.mxu0 0.0
      %533 = vmatmul.mubr.f32.gmra.mrb[0].mxu0 %v369
      %v534 = vpop.f32.mrb[0].mxu0
      %v535 = vadd.f32 0.0, %v534
      %v536 = vpop.f32.mrb[0].mxu0
      %537 = vmatprep.mubr.f32.mxu0 0.0
      %538 = vmatmul.mubr.f32.gmra.mrb[0].mxu0 %v372
      %v539 = vpop.f32.mrb[0].mxu0
      %v540 = vadd.f32 0.0, %v539
      %v541 = vpop.f32.mrb[0].mxu0
      %542 = vmatprep.mubr.f32.mxu0 0.0
      %543 = vmatmul.mubr.f32.gmra.mrb[0].mxu0 %v375
      %v544 = vpop.f32.mrb[0].mxu0
      %v545 = vadd.f32 0.0, %v544
      %v546 = vpop.f32.mrb[0].mxu0
      %547 = vmatprep.mubr.f32.mxu0 0.0
      %548 = vmatmul.mubr.f32.gmra.mrb[0].mxu0 %v378
      %v549 = vpop.f32.mrb[0].mxu0
      %v550 = vadd.f32 0.0, %v549
      %v551 = vpop.f32.mrb[0].mxu0
      %552 = vmatprep.mubr.f32.mxu0 0.0
      %553 = vmatmul.mubr.f32.gmra.mrb[0].mxu0 %v381
      %v554 = vpop.f32.mrb[0].mxu0
      %v555 = vadd.f32 0.0, %v554
      %v556 = vpop.f32.mrb[0].mxu0
      %557 = vmatprep.mubr.f32.mxu0 0.0
      %558 = vmatmul.mubr.f32.gmra.mrb[0].mxu0 %v384
      %v559 = vpop.f32.mrb[0].mxu0
      %v560 = vadd.f32 0.0, %v559
      %v561 = vpop.f32.mrb[0].mxu0
      %562 = vmatprep.mubr.f32.mxu0 0.0
      %563 = vmatmul.mubr.f32.gmra.mrb[0].mxu0 %v387
      %v564 = vpop.f32.mrb[0].mxu0
      %v565 = vadd.f32 0.0, %v564
      %v566 = vpop.f32.mrb[0].mxu0
      %567 = vmatprep.mubr.f32.mxu0 0.0
      %568 = vmatmul.mubr.f32.gmra.mrb[0].mxu0 %v390
      %v569 = vpop.f32.mrb[0].mxu0
      %v570 = vadd.f32 0.0, %v569
      %v571 = vpop.f32.mrb[0].mxu0
      %572 = vmatprep.mubr.f32.mxu0 0.0
      %573 = vmatmul.mubr.f32.gmra.mrb[0].mxu0 %v393
      %v574 = vpop.f32.mrb[0].mxu0
      %v575 = vadd.f32 0.0, %v574
      %v576 = vpop.f32.mrb[0].mxu0
      %577 = vmatprep.mubr.f32.mxu0 0.0
      %578 = vmatmul.mubr.f32.gmra.mrb[0].mxu0 %v396
      %v579 = vpop.f32.mrb[0].mxu0
      %v580 = vadd.f32 0.0, %v579
      %v581 = vpop.f32.mrb[0].mxu0
      %582 = vmatprep.mubr.f32.mxu0 0.0
      %583 = vmatmul.mubr.f32.gmra.mrb[0].mxu0 %v399
      %v584 = vpop.f32.mrb[0].mxu0
      %v585 = vadd.f32 0.0, %v584
      %v586 = vpop.f32.mrb[0].mxu0
      %587 = vmatprep.mubr.f32.mxu0 0.0
      %588 = vmatmul.mubr.f32.gmra.mrb[0].mxu0 %v402
      %v589 = vpop.f32.mrb[0].mxu0
      %v590 = vadd.f32 0.0, %v589
      %v591 = vpop.f32.mrb[0].mxu0
      %592 = vmatprep.mubr.f32.mxu0 0.0
      %593 = vmatmul.mubr.f32.gmra.mrb[0].mxu0 %v405
      %v594 = vpop.f32.mrb[0].mxu0
      %v595 = vadd.f32 0.0, %v594
      %v596 = vpop.f32.mrb[0].mxu0
      %597 = vmatprep.mubr.f32.mxu0 0.0
      %598 = vmatmul.mubr.f32.gmra.mrb[0].mxu0 %v408
      %v599 = vpop.f32.mrb[0].mxu0
      %v600 = vadd.f32 0.0, %v599
      %v601 = vpop.f32.mrb[0].mxu0
      %602 = vmatprep.mubr.f32.mxu0 0.0
      %603 = vmatmul.mubr.f32.gmra.mrb[0].mxu0 %v411
      %v604 = vpop.f32.mrb[0].mxu0
      %v605 = vadd.f32 0.0, %v604
      %v606 = vpop.f32.mrb[0].mxu0
      %607 = vmatprep.mubr.f32.mxu0 0.0
      %608 = vmatmul.mubr.f32.gmra.mrb[0].mxu0 %v414
      %v609 = vpop.f32.mrb[0].mxu0
      %v610 = vadd.f32 0.0, %v609
      %v611 = vpop.f32.mrb[0].mxu0
      %612 = vmatprep.mubr.f32.mxu0 0.0
      %613 = vmatmul.mubr.f32.gmra.mrb[0].mxu0 %v417
      %v614 = vpop.f32.mrb[0].mxu0
      %v615 = vadd.f32 0.0, %v614
      %v616 = vpop.f32.mrb[0].mxu0
      %617 = vmatprep.mubr.f32.mxu0 0.0
      %618 = vmatmul.mubr.f32.gmra.mrb[0].mxu0 %v420
      %v619 = vpop.f32.mrb[0].mxu0
      %v620 = vadd.f32 0.0, %v619
      %v621 = vpop.f32.mrb[0].mxu0
      %622 = vmatprep.mubr.f32.mxu0 0.0
      %623 = vmatmul.mubr.f32.gmra.mrb[0].mxu0 %v423
      %v624 = vpop.f32.mrb[0].mxu0
      %v625 = vadd.f32 0.0, %v624
      %v626 = vpop.f32.mrb[0].mxu0
      %627 = vmatprep.mubr.f32.mxu0 0.0
      %628 = vmatmul.mubr.f32.gmra.mrb[0].mxu0 %v426
      %v629 = vpop.f32.mrb[0].mxu0
      %v630 = vadd.f32 0.0, %v629
      %v631 = vpop.f32.mrb[0].mxu0
      %632 = vmatprep.mubr.f32.mxu0 0.0
      %633 = vmatmul.mubr.f32.gmra.mrb[0].mxu0 %v429
      %v634 = vpop.f32.mrb[0].mxu0
      %v635 = vadd.f32 0.0, %v634
      %v636 = vpop.f32.mrb[0].mxu0
      %637 = vmatprep.mubr.f32.mxu0 0.0
      %638 = vmatmul.mubr.f32.gmra.mrb[0].mxu0 %v432
      %v639 = vpop.f32.mrb[0].mxu0
      %v640 = vadd.f32 0.0, %v639
      %v641 = vpop.f32.mrb[0].mxu0
      %642 = vmatprep.mubr.f32.mxu0 0.0
      %643 = vmatmul.mubr.f32.gmra.mrb[0].mxu0 %v435
      %v644 = vpop.f32.mrb[0].mxu0
      %v645 = vadd.f32 0.0, %v644
      %v646 = vpop.f32.mrb[0].mxu0
      %647 = vmatprep.mubr.f32.mxu0 0.0
      %648 = vmatmul.mubr.f32.gmra.mrb[0].mxu0 %v438
      %v649 = vpop.f32.mrb[0].mxu0
      %v650 = vadd.f32 0.0, %v649
      %v651 = vpop.f32.mrb[0].mxu0
      %652 = vmatprep.mubr.f32.mxu0 0.0
      %653 = vmatmul.mubr.f32.gmra.mrb[0].mxu0 %v441
      %v654 = vpop.f32.mrb[0].mxu0
      %v655 = vadd.f32 0.0, %v654
      %v656 = vpop.f32.mrb[0].mxu0
      %657 = vmatprep.mubr.f32.mxu0 0.0
      %658 = vmatmul.mubr.f32.gmra.mrb[0].mxu0 %v444
      %v659 = vpop.f32.mrb[0].mxu0
      %v660 = vadd.f32 0.0, %v659
      %v661 = vpop.f32.mrb[0].mxu0
      %662 = vmatprep.mubr.f32.mxu0 0.0
      %663 = vmatmul.mubr.f32.gmra.mrb[0].mxu0 %v447
      %v664 = vpop.f32.mrb[0].mxu0
      %v665 = vadd.f32 0.0, %v664
      %v666 = vpop.f32.mrb[0].mxu0
      %667 = vmatprep.mubr.f32.mxu0 0.0
      %668 = vmatmul.mubr.f32.gmra.mrb[0].mxu0 %v450
      %v669 = vpop.f32.mrb[0].mxu0
      %v670 = vadd.f32 0.0, %v669
      %v671 = vpop.f32.mrb[0].mxu0
      %672 = vmatprep.mubr.f32.mxu0 0.0
      %673 = vmatmul.mubr.f32.gmra.mrb[0].mxu0 %v453
      %v674 = vpop.f32.mrb[0].mxu0
      %v675 = vadd.f32 0.0, %v674
      %v676 = vpop.f32.mrb[0].mxu0
      %677 = vmatprep.mubr.f32.mxu0 0.0
      %678 = vmatmul.mubr.f32.gmra.mrb[0].mxu0 %v456
      %v679 = vpop.f32.mrb[0].mxu0
      %v680 = vadd.f32 0.0, %v679
      %v681 = vpop.f32.mrb[0].mxu0
      %682 = vdwg.mxu0
      %v683 = vld [vmem:[%s3] sm:$0x1]
      %v685 = vlaneseq
      %v686 = vshrl.u32 %v685, 7
      %v687 = vsub.s32 0, %v686
      %v688 = vrot.slane %v683, %v687
      %v690 = vmul.f32 %v525, %v688
      %v691 = vmul.f32 %v530, %v688
      %v692 = vmul.f32 %v535, %v688
      %v693 = vmul.f32 %v540, %v688
      %v694 = vmul.f32 %v545, %v688
      %v695 = vmul.f32 %v550, %v688
      %v696 = vmul.f32 %v555, %v688
      %v697 = vmul.f32 %v560, %v688
      %v698 = vmul.f32 %v565, %v688
      %v699 = vmul.f32 %v570, %v688
      %v700 = vmul.f32 %v575, %v688
      %v701 = vmul.f32 %v580, %v688
      %v702 = vmul.f32 %v585, %v688
      %v703 = vmul.f32 %v590, %v688
      %v704 = vmul.f32 %v595, %v688
      %v705 = vmul.f32 %v600, %v688
      %v706 = vmul.f32 %v605, %v688
      %v707 = vmul.f32 %v610, %v688
      %v708 = vmul.f32 %v615, %v688
      %v709 = vmul.f32 %v620, %v688
      %v710 = vmul.f32 %v625, %v688
      %v711 = vmul.f32 %v630, %v688
      %v712 = vmul.f32 %v635, %v688
      %v713 = vmul.f32 %v640, %v688
      %v714 = vmul.f32 %v645, %v688
      %v715 = vmul.f32 %v650, %v688
      %v716 = vmul.f32 %v655, %v688
      %v717 = vmul.f32 %v660, %v688
      %v718 = vmul.f32 %v665, %v688
      %v719 = vmul.f32 %v670, %v688
      %v720 = vmul.f32 %v675, %v688
      %v721 = vmul.f32 %v680, %v688
      %v722 = vld [vmem:[%s4] sm:$0x1]
      %v724 = vlaneseq
      %v725 = vshrl.u32 %v724, 7
      %v726 = vsub.s32 0, %v725
      %v727 = vrot.slane %v722, %v726
      %v729 = vadd.f32 %v690, %v727
      %v730 = vadd.f32 %v691, %v727
      %v731 = vadd.f32 %v692, %v727
      %v732 = vadd.f32 %v693, %v727
      %v733 = vadd.f32 %v694, %v727
      %v734 = vadd.f32 %v695, %v727
      %v735 = vadd.f32 %v696, %v727
      %v736 = vadd.f32 %v697, %v727
      %v737 = vadd.f32 %v698, %v727
      %v738 = vadd.f32 %v699, %v727
      %v739 = vadd.f32 %v700, %v727
      %v740 = vadd.f32 %v701, %v727
      %v741 = vadd.f32 %v702, %v727
      %v742 = vadd.f32 %v703, %v727
      %v743 = vadd.f32 %v704, %v727
      %v744 = vadd.f32 %v705, %v727
      %v745 = vadd.f32 %v706, %v727
      %v746 = vadd.f32 %v707, %v727
      %v747 = vadd.f32 %v708, %v727
      %v748 = vadd.f32 %v709, %v727
      %v749 = vadd.f32 %v710, %v727
      %v750 = vadd.f32 %v711, %v727
      %v751 = vadd.f32 %v712, %v727
      %v752 = vadd.f32 %v713, %v727
      %v753 = vadd.f32 %v714, %v727
      %v754 = vadd.f32 %v715, %v727
      %v755 = vadd.f32 %v716, %v727
      %v756 = vadd.f32 %v717, %v727
      %v757 = vadd.f32 %v718, %v727
      %v758 = vadd.f32 %v719, %v727
      %v759 = vadd.f32 %v720, %v727
      %v760 = vadd.f32 %v721, %v727
      %v761 = vmax.f32 %v729, 0.0
      %v762 = vmax.f32 %v730, 0.0
      %v763 = vmax.f32 %v731, 0.0
      %v764 = vmax.f32 %v732, 0.0
      %v765 = vmax.f32 %v733, 0.0
      %v766 = vmax.f32 %v734, 0.0
      %v767 = vmax.f32 %v735, 0.0
      %v768 = vmax.f32 %v736, 0.0
      %v769 = vmax.f32 %v737, 0.0
      %v770 = vmax.f32 %v738, 0.0
      %v771 = vmax.f32 %v739, 0.0
      %v772 = vmax.f32 %v740, 0.0
      %v773 = vmax.f32 %v741, 0.0
      %v774 = vmax.f32 %v742, 0.0
      %v775 = vmax.f32 %v743, 0.0
      %v776 = vmax.f32 %v744, 0.0
      %v777 = vmax.f32 %v745, 0.0
      %v778 = vmax.f32 %v746, 0.0
      %v779 = vmax.f32 %v747, 0.0
      %v780 = vmax.f32 %v748, 0.0
      %v781 = vmax.f32 %v749, 0.0
      %v782 = vmax.f32 %v750, 0.0
      %v783 = vmax.f32 %v751, 0.0
      %v784 = vmax.f32 %v752, 0.0
      %v785 = vmax.f32 %v753, 0.0
      %v786 = vmax.f32 %v754, 0.0
      %v787 = vmax.f32 %v755, 0.0
      %v788 = vmax.f32 %v756, 0.0
      %v789 = vmax.f32 %v757, 0.0
      %v790 = vmax.f32 %v758, 0.0
      %v791 = vmax.f32 %v759, 0.0
      %v792 = vmax.f32 %v760, 0.0
      %v793 = vld [vmem:[%s280] sm:$0xff]
      %v794 = vld [vmem:[%s280 + $0x8] sm:$0xff]
      %v795 = vld [vmem:[%s280 + $0x10] sm:$0xff]
      %v796 = vld [vmem:[%s280 + $0x18] sm:$0xff]
      %v797 = vld [vmem:[%s280 + $0x20] sm:$0xff]
      %v798 = vld [vmem:[%s280 + $0x28] sm:$0xff]
      %v799 = vld [vmem:[%s280 + $0x30] sm:$0xff]
      %v800 = vld [vmem:[%s280 + $0x38] sm:$0xff]
      %v801 = vld [vmem:[%s280 + $0x40] sm:$0xff]
      %v802 = vld [vmem:[%s280 + $0x48] sm:$0xff]
      %v803 = vld [vmem:[%s280 + $0x50] sm:$0xff]
      %v804 = vld [vmem:[%s280 + $0x58] sm:$0xff]
      %v805 = vld [vmem:[%s280 + $0x60] sm:$0xff]
      %v806 = vld [vmem:[%s280 + $0x68] sm:$0xff]
      %v807 = vld [vmem:[%s280 + $0x70] sm:$0xff]
      %v808 = vld [vmem:[%s280 + $0x78] sm:$0xff]
      %v809 = vld [vmem:[%s280 + $0x80] sm:$0xff]
      %v810 = vld [vmem:[%s280 + $0x88] sm:$0xff]
      %v811 = vld [vmem:[%s280 + $0x90] sm:$0xff]
      %v812 = vld [vmem:[%s280 + $0x98] sm:$0xff]
      %v813 = vld [vmem:[%s280 + $0xa0] sm:$0xff]
      %v814 = vld [vmem:[%s280 + $0xa8] sm:$0xff]
      %v815 = vld [vmem:[%s280 + $0xb0] sm:$0xff]
      %v816 = vld [vmem:[%s280 + $0xb8] sm:$0xff]
      %v817 = vld [vmem:[%s280 + $0xc0] sm:$0xff]
      %v818 = vld [vmem:[%s280 + $0xc8] sm:$0xff]
      %v819 = vld [vmem:[%s280 + $0xd0] sm:$0xff]
      %v820 = vld [vmem:[%s280 + $0xd8] sm:$0xff]
      %v821 = vld [vmem:[%s280 + $0xe0] sm:$0xff]
      %v822 = vld [vmem:[%s280 + $0xe8] sm:$0xff]
      %v823 = vld [vmem:[%s280 + $0xf0] sm:$0xff]
      %v824 = vld [vmem:[%s280 + $0xf8] sm:$0xff]
      %v825 = vadd.f32 %v761, %v793
      %v826 = vadd.f32 %v762, %v794
      %v827 = vadd.f32 %v763, %v795
      %v828 = vadd.f32 %v764, %v796
      %v829 = vadd.f32 %v765, %v797
      %v830 = vadd.f32 %v766, %v798
      %v831 = vadd.f32 %v767, %v799
      %v832 = vadd.f32 %v768, %v800
      %v833 = vadd.f32 %v769, %v801
      %v834 = vadd.f32 %v770, %v802
      %v835 = vadd.f32 %v771, %v803
      %v836 = vadd.f32 %v772, %v804
      %v837 = vadd.f32 %v773, %v805
      %v838 = vadd.f32 %v774, %v806
      %v839 = vadd.f32 %v775, %v807
      %v840 = vadd.f32 %v776, %v808
      %v841 = vadd.f32 %v777, %v809
      %v842 = vadd.f32 %v778, %v810
      %v843 = vadd.f32 %v779, %v811
      %v844 = vadd.f32 %v780, %v812
      %v845 = vadd.f32 %v781, %v813
      %v846 = vadd.f32 %v782, %v814
      %v847 = vadd.f32 %v783, %v815
      %v848 = vadd.f32 %v784, %v816
      %v849 = vadd.f32 %v785, %v817
      %v850 = vadd.f32 %v786, %v818
      %v851 = vadd.f32 %v787, %v819
      %v852 = vadd.f32 %v788, %v820
      %v853 = vadd.f32 %v789, %v821
      %v854 = vadd.f32 %v790, %v822
      %v855 = vadd.f32 %v791, %v823
      %v856 = vadd.f32 %v792, %v824
      %vm857 = vcmask 64512
      %858 = vst.msk [vmem:[%s285] sm:$0xff] %vm857, %v825
      %859 = vst.msk [vmem:[%s285 + $0x8] sm:$0xff] %vm857, %v826
      %860 = vst.msk [vmem:[%s285 + $0x10] sm:$0xff] %vm857, %v827
      %861 = vst.msk [vmem:[%s285 + $0x18] sm:$0xff] %vm857, %v828
      %862 = vst.msk [vmem:[%s285 + $0x20] sm:$0xff] %vm857, %v829
      %863 = vst.msk [vmem:[%s285 + $0x28] sm:$0xff] %vm857, %v830
      %864 = vst.msk [vmem:[%s285 + $0x30] sm:$0xff] %vm857, %v831
      %865 = vst.msk [vmem:[%s285 + $0x38] sm:$0xff] %vm857, %v832
      %866 = vst.msk [vmem:[%s285 + $0x40] sm:$0xff] %vm857, %v833
      %867 = vst.msk [vmem:[%s285 + $0x48] sm:$0xff] %vm857, %v834
      %868 = vst.msk [vmem:[%s285 + $0x50] sm:$0xff] %vm857, %v835
      %869 = vst.msk [vmem:[%s285 + $0x58] sm:$0xff] %vm857, %v836
      %870 = vst.msk [vmem:[%s285 + $0x60] sm:$0xff] %vm857, %v837
      %871 = vst.msk [vmem:[%s285 + $0x68] sm:$0xff] %vm857, %v838
      %872 = vst.msk [vmem:[%s285 + $0x70] sm:$0xff] %vm857, %v839
      %873 = vst.msk [vmem:[%s285 + $0x78] sm:$0xff] %vm857, %v840
      %874 = vst.msk [vmem:[%s285 + $0x80] sm:$0xff] %vm857, %v841
      %875 = vst.msk [vmem:[%s285 + $0x88] sm:$0xff] %vm857, %v842
      %876 = vst.msk [vmem:[%s285 + $0x90] sm:$0xff] %vm857, %v843
      %877 = vst.msk [vmem:[%s285 + $0x98] sm:$0xff] %vm857, %v844
      %878 = vst.msk [vmem:[%s285 + $0xa0] sm:$0xff] %vm857, %v845
      %879 = vst.msk [vmem:[%s285 + $0xa8] sm:$0xff] %vm857, %v846
      %880 = vst.msk [vmem:[%s285 + $0xb0] sm:$0xff] %vm857, %v847
      %881 = vst.msk [vmem:[%s285 + $0xb8] sm:$0xff] %vm857, %v848
      %882 = vst.msk [vmem:[%s285 + $0xc0] sm:$0xff] %vm857, %v849
      %883 = vst.msk [vmem:[%s285 + $0xc8] sm:$0xff] %vm857, %v850
      %884 = vst.msk [vmem:[%s285 + $0xd0] sm:$0xff] %vm857, %v851
      %885 = vst.msk [vmem:[%s285 + $0xd8] sm:$0xff] %vm857, %v852
      %886 = vst.msk [vmem:[%s285 + $0xe0] sm:$0xff] %vm857, %v853
      %887 = vst.msk [vmem:[%s285 + $0xe8] sm:$0xff] %vm857, %v854
      %888 = vst.msk [vmem:[%s285 + $0xf0] sm:$0xff] %vm857, %v855
      %889 = vst.msk [vmem:[%s285 + $0xf8] sm:$0xff] %vm857, %v856
      %p890 = scmp.lt.s32.totalorder %s17, 1
      %s891 = scalar_select %p890, %s17, 1
      %s892 = smul.addr %s891, 32
      %s893 = smul.addr %s892, 8
      %s894 = scalar_lea.vmem %s6, %s893
      // Predicated region
      $region45: #{mbconv_forward.7} parent=43 // pred_check
        %p895 = pneg %p176
      $region46: #{mbconv_forward.7} parent=43 // pred_check_branch
        %897 = sbr.rel (%p895) target = $region48
      $region47: #{mbconv_forward.7} parent=43 // pred_region
        _
      $region48: #{mbconv_forward.7} parent=43 // pred_fallthru
        _
    $region44: #{mbconv_forward.7} parent=5 // pred_fallthru
      _
    %p898 = scmp.le.s32.totalorder 2, %s12
    // Predicated region
    $region49: #{mbconv_forward.7} parent=5 // pred_check
      %p899 = pneg %p898
    $region50: #{mbconv_forward.7} parent=5 // pred_check_branch
      %901 = sbr.rel (%p899) target = $region52
    $region51: #{mbconv_forward.7} parent=5 // pred_region
      %s902 = ssub.s32 %s12, 2
      // Predicated region
      $region53: #{mbconv_forward.7} parent=51 // pred_check
        %p903 = pneg %p182
      $region54: #{mbconv_forward.7} parent=51 // pred_check_branch
        %905 = sbr.rel (%p903) target = $region56
      $region55: #{mbconv_forward.7} parent=51 // pred_region
        %p906 = scmp.lt.s32.totalorder %s18, 1
        %s907 = scalar_select %p906, %s18, 1
        %s908 = smul.addr %s907, 32
        %s909 = smul.addr %s908, 8
        %s910 = scalar_lea.vmem %s6, %s909
      $region56: #{mbconv_forward.7} parent=51 // pred_fallthru
        _
    $region52: #{mbconv_forward.7} parent=5 // pred_fallthru
      _
  $region6: #{mbconv_forward.7} parent=0 // loop_footer
    %s16 = sadd.s32 1, %s12
  $region7: #{mbconv_forward.7} parent=0 // loop_footer_branch
    %11 = sbr.rel target = $region3
  $region8: #{mbconv_forward.7} parent=0 // loop_exit
    _

// kernel: mbconv_forward.5
$region0: #{mbconv_forward.5}
  #allocation0 [shape = 'u32[]', space=smem, size = 0x4, offset = 0x4, fixed_abs, tag = 'smem constant byte address 0x4 - core index']
  #allocation1 [shape = 'u32[144,128]{1,0:T(1,128)}', space=vmem, size = 0x12000, scoped, tag = 'internal scratch']
  %s0 = inlined_call_operand.vmem [shape: f32[2,18,18,32], index: 0, kind: input, shape index: {}]
  %s1 = inlined_call_operand.vmem [shape: f32[9,32], index: 1, kind: input, shape index: {}]
  %s2 = inlined_call_operand.vmem [shape: f32[1,1,32], index: 2, kind: input, shape index: {}]
  %s3 = inlined_call_operand.vmem [shape: f32[1,1,32], index: 3, kind: input, shape index: {}]
  %s4 = inlined_call_operand.vmem [shape: f32[2,16,16,32], index: 4, kind: output, shape index: {0}]
  %s5 = inlined_call_operand.vmem [shape: f32[2,1,32], index: 5, kind: output, shape index: {1}]
  %6 = xla_tuple %s4, %s5
  %s7 = sld [smem:[#allocation0]]
  $region57: #{mbconv_forward.5} parent=0
    _
  %s9 = ssub.s32 1, %s7
  %s10 = scalar_select 0, %s9, %s7
  loop: start=0, step=1, limit=4
  $region2: #{mbconv_forward.5} parent=0 // loop_pre_header
    _
  $region3: #{mbconv_forward.5} parent=0 // loop_header
    %s12 = sphi 0, %s16
    %p13 = scmp.ge.s32.totalorder %s12, 4
    %s22 = sphi 0, %s24
    %s25 = sphi 0, %s22
    %s26 = sphi 0, %s25
    %s42 = sphi 0, %s26
    %s46 = sphi 0, %s46
    %s48 = sphi 0, %s46
    %s49 = sphi 0, %s48
    %s63 = sphi 0, %s49
    %s67 = sphi 0, %s67
    %s69 = sphi 0, %s67
    %s70 = sphi 0, %s69
    %s84 = sphi 0, %s70
    %s88 = sphi 0, %s88
    %s90 = sphi 0, %s88
    %s91 = sphi 0, %s90
    %s105 = sphi 0, %s91
    %s111 = sphi 0, %s113
    %s114 = sphi 0, %s111
    %s115 = sphi 0, %s114
    %s131 = sphi 0, %s115
    %s137 = sphi 0, %s139
    %s140 = sphi 0, %s137
    %s141 = sphi 0, %s140
    %s157 = sphi 0, %s141
  $region4: #{mbconv_forward.5} parent=0 // loop_header_branch
    %15 = sbr.rel (%p13) target = $region8
  $region5: #{mbconv_forward.5} parent=0 // loop_body
    %s17 = ssub.s32 %s12, 1
    %s18 = ssub.s32 %s12, 2
    %s19 = sadd.s32 %s12, 1
    %s20 = ssub.s32 %s12, %s19
    %p21 = scmp.eq.s32.totalorder %s20, 0
    %s23 = sadd.s32 %s22, 1
    %s24 = scalar_select %p21, %s22, %s23
    %p27 = pneg %p21
    %p28 = scmp.eq.s32.totalorder %s12, 1
    %p29 = por %p27, %p28
    %p30 = scmp.ne.s32.totalorder %s22, %s25
    %p31 = scmp.eq.s32.totalorder %s12, 0
    %p32 = por %p30, %p31
    %p33 = scmp.ne.s32.totalorder %s22, %s25
    %p34 = scmp.eq.s32.totalorder %s17, 1
    %p35 = por %p33, %p34
    %p36 = scmp.ne.s32.totalorder %s25, %s26
    %p37 = scmp.eq.s32.totalorder %s17, 0
    %p38 = por %p36, %p37
    %p39 = scmp.ne.s32.totalorder %s25, %s26
    %p40 = scmp.eq.s32.totalorder %s18, 1
    %p41 = por %p39, %p40
    %p43 = scmp.ne.s32.totalorder %s26, %s42
    %p44 = scmp.eq.s32.totalorder %s18, 0
    %p45 = por %p43, %p44
    %s47 = sadd.s32 %s46, 1
    %p50 = scmp.eq.s32.totalorder %s12, 1
    %p51 = scmp.ne.s32.totalorder %s46, %s48
    %p52 = scmp.eq.s32.totalorder %s12, 0
    %p53 = por %p51, %p52
    %p54 = scmp.ne.s32.totalorder %s46, %s48
    %p55 = scmp.eq.s32.totalorder %s17, 1
    %p56 = por %p54, %p55
    %p57 = scmp.ne.s32.totalorder %s48, %s49
    %p58 = scmp.eq.s32.totalorder %s17, 0
    %p59 = por %p57, %p58
    %p60 = scmp.ne.s32.totalorder %s48, %s49
    %p61 = scmp.eq.s32.totalorder %s18, 1
    %p62 = por %p60, %p61
    %p64 = scmp.ne.s32.totalorder %s49, %s63
    %p65 = scmp.eq.s32.totalorder %s18, 0
    %p66 = por %p64, %p65
    %s68 = sadd.s32 %s67, 1
    %p71 = scmp.eq.s32.totalorder %s12, 1
    %p72 = scmp.ne.s32.totalorder %s67, %s69
    %p73 = scmp.eq.s32.totalorder %s12, 0
    %p74 = por %p72, %p73
    %p75 = scmp.ne.s32.totalorder %s67, %s69
    %p76 = scmp.eq.s32.totalorder %s17, 1
    %p77 = por %p75, %p76
    %p78 = scmp.ne.s32.totalorder %s69, %s70
    %p79 = scmp.eq.s32.totalorder %s17, 0
    %p80 = por %p78, %p79
    %p81 = scmp.ne.s32.totalorder %s69, %s70
    %p82 = scmp.eq.s32.totalorder %s18, 1
    %p83 = por %p81, %p82
    %p85 = scmp.ne.s32.totalorder %s70, %s84
    %p86 = scmp.eq.s32.totalorder %s18, 0
    %p87 = por %p85, %p86
    %s89 = sadd.s32 %s88, 1
    %p92 = scmp.eq.s32.totalorder %s12, 1
    %p93 = scmp.ne.s32.totalorder %s88, %s90
    %p94 = scmp.eq.s32.totalorder %s12, 0
    %p95 = por %p93, %p94
    %p96 = scmp.ne.s32.totalorder %s88, %s90
    %p97 = scmp.eq.s32.totalorder %s17, 1
    %p98 = por %p96, %p97
    %p99 = scmp.ne.s32.totalorder %s90, %s91
    %p100 = scmp.eq.s32.totalorder %s17, 0
    %p101 = por %p99, %p100
    %p102 = scmp.ne.s32.totalorder %s90, %s91
    %p103 = scmp.eq.s32.totalorder %s18, 1
    %p104 = por %p102, %p103
    %p106 = scmp.ne.s32.totalorder %s91, %s105
    %p107 = scmp.eq.s32.totalorder %s18, 0
    %p108 = por %p106, %p107
    %s109 = ssub.s32 %s12, %s19
    %p110 = scmp.eq.s32.totalorder %s109, 0
    %s112 = sadd.s32 %s111, 1
    %s113 = scalar_select %p110, %s111, %s112
    %p116 = pneg %p110
    %p117 = scmp.eq.s32.totalorder %s12, 1
    %p118 = por %p116, %p117
    %p119 = scmp.ne.s32.totalorder %s111, %s114
    %p120 = scmp.eq.s32.totalorder %s12, 0
    %p121 = por %p119, %p120
    %p122 = scmp.ne.s32.totalorder %s111, %s114
    %p123 = scmp.eq.s32.totalorder %s17, 1
    %p124 = por %p122, %p123
    %p125 = scmp.ne.s32.totalorder %s114, %s115
    %p126 = scmp.eq.s32.totalorder %s17, 0
    %p127 = por %p125, %p126
    %p128 = scmp.ne.s32.totalorder %s114, %s115
    %p129 = scmp.eq.s32.totalorder %s18, 1
    %p130 = por %p128, %p129
    %p132 = scmp.ne.s32.totalorder %s115, %s131
    %p133 = scmp.eq.s32.totalorder %s18, 0
    %p134 = por %p132, %p133
    %s135 = ssub.s32 %s12, %s19
    %p136 = scmp.eq.s32.totalorder %s135, 0
    %s138 = sadd.s32 %s137, 1
    %s139 = scalar_select %p136, %s137, %s138
    %p142 = pneg %p136
    %p143 = scmp.eq.s32.totalorder %s12, 1
    %p144 = por %p142, %p143
    %p145 = scmp.ne.s32.totalorder %s137, %s140
    %p146 = scmp.eq.s32.totalorder %s12, 0
    %p147 = por %p145, %p146
    %p148 = scmp.ne.s32.totalorder %s137, %s140
    %p149 = scmp.eq.s32.totalorder %s17, 1
    %p150 = por %p148, %p149
    %p151 = scmp.ne.s32.totalorder %s140, %s141
    %p152 = scmp.eq.s32.totalorder %s17, 0
    %p153 = por %p151, %p152
    %p154 = scmp.ne.s32.totalorder %s140, %s141
    %p155 = scmp.eq.s32.totalorder %s18, 1
    %p156 = por %p154, %p155
    %p158 = scmp.ne.s32.totalorder %s141, %s157
    %p159 = scmp.eq.s32.totalorder %s18, 0
    %p160 = por %p158, %p159
    %p161 = scmp.le.s32.totalorder 1, %s12
    %p162 = scmp.lt.s32.totalorder %s12, 3
    %p163 = pnand %p161, %p162
    %p164 = pneg %p163
    // Predicated region
    $region9: #{mbconv_forward.5} parent=5 // pred_check
      _
    $region10: #{mbconv_forward.5} parent=5 // pred_check_branch
      %166 = sbr.rel (%p163) target = $region12
    $region11: #{mbconv_forward.5} parent=5 // pred_region
      %s167 = ssub.s32 %s12, 1
      // Predicated region
      $region13: #{mbconv_forward.5} parent=11 // pred_check
        %p168 = pneg %p59
      $region14: #{mbconv_forward.5} parent=11 // pred_check_branch
        %170 = sbr.rel (%p168) target = $region16
      $region15: #{mbconv_forward.5} parent=11 // pred_region
        _
      $region16: #{mbconv_forward.5} parent=11 // pred_fallthru
        _
      // Predicated region
      $region17: #{mbconv_forward.5} parent=11 // pred_check
        %p171 = pneg %p80
      $region18: #{mbconv_forward.5} parent=11 // pred_check_branch
        %173 = sbr.rel (%p171) target = $region20
      $region19: #{mbconv_forward.5} parent=11 // pred_region
        _
      $region20: #{mbconv_forward.5} parent=11 // pred_fallthru
        _
      // Predicated region
      $region21: #{mbconv_forward.5} parent=11 // pred_check
        %p174 = pneg %p101
      $region22: #{mbconv_forward.5} parent=11 // pred_check_branch
        %176 = sbr.rel (%p174) target = $region24
      $region23: #{mbconv_forward.5} parent=11 // pred_region
        _
      $region24: #{mbconv_forward.5} parent=11 // pred_fallthru
        _
    $region12: #{mbconv_forward.5} parent=5 // pred_fallthru
      _
    %p177 = scmp.lt.s32.totalorder %s12, 2
    // Predicated region
    $region25: #{mbconv_forward.5} parent=5 // pred_check
      %p178 = pneg %p177
    $region26: #{mbconv_forward.5} parent=5 // pred_check_branch
      %180 = sbr.rel (%p178) target = $region28
    $region27: #{mbconv_forward.5} parent=5 // pred_region
      // Predicated region
      $region29: #{mbconv_forward.5} parent=27 // pred_check
        %p181 = pneg %p32
      $region30: #{mbconv_forward.5} parent=27 // pred_check_branch
        %183 = sbr.rel (%p181) target = $region32
      $region31: #{mbconv_forward.5} parent=27 // pred_region
        %p184 = scmp.lt.s32.totalorder %s12, 1
        %s185 = scalar_select %p184, %s12, 1
        %s186 = smul.addr %s185, 54
        %s187 = smul.addr %s186, 8
        %s188 = scalar_lea.vmem %s0, %s187
      $region32: #{mbconv_forward.5} parent=27 // pred_fallthru
        _
    $region28: #{mbconv_forward.5} parent=5 // pred_fallthru
      _
    %p189 = scmp.le.s32.totalorder 1, %s12
    %p190 = scmp.lt.s32.totalorder %s12, 3
    %p191 = pnand %p189, %p190
    %p192 = pneg %p191
    // Predicated region
    $region33: #{mbconv_forward.5} parent=5 // pred_check
      _
    $region34: #{mbconv_forward.5} parent=5 // pred_check_branch
      %194 = sbr.rel (%p191) target = $region36
    $region35: #{mbconv_forward.5} parent=5 // pred_region
      %s195 = ssub.s32 %s12, 1
      %p196 = scmp.lt.s32.totalorder %s17, 1
      %s197 = scalar_select %p196, %s17, 1
      %s198 = smul.addr %s197, 54
      %s199 = smul.addr %s198, 8
      %s200 = scalar_lea.vmem %s0, %s199
      %p201 = pneg %p38
      %p202 = pneg %p35
      %p203 = pneg %p59
      %p204 = pneg %p56
      %p205 = pneg %p80
      %p206 = pneg %p77
      %p207 = pneg %p101
      %p208 = pneg %p98
      %p209 = pneg %p127
      %p210 = pneg %p124
      %p211 = scmp.lt.s32.totalorder %s17, 1
      %s212 = scalar_select %p211, %s17, 1
      %s213 = smul.addr %s212, 32
      %s214 = smul.addr %s213, 8
      %s215 = scalar_lea.vmem %s4, %s214
      %p216 = pneg %p153
      %p217 = pneg %p150
      %p218 = scmp.lt.s32.totalorder %s17, 1
      %s219 = scalar_select %p218, %s17, 1
      %s220 = scalar_lea.vmem %s5, %s219
      %p221 = scmp.lt.s32.totalorder %s17, 1
      %s222 = scalar_select %p221, %s17, 1
      %s223 = smul.addr %s222, 54
      %s224 = smul.addr %s223, 8
      %s225 = scalar_lea.vmem %s0, %s224
      %p226 = scmp.lt.s32.totalorder %s17, 1
      %s227 = scalar_select %p226, %s17, 1
      %s228 = smul.addr %s227, 32
      %s229 = smul.addr %s228, 8
      %s230 = scalar_lea.vmem %s4, %s229
      %p231 = scmp.lt.s32.totalorder %s17, 1
      %s232 = scalar_select %p231, %s17, 1
      %s233 = scalar_lea.vmem %s5, %s232
      %v234 = vld [vmem:[%s225] sm:$0xff]
      %v235 = vld [vmem:[%s225 + $0x8] sm:$0xff]
      %v236 = vld [vmem:[%s225 + $0x10] sm:$0x3]
      %v237 = vld [vmem:[%s225 + $0x18] sm:$0xff]
      %v238 = vld [vmem:[%s225 + $0x20] sm:$0xff]
      %v239 = vld [vmem:[%s225 + $0x28] sm:$0x3]
      %v240 = vld [vmem:[%s225 + $0x30] sm:$0xff]
      %v241 = vld [vmem:[%s225 + $0x38] sm:$0xff]
      %v242 = vld [vmem:[%s225 + $0x40] sm:$0x3]
      %v243 = vld [vmem:[%s225 + $0x48] sm:$0xff]
      %v244 = vld [vmem:[%s225 + $0x50] sm:$0xff]
      %v245 = vld [vmem:[%s225 + $0x58] sm:$0x3]
      %v246 = vld [vmem:[%s225 + $0x60] sm:$0xff]
      %v247 = vld [vmem:[%s225 + $0x68] sm:$0xff]
      %v248 = vld [vmem:[%s225 + $0x70] sm:$0x3]
      %v249 = vld [vmem:[%s225 + $0x78] sm:$0xff]
      %v250 = vld [vmem:[%s225 + $0x80] sm:$0xff]
      %v251 = vld [vmem:[%s225 + $0x88] sm:$0x3]
      %v252 = vld [vmem:[%s225 + $0x90] sm:$0xff]
      %v253 = vld [vmem:[%s225 + $0x98] sm:$0xff]
      %v254 = vld [vmem:[%s225 + $0xa0] sm:$0x3]
      %v255 = vld [vmem:[%s225 + $0xa8] sm:$0xff]
      %v256 = vld [vmem:[%s225 + $0xb0] sm:$0xff]
      %v257 = vld [vmem:[%s225 + $0xb8] sm:$0x3]
      %v258 = vld [vmem:[%s225 + $0xc0] sm:$0xff]
      %v259 = vld [vmem:[%s225 + $0xc8] sm:$0xff]
      %v260 = vld [vmem:[%s225 + $0xd0] sm:$0x3]
      %v261 = vld [vmem:[%s225 + $0xd8] sm:$0xff]
      %v262 = vld [vmem:[%s225 + $0xe0] sm:$0xff]
      %v263 = vld [vmem:[%s225 + $0xe8] sm:$0x3]
      %v264 = vld [vmem:[%s225 + $0xf0] sm:$0xff]
      %v265 = vld [vmem:[%s225 + $0xf8] sm:$0xff]
      %v266 = vld [vmem:[%s225 + $0x100] sm:$0x3]
      %v267 = vld [vmem:[%s225 + $0x108] sm:$0xff]
      %v268 = vld [vmem:[%s225 + $0x110] sm:$0xff]
      %v269 = vld [vmem:[%s225 + $0x118] sm:$0x3]
      %v270 = vld [vmem:[%s225 + $0x120] sm:$0xff]
      %v271 = vld [vmem:[%s225 + $0x128] sm:$0xff]
      %v272 = vld [vmem:[%s225 + $0x130] sm:$0x3]
      %v273 = vld [vmem:[%s225 + $0x138] sm:$0xff]
      %v274 = vld [vmem:[%s225 + $0x140] sm:$0xff]
      %v275 = vld [vmem:[%s225 + $0x148] sm:$0x3]
      %v276 = vld [vmem:[%s225 + $0x150] sm:$0xff]
      %v277 = vld [vmem:[%s225 + $0x158] sm:$0xff]
      %v278 = vld [vmem:[%s225 + $0x160] sm:$0x3]
      %v279 = vld [vmem:[%s225 + $0x168] sm:$0xff]
      %v280 = vld [vmem:[%s225 + $0x170] sm:$0xff]
      %v281 = vld [vmem:[%s225 + $0x178] sm:$0x3]
      %v282 = vld [vmem:[%s225 + $0x180] sm:$0xff]
      %v283 = vld [vmem:[%s225 + $0x188] sm:$0xff]
      %v284 = vld [vmem:[%s225 + $0x190] sm:$0x3]
      %v285 = vld [vmem:[%s225 + $0x198] sm:$0xff]
      %v286 = vld [vmem:[%s225 + $0x1a0] sm:$0xff]
      %v287 = vld [vmem:[%s225 + $0x1a8] sm:$0x3]
      %v288 = vld [vmem:[%s1] sm:$0xff]
      %v289 = vld [vmem:[%s1 + $0x8] sm:$0x1]
      %v290 = vlaneseq
      %v291 = vshrl.u32 %v290, 7
      %v292 = vsub.s32 0, %v291
      %v293 = vrot.slane %v288, %v292
      %v294 = vmul.f32 %v234, %v293
      %v295 = vmul.f32 %v235, %v293
      %v296 = vmul.f32 %v237, %v293
      %v297 = vmul.f32 %v238, %v293
      %v298 = vmul.f32 %v240, %v293
      %v299 = vmul.f32 %v241, %v293
      %v300 = vmul.f32 %v243, %v293
      %v301 = vmul.f32 %v244, %v293
      %v302 = vmul.f32 %v246, %v293
      %v303 = vmul.f32 %v247, %v293
      %v304 = vmul.f32 %v249, %v293
      %v305 = vmul.f32 %v250, %v293
      %v306 = vmul.f32 %v252, %v293
      %v307 = vmul.f32 %v253, %v293
      %v308 = vmul.f32 %v255, %v293
      %v309 = vmul.f32 %v256, %v293
      %v310 = vmul.f32 %v258, %v293
      %v311 = vmul.f32 %v259, %v293
      %v312 = vmul.f32 %v261, %v293
      %v313 = vmul.f32 %v262, %v293
      %v314 = vmul.f32 %v264, %v293
      %v315 = vmul.f32 %v265, %v293
      %v316 = vmul.f32 %v267, %v293
      %v317 = vmul.f32 %v268, %v293
      %v318 = vmul.f32 %v270, %v293
      %v319 = vmul.f32 %v271, %v293
      %v320 = vmul.f32 %v273, %v293
      %v321 = vmul.f32 %v274, %v293
      %v322 = vmul.f32 %v276, %v293
      %v323 = vmul.f32 %v277, %v293
      %v324 = vmul.f32 %v279, %v293
      %v325 = vmul.f32 %v280, %v293
      %v326 = vadd.f32 %v294, 0.0
      %v327 = vadd.f32 %v295, 0.0
      %v328 = vadd.f32 %v296, 0.0
      %v329 = vadd.f32 %v297, 0.0
      %v330 = vadd.f32 %v298, 0.0
      %v331 = vadd.f32 %v299, 0.0
      %v332 = vadd.f32 %v300, 0.0
      %v333 = vadd.f32 %v301, 0.0
      %v334 = vadd.f32 %v302, 0.0
      %v335 = vadd.f32 %v303, 0.0
      %v336 = vadd.f32 %v304, 0.0
      %v337 = vadd.f32 %v305, 0.0
      %v338 = vadd.f32 %v306, 0.0
      %v339 = vadd.f32 %v307, 0.0
      %v340 = vadd.f32 %v308, 0.0
      %v341 = vadd.f32 %v309, 0.0
      %v342 = vadd.f32 %v310, 0.0
      %v343 = vadd.f32 %v311, 0.0
      %v344 = vadd.f32 %v312, 0.0
      %v345 = vadd.f32 %v313, 0.0
      %v346 = vadd.f32 %v314, 0.0
      %v347 = vadd.f32 %v315, 0.0
      %v348 = vadd.f32 %v316, 0.0
      %v349 = vadd.f32 %v317, 0.0
      %v350 = vadd.f32 %v318, 0.0
      %v351 = vadd.f32 %v319, 0.0
      %v352 = vadd.f32 %v320, 0.0
      %v353 = vadd.f32 %v321, 0.0
      %v354 = vadd.f32 %v322, 0.0
      %v355 = vadd.f32 %v323, 0.0
      %v356 = vadd.f32 %v324, 0.0
      %v357 = vadd.f32 %v325, 0.0
      %v358 = vlaneseq
      %v359 = vshrl.u32 %v358, 7
      %v360 = vsub.s32 1, %v359
      %v361 = vrot.slane %v288, %v360
      %v362 = vmul.f32 %v234, %v361
      %v363 = vmul.f32 %v235, %v361
      %v364 = vmul.f32 %v236, %v361
      %v365 = vmul.f32 %v237, %v361
      %v366 = vmul.f32 %v238, %v361
      %v367 = vmul.f32 %v239, %v361
      %v368 = vmul.f32 %v240, %v361
      %v369 = vmul.f32 %v241, %v361
      %v370 = vmul.f32 %v242, %v361
      %v371 = vmul.f32 %v243, %v361
      %v372 = vmul.f32 %v244, %v361
      %v373 = vmul.f32 %v245, %v361
      %v374 = vmul.f32 %v246, %v361
      %v375 = vmul.f32 %v247, %v361
      %v376 = vmul.f32 %v248, %v361
      %v377 = vmul.f32 %v249, %v361
      %v378 = vmul.f32 %v250, %v361
      %v379 = vmul.f32 %v251, %v361
      %v380 = vmul.f32 %v252, %v361
      %v381 = vmul.f32 %v253, %v361
      %v382 = vmul.f32 %v254, %v361
      %v383 = vmul.f32 %v255, %v361
      %v384 = vmul.f32 %v256, %v361
      %v385 = vmul.f32 %v257, %v361
      %v386 = vmul.f32 %v258, %v361
      %v387 = vmul.f32 %v259, %v361
      %v388 = vmul.f32 %v260, %v361
      %v389 = vmul.f32 %v261, %v361
      %v390 = vmul.f32 %v262, %v361
      %v391 = vmul.f32 %v263, %v361
      %v392 = vmul.f32 %v264, %v361
      %v393 = vmul.f32 %v265, %v361
      %v394 = vmul.f32 %v266, %v361
      %v395 = vmul.f32 %v267, %v361
      %v396 = vmul.f32 %v268, %v361
      %v397 = vmul.f32 %v269, %v361
      %v398 = vmul.f32 %v270, %v361
      %v399 = vmul.f32 %v271, %v361
      %v400 = vmul.f32 %v272, %v361
      %v401 = vmul.f32 %v273, %v361
      %v402 = vmul.f32 %v274, %v361
      %v403 = vmul.f32 %v275, %v361
      %v404 = vmul.f32 %v276, %v361
      %v405 = vmul.f32 %v277, %v361
      %v406 = vmul.f32 %v278, %v361
      %v407 = vmul.f32 %v279, %v361
      %v408 = vmul.f32 %v280, %v361
      %v409 = vmul.f32 %v281, %v361
      %vm458 = vcmask 1046528
      %v459 = vrot.slane %v362, 1
      %v460 = vrot.slane %v363, 1
      %v461 = vsel %vm458, %v459, %v460
      %v462 = vrot.slane %v364, 1
      %v463 = vsel %vm458, %v460, %v462
      %v464 = vrot.slane %v365, 1
      %v465 = vrot.slane %v366, 1
      %v466 = vsel %vm458, %v464, %v465
      %v467 = vrot.slane %v367, 1
      %v468 = vsel %vm458, %v465, %v467
      %v469 = vrot.slane %v368, 1
      %v470 = vrot.slane %v369, 1
      %v471 = vsel %vm458, %v469, %v470
      %v472 = vrot.slane %v370, 1
      %v473 = vsel %vm458, %v470, %v472
      %v474 = vrot.slane %v371, 1
      %v475 = vrot.slane %v372, 1
      %v476 = vsel %vm458, %v474, %v475
      %v477 = vrot.slane %v373, 1
      %v478 = vsel %vm458, %v475, %v477
      %v479 = vrot.slane %v374, 1
      %v480 = vrot.slane %v375, 1
      %v481 = vsel %vm458, %v479, %v480
      %v482 = vrot.slane %v376, 1
      %v483 = vsel %vm458, %v480, %v482
      %v484 = vrot.slane %v377, 1
      %v485 = vrot.slane %v378, 1
      %v486 = vsel %vm458, %v484, %v485
      %v487 = vrot.slane %v379, 1
      %v488 = vsel %vm458, %v485, %v487
      %v489 = vrot.slane %v380, 1
      %v490 = vrot.slane %v381, 1
      %v491 = vsel %vm458, %v489, %v490
      %v492 = vrot.slane %v382, 1
      %v493 = vsel %vm458, %v490, %v492
      %v494 = vrot.slane %v383, 1
      %v495 = vrot.slane %v384, 1
      %v496 = vsel %vm458, %v494, %v495
      %v497 = vrot.slane %v385, 1
      %v498 = vsel %vm458, %v495, %v497
      %v499 = vrot.slane %v386, 1
      %v500 = vrot.slane %v387, 1
      %v501 = vsel %vm458, %v499, %v500
      %v502 = vrot.slane %v388, 1
      %v503 = vsel %vm458, %v500, %v502
      %v504 = vrot.slane %v389, 1
      %v505 = vrot.slane %v390, 1
      %v506 = vsel %vm458, %v504, %v505
      %v507 = vrot.slane %v391, 1
      %v508 = vsel %vm458, %v505, %v507
      %v509 = vrot.slane %v392, 1
      %v510 = vrot.slane %v393, 1
      %v511 = vsel %vm458, %v509, %v510
      %v512 = vrot.slane %v394, 1
      %v513 = vsel %vm458, %v510, %v512
      %v514 = vrot.slane %v395, 1
      %v515 = vrot.slane %v396, 1
      %v516 = vsel %vm458, %v514, %v515
      %v517 = vrot.slane %v397, 1
      %v518 = vsel %vm458, %v515, %v517
      %v519 = vrot.slane %v398, 1
      %v520 = vrot.slane %v399, 1
      %v521 = vsel %vm458, %v519, %v520
      %v522 = vrot.slane %v400, 1
      %v523 = vsel %vm458, %v520, %v522
      %v524 = vrot.slane %v401, 1
      %v525 = vrot.slane %v402, 1
      %v526 = vsel %vm458, %v524, %v525
      %v527 = vrot.slane %v403, 1
      %v528 = vsel %vm458, %v525, %v527
      %v529 = vrot.slane %v404, 1
      %v530 = vrot.slane %v405, 1
      %v531 = vsel %vm458, %v529, %v530
      %v532 = vrot.slane %v406, 1
      %v533 = vsel %vm458, %v530, %v532
      %v534 = vrot.slane %v407, 1
      %v535 = vrot.slane %v408, 1
      %v536 = vsel %vm458, %v534, %v535
      %v537 = vrot.slane %v409, 1
      %v538 = vsel %vm458, %v535, %v537
      %v571 = vadd.f32 %v326, %v461
      %v572 = vadd.f32 %v327, %v463
      %v573 = vadd.f32 %v328, %v466
      %v574 = vadd.f32 %v329, %v468
      %v575 = vadd.f32 %v330, %v471
      %v576 = vadd.f32 %v331, %v473
      %v577 = vadd.f32 %v332, %v476
      %v578 = vadd.f32 %v333, %v478
      %v579 = vadd.f32 %v334, %v481
      %v580 = vadd.f32 %v335, %v483
      %v581 = vadd.f32 %v336, %v486
      %v582 = vadd.f32 %v337, %v488
      %v583 = vadd.f32 %v338, %v491
      %v584 = vadd.f32 %v339, %v493
      %v585 = vadd.f32 %v340, %v496
      %v586 = vadd.f32 %v341, %v498
      %v587 = vadd.f32 %v342, %v501
      %v588 = vadd.f32 %v343, %v503
      %v589 = vadd.f32 %v344, %v506
      %v590 = vadd.f32 %v345, %v508
      %v591 = vadd.f32 %v346, %v511
      %v592 = vadd.f32 %v347, %v513
      %v593 = vadd.f32 %v348, %v516
      %v594 = vadd.f32 %v349, %v518
      %v595 = vadd.f32 %v350, %v521
      %v596 = vadd.f32 %v351, %v523
      %v597 = vadd.f32 %v352, %v526
      %v598 = vadd.f32 %v353, %v528
      %v599 = vadd.f32 %v354, %v531
      %v600 = vadd.f32 %v355, %v533
      %v601 = vadd.f32 %v356, %v536
      %v602 = vadd.f32 %v357, %v538
      %v603 = vlaneseq
      %v604 = vshrl.u32 %v603, 7
      %v605 = vsub.s32 2, %v604
      %v606 = vrot.slane %v288, %v605
      %v607 = vmul.f32 %v234, %v606
      %v608 = vmul.f32 %v235, %v606
      %v609 = vmul.f32 %v236, %v606
      %v610 = vmul.f32 %v237, %v606
      %v611 = vmul.f32 %v238, %v606
      %v612 = vmul.f32 %v239, %v606
      %v613 = vmul.f32 %v240, %v606
      %v614 = vmul.f32 %v241, %v606
      %v615 = vmul.f32 %v242, %v606
      %v616 = vmul.f32 %v243, %v606
      %v617 = vmul.f32 %v244, %v606
      %v618 = vmul.f32 %v245, %v606
      %v619 = vmul.f32 %v246, %v606
      %v620 = vmul.f32 %v247, %v606
      %v621 = vmul.f32 %v248, %v606
      %v622 = vmul.f32 %v249, %v606
      %v623 = vmul.f32 %v250, %v606
      %v624 = vmul.f32 %v251, %v606
      %v625 = vmul.f32 %v252, %v606
      %v626 = vmul.f32 %v253, %v606
      %v627 = vmul.f32 %v254, %v606
      %v628 = vmul.f32 %v255, %v606
      %v629 = vmul.f32 %v256, %v606
      %v630 = vmul.f32 %v257, %v606
      %v631 = vmul.f32 %v258, %v606
      %v632 = vmul.f32 %v259, %v606
      %v633 = vmul.f32 %v260, %v606
      %v634 = vmul.f32 %v261, %v606
      %v635 = vmul.f32 %v262, %v606
      %v636 = vmul.f32 %v263, %v606
      %v637 = vmul.f32 %v264, %v606
      %v638 = vmul.f32 %v265, %v606
      %v639 = vmul.f32 %v266, %v606
      %v640 = vmul.f32 %v267, %v606
      %v641 = vmul.f32 %v268, %v606
      %v642 = vmul.f32 %v269, %v606
      %v643 = vmul.f32 %v270, %v606
      %v644 = vmul.f32 %v271, %v606
      %v645 = vmul.f32 %v272, %v606
      %v646 = vmul.f32 %v273, %v606
      %v647 = vmul.f32 %v274, %v606
      %v648 = vmul.f32 %v275, %v606
      %v649 = vmul.f32 %v276, %v606
      %v650 = vmul.f32 %v277, %v606
      %v651 = vmul.f32 %v278, %v606
      %v652 = vmul.f32 %v279, %v606
      %v653 = vmul.f32 %v280, %v606
      %v654 = vmul.f32 %v281, %v606
      %vm703 = vcmask 1045504
      %v704 = vrot.slane %v607, 2
      %v705 = vrot.slane %v608, 2
      %v706 = vsel %vm703, %v704, %v705
      %v707 = vrot.slane %v609, 2
      %v708 = vsel %vm703, %v705, %v707
      %v709 = vrot.slane %v610, 2
      %v710 = vrot.slane %v611, 2
      %v711 = vsel %vm703, %v709, %v710
      %v712 = vrot.slane %v612, 2
      %v713 = vsel %vm703, %v710, %v712
      %v714 = vrot.slane %v613, 2
      %v715 = vrot.slane %v614, 2
      %v716 = vsel %vm703, %v714, %v715
      %v717 = vrot.slane %v615, 2
      %v718 = vsel %vm703, %v715, %v717
      %v719 = vrot.slane %v616, 2
      %v720 = vrot.slane %v617, 2
      %v721 = vsel %vm703, %v719, %v720
      %v722 = vrot.slane %v618, 2
      %v723 = vsel %vm703, %v720, %v722
      %v724 = vrot.slane %v619, 2
      %v725 = vrot.slane %v620, 2
      %v726 = vsel %vm703, %v724, %v725
      %v727 = vrot.slane %v621, 2
      %v728 = vsel %vm703, %v725, %v727
      %v729 = vrot.slane %v622, 2
      %v730 = vrot.slane %v623, 2
      %v731 = vsel %vm703, %v729, %v730
      %v732 = vrot.slane %v624, 2
      %v733 = vsel %vm703, %v730, %v732
      %v734 = vrot.slane %v625, 2
      %v735 = vrot.slane %v626, 2
      %v736 = vsel %vm703, %v734, %v735
      %v737 = vrot.slane %v627, 2
      %v738 = vsel %vm703, %v735, %v737
      %v739 = vrot.slane %v628, 2
      %v740 = vrot.slane %v629, 2
      %v741 = vsel %vm703, %v739, %v740
      %v742 = vrot.slane %v630, 2
      %v743 = vsel %vm703, %v740, %v742
      %v744 = vrot.slane %v631, 2
      %v745 = vrot.slane %v632, 2
      %v746 = vsel %vm703, %v744, %v745
      %v747 = vrot.slane %v633, 2
      %v748 = vsel %vm703, %v745, %v747
      %v749 = vrot.slane %v634, 2
      %v750 = vrot.slane %v635, 2
      %v751 = vsel %vm703, %v749, %v750
      %v752 = vrot.slane %v636, 2
      %v753 = vsel %vm703, %v750, %v752
      %v754 = vrot.slane %v637, 2
      %v755 = vrot.slane %v638, 2
      %v756 = vsel %vm703, %v754, %v755
      %v757 = vrot.slane %v639, 2
      %v758 = vsel %vm703, %v755, %v757
      %v759 = vrot.slane %v640, 2
      %v760 = vrot.slane %v641, 2
      %v761 = vsel %vm703, %v759, %v760
      %v762 = vrot.slane %v642, 2
      %v763 = vsel %vm703, %v760, %v762
      %v764 = vrot.slane %v643, 2
      %v765 = vrot.slane %v644, 2
      %v766 = vsel %vm703, %v764, %v765
      %v767 = vrot.slane %v645, 2
      %v768 = vsel %vm703, %v765, %v767
      %v769 = vrot.slane %v646, 2
      %v770 = vrot.slane %v647, 2
      %v771 = vsel %vm703, %v769, %v770
      %v772 = vrot.slane %v648, 2
      %v773 = vsel %vm703, %v770, %v772
      %v774 = vrot.slane %v649, 2
      %v775 = vrot.slane %v650, 2
      %v776 = vsel %vm703, %v774, %v775
      %v777 = vrot.slane %v651, 2
      %v778 = vsel %vm703, %v775, %v777
      %v779 = vrot.slane %v652, 2
      %v780 = vrot.slane %v653, 2
      %v781 = vsel %vm703, %v779, %v780
      %v782 = vrot.slane %v654, 2
      %v783 = vsel %vm703, %v780, %v782
      %v816 = vadd.f32 %v571, %v706
      %v817 = vadd.f32 %v572, %v708
      %v818 = vadd.f32 %v573, %v711
      %v819 = vadd.f32 %v574, %v713
      %v820 = vadd.f32 %v575, %v716
      %v821 = vadd.f32 %v576, %v718
      %v822 = vadd.f32 %v577, %v721
      %v823 = vadd.f32 %v578, %v723
      %v824 = vadd.f32 %v579, %v726
      %v825 = vadd.f32 %v580, %v728
      %v826 = vadd.f32 %v581, %v731
      %v827 = vadd.f32 %v582, %v733
      %v828 = vadd.f32 %v583, %v736
      %v829 = vadd.f32 %v584, %v738
      %v830 = vadd.f32 %v585, %v741
      %v831 = vadd.f32 %v586, %v743
      %v832 = vadd.f32 %v587, %v746
      %v833 = vadd.f32 %v588, %v748
      %v834 = vadd.f32 %v589, %v751
      %v835 = vadd.f32 %v590, %v753
      %v836 = vadd.f32 %v591, %v756
      %v837 = vadd.f32 %v592, %v758
      %v838 = vadd.f32 %v593, %v761
      %v839 = vadd.f32 %v594, %v763
      %v840 = vadd.f32 %v595, %v766
      %v841 = vadd.f32 %v596, %v768
      %v842 = vadd.f32 %v597, %v771
      %v843 = vadd.f32 %v598, %v773
      %v844 = vadd.f32 %v599, %v776
      %v845 = vadd.f32 %v600, %v778
      %v846 = vadd.f32 %v601, %v781
      %v847 = vadd.f32 %v602, %v783
      %v848 = vlaneseq
      %v849 = vshrl.u32 %v848, 7
      %v850 = vsub.s32 3, %v849
      %v851 = vrot.slane %v288, %v850
      %v852 = vmul.f32 %v237, %v851
      %v853 = vmul.f32 %v238, %v851
      %v854 = vmul.f32 %v240, %v851
      %v855 = vmul.f32 %v241, %v851
      %v856 = vmul.f32 %v243, %v851
      %v857 = vmul.f32 %v244, %v851
      %v858 = vmul.f32 %v246, %v851
      %v859 = vmul.f32 %v247, %v851
      %v860 = vmul.f32 %v249, %v851
      %v861 = vmul.f32 %v250, %v851
      %v862 = vmul.f32 %v252, %v851
      %v863 = vmul.f32 %v253, %v851
      %v864 = vmul.f32 %v255, %v851
      %v865 = vmul.f32 %v256, %v851
      %v866 = vmul.f32 %v258, %v851
      %v867 = vmul.f32 %v259, %v851
      %v868 = vmul.f32 %v261, %v851
      %v869 = vmul.f32 %v262, %v851
      %v870 = vmul.f32 %v264, %v851
      %v871 = vmul.f32 %v265, %v851
      %v872 = vmul.f32 %v267, %v851
      %v873 = vmul.f32 %v268, %v851
      %v874 = vmul.f32 %v270, %v851
      %v875 = vmul.f32 %v271, %v851
      %v876 = vmul.f32 %v273, %v851
      %v877 = vmul.f32 %v274, %v851
      %v878 = vmul.f32 %v276, %v851
      %v879 = vmul.f32 %v277, %v851
      %v880 = vmul.f32 %v279, %v851
      %v881 = vmul.f32 %v280, %v851
      %v882 = vmul.f32 %v282, %v851
      %v883 = vmul.f32 %v283, %v851
      %v884 = vadd.f32 %v816, %v852
      %v885 = vadd.f32 %v817, %v853
      %v886 = vadd.f32 %v818, %v854
      %v887 = vadd.f32 %v819, %v855
      %v888 = vadd.f32 %v820, %v856
      %v889 = vadd.f32 %v821, %v857
      %v890 = vadd.f32 %v822, %v858
      %v891 = vadd.f32 %v823, %v859
      %v892 = vadd.f32 %v824, %v860
      %v893 = vadd.f32 %v825, %v861
      %v894 = vadd.f32 %v826, %v862
      %v895 = vadd.f32 %v827, %v863
      %v896 = vadd.f32 %v828, %v864
      %v897 = vadd.f32 %v829, %v865
      %v898 = vadd.f32 %v830, %v866
      %v899 = vadd.f32 %v831, %v867
      %v900 = vadd.f32 %v832, %v868
      %v901 = vadd.f32 %v833, %v869
      %v902 = vadd.f32 %v834, %v870
      %v903 = vadd.f32 %v835, %v871
      %v904 = vadd.f32 %v836, %v872
      %v905 = vadd.f32 %v837, %v873
      %v906 = vadd.f32 %v838, %v874
      %v907 = vadd.f32 %v839, %v875
      %v908 = vadd.f32 %v840, %v876
      %v909 = vadd.f32 %v841, %v877
      %v910 = vadd.f32 %v842, %v878
      %v911 = vadd.f32 %v843, %v879
      %v912 = vadd.f32 %v844, %v880
      %v913 = vadd.f32 %v845, %v881
      %v914 = vadd.f32 %v846, %v882
      %v915 = vadd.f32 %v847, %v883
      %v916 = vlaneseq
      %v917 = vshrl.u32 %v916, 7
      %v918 = vsub.s32 4, %v917
      %v919 = vrot.slane %v288, %v918
      %v920 = vmul.f32 %v237, %v919
      %v921 = vmul.f32 %v238, %v919
      %v922 = vmul.f32 %v239, %v919
      %v923 = vmul.f32 %v240, %v919
      %v924 = vmul.f32 %v241, %v919
      %v925 = vmul.f32 %v242, %v919
      %v926 = vmul.f32 %v243, %v919
      %v927 = vmul.f32 %v244, %v919
      %v928 = vmul.f32 %v245, %v919
      %v929 = vmul.f32 %v246, %v919
      %v930 = vmul.f32 %v247, %v919
      %v931 = vmul.f32 %v248, %v919
      %v932 = vmul.f32 %v249, %v919
      %v933 = vmul.f32 %v250, %v919
      %v934 = vmul.f32 %v251, %v919
      %v935 = vmul.f32 %v252, %v919
      %v936 = vmul.f32 %v253, %v919
      %v937 = vmul.f32 %v254, %v919
      %v938 = vmul.f32 %v255, %v919
      %v939 = vmul.f32 %v256, %v919
      %v940 = vmul.f32 %v257, %v919
      %v941 = vmul.f32 %v258, %v919
      %v942 = vmul.f32 %v259, %v919
      %v943 = vmul.f32 %v260, %v919
      %v944 = vmul.f32 %v261, %v919
      %v945 = vmul.f32 %v262, %v919
      %v946 = vmul.f32 %v263, %v919
      %v947 = vmul.f32 %v264, %v919
      %v948 = vmul.f32 %v265, %v919
      %v949 = vmul.f32 %v266, %v919
      %v950 = vmul.f32 %v267, %v919
      %v951 = vmul.f32 %v268, %v919
      %v952 = vmul.f32 %v269, %v919
      %v953 = vmul.f32 %v270, %v919
      %v954 = vmul.f32 %v271, %v919
      %v955 = vmul.f32 %v272, %v919
      %v956 = vmul.f32 %v273, %v919
      %v957 = vmul.f32 %v274, %v919
      %v958 = vmul.f32 %v275, %v919
      %v959 = vmul.f32 %v276, %v919
      %v960 = vmul.f32 %v277, %v919
      %v961 = vmul.f32 %v278, %v919
      %v962 = vmul.f32 %v279, %v919
      %v963 = vmul.f32 %v280, %v919
      %v964 = vmul.f32 %v281, %v919
      %v965 = vmul.f32 %v282, %v919
      %v966 = vmul.f32 %v283, %v919
      %v967 = vmul.f32 %v284, %v919
      %v1016 = vrot.slane %v920, 1
      %v1017 = vrot.slane %v921, 1
      %v1018 = vsel %vm458, %v1016, %v1017
      %v1019 = vrot.slane %v922, 1
      %v1020 = vsel %vm458, %v1017, %v1019
      %v1021 = vrot.slane %v923, 1
      %v1022 = vrot.slane %v924, 1
      %v1023 = vsel %vm458, %v1021, %v1022
      %v1024 = vrot.slane %v925, 1
      %v1025 = vsel %vm458, %v1022, %v1024
      %v1026 = vrot.slane %v926, 1
      %v1027 = vrot.slane %v927, 1
      %v1028 = vsel %vm458, %v1026, %v1027
      %v1029 = vrot.slane %v928, 1
      %v1030 = vsel %vm458, %v1027, %v1029
      %v1031 = vrot.slane %v929, 1
      %v1032 = vrot.slane %v930, 1
      %v1033 = vsel %vm458, %v1031, %v1032
      %v1034 = vrot.slane %v931, 1
      %v1035 = vsel %vm458, %v1032, %v1034
      %v1036 = vrot.slane %v932, 1
      %v1037 = vrot.slane %v933, 1
      %v1038 = vsel %vm458, %v1036, %v1037
      %v1039 = vrot.slane %v934, 1
      %v1040 = vsel %vm458, %v1037, %v1039
      %v1041 = vrot.slane %v935, 1
      %v1042 = vrot.slane %v936, 1
      %v1043 = vsel %vm458, %v1041, %v1042
      %v1044 = vrot.slane %v937, 1
      %v1045 = vsel %vm458, %v1042, %v1044
      %v1046 = vrot.slane %v938, 1
      %v1047 = vrot.slane %v939, 1
      %v1048 = vsel %vm458, %v1046, %v1047
      %v1049 = vrot.slane %v940, 1
      %v1050 = vsel %vm458, %v1047, %v1049
      %v1051 = vrot.slane %v941, 1
      %v1052 = vrot.slane %v942, 1
      %v1053 = vsel %vm458, %v1051, %v1052
      %v1054 = vrot.slane %v943, 1
      %v1055 = vsel %vm458, %v1052, %v1054
      %v1056 = vrot.slane %v944, 1
      %v1057 = vrot.slane %v945, 1
      %v1058 = vsel %vm458, %v1056, %v1057
      %v1059 = vrot.slane %v946, 1
      %v1060 = vsel %vm458, %v1057, %v1059
      %v1061 = vrot.slane %v947, 1
      %v1062 = vrot.slane %v948, 1
      %v1063 = vsel %vm458, %v1061, %v1062
      %v1064 = vrot.slane %v949, 1
      %v1065 = vsel %vm458, %v1062, %v1064
      %v1066 = vrot.slane %v950, 1
      %v1067 = vrot.slane %v951, 1
      %v1068 = vsel %vm458, %v1066, %v1067
      %v1069 = vrot.slane %v952, 1
      %v1070 = vsel %vm458, %v1067, %v1069
      %v1071 = vrot.slane %v953, 1
      %v1072 = vrot.slane %v954, 1
      %v1073 = vsel %vm458, %v1071, %v1072
      %v1074 = vrot.slane %v955, 1
      %v1075 = vsel %vm458, %v1072, %v1074
      %v1076 = vrot.slane %v956, 1
      %v1077 = vrot.slane %v957, 1
      %v1078 = vsel %vm458, %v1076, %v1077
      %v1079 = vrot.slane %v958, 1
      %v1080 = vsel %vm458, %v1077, %v1079
      %v1081 = vrot.slane %v959, 1
      %v1082 = vrot.slane %v960, 1
      %v1083 = vsel %vm458, %v1081, %v1082
      %v1084 = vrot.slane %v961, 1
      %v1085 = vsel %vm458, %v1082, %v1084
      %v1086 = vrot.slane %v962, 1
      %v1087 = vrot.slane %v963, 1
      %v1088 = vsel %vm458, %v1086, %v1087
      %v1089 = vrot.slane %v964, 1
      %v1090 = vsel %vm458, %v1087, %v1089
      %v1091 = vrot.slane %v965, 1
      %v1092 = vrot.slane %v966, 1
      %v1093 = vsel %vm458, %v1091, %v1092
      %v1094 = vrot.slane %v967, 1
      %v1095 = vsel %vm458, %v1092, %v1094
      %v1128 = vadd.f32 %v884, %v1018
      %v1129 = vadd.f32 %v885, %v1020
      %v1130 = vadd.f32 %v886, %v1023
      %v1131 = vadd.f32 %v887, %v1025
      %v1132 = vadd.f32 %v888, %v1028
      %v1133 = vadd.f32 %v889, %v1030
      %v1134 = vadd.f32 %v890, %v1033
      %v1135 = vadd.f32 %v891, %v1035
      %v1136 = vadd.f32 %v892, %v1038
      %v1137 = vadd.f32 %v893, %v1040
      %v1138 = vadd.f32 %v894, %v1043
      %v1139 = vadd.f32 %v895, %v1045
      %v1140 = vadd.f32 %v896, %v1048
      %v1141 = vadd.f32 %v897, %v1050
      %v1142 = vadd.f32 %v898, %v1053
      %v1143 = vadd.f32 %v899, %v1055
      %v1144 = vadd.f32 %v900, %v1058
      %v1145 = vadd.f32 %v901, %v1060
      %v1146 = vadd.f32 %v902, %v1063
      %v1147 = vadd.f32 %v903, %v1065
      %v1148 = vadd.f32 %v904, %v1068
      %v1149 = vadd.f32 %v905, %v1070
      %v1150 = vadd.f32 %v906, %v1073
      %v1151 = vadd.f32 %v907, %v1075
      %v1152 = vadd.f32 %v908, %v1078
      %v1153 = vadd.f32 %v909, %v1080
      %v1154 = vadd.f32 %v910, %v1083
      %v1155 = vadd.f32 %v911, %v1085
      %v1156 = vadd.f32 %v912, %v1088
      %v1157 = vadd.f32 %v913, %v1090
      %v1158 = vadd.f32 %v914, %v1093
      %v1159 = vadd.f32 %v915, %v1095
      %v1160 = vlaneseq
      %v1161 = vshrl.u32 %v1160, 7
      %v1162 = vsub.s32 5, %v1161
      %v1163 = vrot.slane %v288, %v1162
      %v1164 = vmul.f32 %v237, %v1163
      %v1165 = vmul.f32 %v238, %v1163
      %v1166 = vmul.f32 %v239, %v1163
      %v1167 = vmul.f32 %v240, %v1163
      %v1168 = vmul.f32 %v241, %v1163
      %v1169 = vmul.f32 %v242, %v1163
      %v1170 = vmul.f32 %v243, %v1163
      %v1171 = vmul.f32 %v244, %v1163
      %v1172 = vmul.f32 %v245, %v1163
      %v1173 = vmul.f32 %v246, %v1163
      %v1174 = vmul.f32 %v247, %v1163
      %v1175 = vmul.f32 %v248, %v1163
      %v1176 = vmul.f32 %v249, %v1163
      %v1177 = vmul.f32 %v250, %v1163
      %v1178 = vmul.f32 %v251, %v1163
      %v1179 = vmul.f32 %v252, %v1163
      %v1180 = vmul.f32 %v253, %v1163
      %v1181 = vmul.f32 %v254, %v1163
      %v1182 = vmul.f32 %v255, %v1163
      %v1183 = vmul.f32 %v256, %v1163
      %v1184 = vmul.f32 %v257, %v1163
      %v1185 = vmul.f32 %v258, %v1163
      %v1186 = vmul.f32 %v259, %v1163
      %v1187 = vmul.f32 %v260, %v1163
      %v1188 = vmul.f32 %v261, %v1163
      %v1189 = vmul.f32 %v262, %v1163
      %v1190 = vmul.f32 %v263, %v1163
      %v1191 = vmul.f32 %v264, %v1163
      %v1192 = vmul.f32 %v265, %v1163
      %v1193 = vmul.f32 %v266, %v1163
      %v1194 = vmul.f32 %v267, %v1163
      %v1195 = vmul.f32 %v268, %v1163
      %v1196 = vmul.f32 %v269, %v1163
      %v1197 = vmul.f32 %v270, %v1163
      %v1198 = vmul.f32 %v271, %v1163
      %v1199 = vmul.f32 %v272, %v1163
      %v1200 = vmul.f32 %v273, %v1163
      %v1201 = vmul.f32 %v274, %v1163
      %v1202 = vmul.f32 %v275, %v1163
      %v1203 = vmul.f32 %v276, %v1163
      %v1204 = vmul.f32 %v277, %v1163
      %v1205 = vmul.f32 %v278, %v1163
      %v1206 = vmul.f32 %v279, %v1163
      %v1207 = vmul.f32 %v280, %v1163
      %v1208 = vmul.f32 %v281, %v1163
      %v1209 = vmul.f32 %v282, %v1163
      %v1210 = vmul.f32 %v283, %v1163
      %v1211 = vmul.f32 %v284, %v1163
      %v1260 = vrot.slane %v1164, 2
      %v1261 = vrot.slane %v1165, 2
      %v1262 = vsel %vm703, %v1260, %v1261
      %v1263 = vrot.slane %v1166, 2
      %v1264 = vsel %vm703, %v1261, %v1263
      %v1265 = vrot.slane %v1167, 2
      %v1266 = vrot.slane %v1168, 2
      %v1267 = vsel %vm703, %v1265, %v1266
      %v1268 = vrot.slane %v1169, 2
      %v1269 = vsel %vm703, %v1266, %v1268
      %v1270 = vrot.slane %v1170, 2
      %v1271 = vrot.slane %v1171, 2
      %v1272 = vsel %vm703, %v1270, %v1271
      %v1273 = vrot.slane %v1172, 2
      %v1274 = vsel %vm703, %v1271, %v1273
      %v1275 = vrot.slane %v1173, 2
      %v1276 = vrot.slane %v1174, 2
      %v1277 = vsel %vm703, %v1275, %v1276
      %v1278 = vrot.slane %v1175, 2
      %v1279 = vsel %vm703, %v1276, %v1278
      %v1280 = vrot.slane %v1176, 2
      %v1281 = vrot.slane %v1177, 2
      %v1282 = vsel %vm703, %v1280, %v1281
      %v1283 = vrot.slane %v1178, 2
      %v1284 = vsel %vm703, %v1281, %v1283
      %v1285 = vrot.slane %v1179, 2
      %v1286 = vrot.slane %v1180, 2
      %v1287 = vsel %vm703, %v1285, %v1286
      %v1288 = vrot.slane %v1181, 2
      %v1289 = vsel %vm703, %v1286, %v1288
      %v1290 = vrot.slane %v1182, 2
      %v1291 = vrot.slane %v1183, 2
      %v1292 = vsel %vm703, %v1290, %v1291
      %v1293 = vrot.slane %v1184, 2
      %v1294 = vsel %vm703, %v1291, %v1293
      %v1295 = vrot.slane %v1185, 2
      %v1296 = vrot.slane %v1186, 2
      %v1297 = vsel %vm703, %v1295, %v1296
      %v1298 = vrot.slane %v1187, 2
      %v1299 = vsel %vm703, %v1296, %v1298
      %v1300 = vrot.slane %v1188, 2
      %v1301 = vrot.slane %v1189, 2
      %v1302 = vsel %vm703, %v1300, %v1301
      %v1303 = vrot.slane %v1190, 2
      %v1304 = vsel %vm703, %v1301, %v1303
      %v1305 = vrot.slane %v1191, 2
      %v1306 = vrot.slane %v1192, 2
      %v1307 = vsel %vm703, %v1305, %v1306
      %v1308 = vrot.slane %v1193, 2
      %v1309 = vsel %vm703, %v1306, %v1308
      %v1310 = vrot.slane %v1194, 2
      %v1311 = vrot.slane %v1195, 2
      %v1312 = vsel %vm703, %v1310, %v1311
      %v1313 = vrot.slane %v1196, 2
      %v1314 = vsel %vm703, %v1311, %v1313
      %v1315 = vrot.slane %v1197, 2
      %v1316 = vrot.slane %v1198, 2
      %v1317 = vsel %vm703, %v1315, %v1316
      %v1318 = vrot.slane %v1199, 2
      %v1319 = vsel %vm703, %v1316, %v1318
      %v1320 = vrot.slane %v1200, 2
      %v1321 = vrot.slane %v1201, 2
      %v1322 = vsel %vm703, %v1320, %v1321
      %v1323 = vrot.slane %v1202, 2
      %v1324 = vsel %vm703, %v1321, %v1323
      %v1325 = vrot.slane %v1203, 2
      %v1326 = vrot.slane %v1204, 2
      %v1327 = vsel %vm703, %v1325, %v1326
      %v1328 = vrot.slane %v1205, 2
      %v1329 = vsel %vm703, %v1326, %v1328
      %v1330 = vrot.slane %v1206, 2
      %v1331 = vrot.slane %v1207, 2
      %v1332 = vsel %vm703, %v1330, %v1331
      %v1333 = vrot.slane %v1208, 2
      %v1334 = vsel %vm703, %v1331, %v1333
      %v1335 = vrot.slane %v1209, 2
      %v1336 = vrot.slane %v1210, 2
      %v1337 = vsel %vm703, %v1335, %v1336
      %v1338 = vrot.slane %v1211, 2
      %v1339 = vsel %vm703, %v1336, %v1338
      %v1372 = vadd.f32 %v1128, %v1262
      %v1373 = vadd.f32 %v1129, %v1264
      %v1374 = vadd.f32 %v1130, %v1267
      %v1375 = vadd.f32 %v1131, %v1269
      %v1376 = vadd.f32 %v1132, %v1272
      %v1377 = vadd.f32 %v1133, %v1274
      %v1378 = vadd.f32 %v1134, %v1277
      %v1379 = vadd.f32 %v1135, %v1279
      %v1380 = vadd.f32 %v1136, %v1282
      %v1381 = vadd.f32 %v1137, %v1284
      %v1382 = vadd.f32 %v1138, %v1287
      %v1383 = vadd.f32 %v1139, %v1289
      %v1384 = vadd.f32 %v1140, %v1292
      %v1385 = vadd.f32 %v1141, %v1294
      %v1386 = vadd.f32 %v1142, %v1297
      %v1387 = vadd.f32 %v1143, %v1299
      %v1388 = vadd.f32 %v1144, %v1302
      %v1389 = vadd.f32 %v1145, %v1304
      %v1390 = vadd.f32 %v1146, %v1307
      %v1391 = vadd.f32 %v1147, %v1309
      %v1392 = vadd.f32 %v1148, %v1312
      %v1393 = vadd.f32 %v1149, %v1314
      %v1394 = vadd.f32 %v1150, %v1317
      %v1395 = vadd.f32 %v1151, %v1319
      %v1396 = vadd.f32 %v1152, %v1322
      %v1397 = vadd.f32 %v1153, %v1324
      %v1398 = vadd.f32 %v1154, %v1327
      %v1399 = vadd.f32 %v1155, %v1329
      %v1400 = vadd.f32 %v1156, %v1332
      %v1401 = vadd.f32 %v1157, %v1334
      %v1402 = vadd.f32 %v1158, %v1337
      %v1403 = vadd.f32 %v1159, %v1339
      %v1404 = vlaneseq
      %v1405 = vshrl.u32 %v1404, 7
      %v1406 = vsub.s32 6, %v1405
      %v1407 = vrot.slane %v288, %v1406
      %v1408 = vmul.f32 %v240, %v1407
      %v1409 = vmul.f32 %v241, %v1407
      %v1410 = vmul.f32 %v243, %v1407
      %v1411 = vmul.f32 %v244, %v1407
      %v1412 = vmul.f32 %v246, %v1407
      %v1413 = vmul.f32 %v247, %v1407
      %v1414 = vmul.f32 %v249, %v1407
      %v1415 = vmul.f32 %v250, %v1407
      %v1416 = vmul.f32 %v252, %v1407
      %v1417 = vmul.f32 %v253, %v1407
      %v1418 = vmul.f32 %v255, %v1407
      %v1419 = vmul.f32 %v256, %v1407
      %v1420 = vmul.f32 %v258, %v1407
      %v1421 = vmul.f32 %v259, %v1407
      %v1422 = vmul.f32 %v261, %v1407
      %v1423 = vmul.f32 %v262, %v1407
      %v1424 = vmul.f32 %v264, %v1407
      %v1425 = vmul.f32 %v265, %v1407
      %v1426 = vmul.f32 %v267, %v1407
      %v1427 = vmul.f32 %v268, %v1407
      %v1428 = vmul.f32 %v270, %v1407
      %v1429 = vmul.f32 %v271, %v1407
      %v1430 = vmul.f32 %v273, %v1407
      %v1431 = vmul.f32 %v274, %v1407
      %v1432 = vmul.f32 %v276, %v1407
      %v1433 = vmul.f32 %v277, %v1407
      %v1434 = vmul.f32 %v279, %v1407
      %v1435 = vmul.f32 %v280, %v1407
      %v1436 = vmul.f32 %v282, %v1407
      %v1437 = vmul.f32 %v283, %v1407
      %v1438 = vmul.f32 %v285, %v1407
      %v1439 = vmul.f32 %v286, %v1407
      %v1440 = vadd.f32 %v1372, %v1408
      %v1441 = vadd.f32 %v1373, %v1409
      %v1442 = vadd.f32 %v1374, %v1410
      %v1443 = vadd.f32 %v1375, %v1411
      %v1444 = vadd.f32 %v1376, %v1412
      %v1445 = vadd.f32 %v1377, %v1413
      %v1446 = vadd.f32 %v1378, %v1414
      %v1447 = vadd.f32 %v1379, %v1415
      %v1448 = vadd.f32 %v1380, %v1416
      %v1449 = vadd.f32 %v1381, %v1417
      %v1450 = vadd.f32 %v1382, %v1418
      %v1451 = vadd.f32 %v1383, %v1419
      %v1452 = vadd.f32 %v1384, %v1420
      %v1453 = vadd.f32 %v1385, %v1421
      %v1454 = vadd.f32 %v1386, %v1422
      %v1455 = vadd.f32 %v1387, %v1423
      %v1456 = vadd.f32 %v1388, %v1424
      %v1457 = vadd.f32 %v1389, %v1425
      %v1458 = vadd.f32 %v1390, %v1426
      %v1459 = vadd.f32 %v1391, %v1427
      %v1460 = vadd.f32 %v1392, %v1428
      %v1461 = vadd.f32 %v1393, %v1429
      %v1462 = vadd.f32 %v1394, %v1430
      %v1463 = vadd.f32 %v1395, %v1431
      %v1464 = vadd.f32 %v1396, %v1432
      %v1465 = vadd.f32 %v1397, %v1433
      %v1466 = vadd.f32 %v1398, %v1434
      %v1467 = vadd.f32 %v1399, %v1435
      %v1468 = vadd.f32 %v1400, %v1436
      %v1469 = vadd.f32 %v1401, %v1437
      %v1470 = vadd.f32 %v1402, %v1438
      %v1471 = vadd.f32 %v1403, %v1439
      %v1472 = vlaneseq
      %v1473 = vshrl.u32 %v1472, 7
      %v1474 = vsub.s32 7, %v1473
      %v1475 = vrot.slane %v288, %v1474
      %v1476 = vmul.f32 %v240, %v1475
      %v1477 = vmul.f32 %v241, %v1475
      %v1478 = vmul.f32 %v242, %v1475
      %v1479 = vmul.f32 %v243, %v1475
      %v1480 = vmul.f32 %v244, %v1475
      %v1481 = vmul.f32 %v245, %v1475
      %v1482 = vmul.f32 %v246, %v1475
      %v1483 = vmul.f32 %v247, %v1475
      %v1484 = vmul.f32 %v248, %v1475
      %v1485 = vmul.f32 %v249, %v1475
      %v1486 = vmul.f32 %v250, %v1475
      %v1487 = vmul.f32 %v251, %v1475
      %v1488 = vmul.f32 %v252, %v1475
      %v1489 = vmul.f32 %v253, %v1475
      %v1490 = vmul.f32 %v254, %v1475
      %v1491 = vmul.f32 %v255, %v1475
      %v1492 = vmul.f32 %v256, %v1475
      %v1493 = vmul.f32 %v257, %v1475
      %v1494 = vmul.f32 %v258, %v1475
      %v1495 = vmul.f32 %v259, %v1475
      %v1496 = vmul.f32 %v260, %v1475
      %v1497 = vmul.f32 %v261, %v1475
      %v1498 = vmul.f32 %v262, %v1475
      %v1499 = vmul.f32 %v263, %v1475
      %v1500 = vmul.f32 %v264, %v1475
      %v1501 = vmul.f32 %v265, %v1475
      %v1502 = vmul.f32 %v266, %v1475
      %v1503 = vmul.f32 %v267, %v1475
      %v1504 = vmul.f32 %v268, %v1475
      %v1505 = vmul.f32 %v269, %v1475
      %v1506 = vmul.f32 %v270, %v1475
      %v1507 = vmul.f32 %v271, %v1475
      %v1508 = vmul.f32 %v272, %v1475
      %v1509 = vmul.f32 %v273, %v1475
      %v1510 = vmul.f32 %v274, %v1475
      %v1511 = vmul.f32 %v275, %v1475
      %v1512 = vmul.f32 %v276, %v1475
      %v1513 = vmul.f32 %v277, %v1475
      %v1514 = vmul.f32 %v278, %v1475
      %v1515 = vmul.f32 %v279, %v1475
      %v1516 = vmul.f32 %v280, %v1475
      %v1517 = vmul.f32 %v281, %v1475
      %v1518 = vmul.f32 %v282, %v1475
      %v1519 = vmul.f32 %v283, %v1475
      %v1520 = vmul.f32 %v284, %v1475
      %v1521 = vmul.f32 %v285, %v1475
      %v1522 = vmul.f32 %v286, %v1475
      %v1523 = vmul.f32 %v287, %v1475
      %v1572 = vrot.slane %v1476, 1
      %v1573 = vrot.slane %v1477, 1
      %v1574 = vsel %vm458, %v1572, %v1573
      %v1575 = vrot.slane %v1478, 1
      %v1576 = vsel %vm458, %v1573, %v1575
      %v1577 = vrot.slane %v1479, 1
      %v1578 = vrot.slane %v1480, 1
      %v1579 = vsel %vm458, %v1577, %v1578
      %v1580 = vrot.slane %v1481, 1
      %v1581 = vsel %vm458, %v1578, %v1580
      %v1582 = vrot.slane %v1482, 1
      %v1583 = vrot.slane %v1483, 1
      %v1584 = vsel %vm458, %v1582, %v1583
      %v1585 = vrot.slane %v1484, 1
      %v1586 = vsel %vm458, %v1583, %v1585
      %v1587 = vrot.slane %v1485, 1
      %v1588 = vrot.slane %v1486, 1
      %v1589 = vsel %vm458, %v1587, %v1588
      %v1590 = vrot.slane %v1487, 1
      %v1591 = vsel %vm458, %v1588, %v1590
      %v1592 = vrot.slane %v1488, 1
      %v1593 = vrot.slane %v1489, 1
      %v1594 = vsel %vm458, %v1592, %v1593
      %v1595 = vrot.slane %v1490, 1
      %v1596 = vsel %vm458, %v1593, %v1595
      %v1597 = vrot.slane %v1491, 1
      %v1598 = vrot.slane %v1492, 1
      %v1599 = vsel %vm458, %v1597, %v1598
      %v1600 = vrot.slane %v1493, 1
      %v1601 = vsel %vm458, %v1598, %v1600
      %v1602 = vrot.slane %v1494, 1
      %v1603 = vrot.slane %v1495, 1
      %v1604 = vsel %vm458, %v1602, %v1603
      %v1605 = vrot.slane %v1496, 1
      %v1606 = vsel %vm458, %v1603, %v1605
      %v1607 = vrot.slane %v1497, 1
      %v1608 = vrot.slane %v1498, 1
      %v1609 = vsel %vm458, %v1607, %v1608
      %v1610 = vrot.slane %v1499, 1
      %v1611 = vsel %vm458, %v1608, %v1610
      %v1612 = vrot.slane %v1500, 1
      %v1613 = vrot.slane %v1501, 1
      %v1614 = vsel %vm458, %v1612, %v1613
      %v1615 = vrot.slane %v1502, 1
      %v1616 = vsel %vm458, %v1613, %v1615
      %v1617 = vrot.slane %v1503, 1
      %v1618 = vrot.slane %v1504, 1
      %v1619 = vsel %vm458, %v1617, %v1618
      %v1620 = vrot.slane %v1505, 1
      %v1621 = vsel %vm458, %v1618, %v1620
      %v1622 = vrot.slane %v1506, 1
      %v1623 = vrot.slane %v1507, 1
      %v1624 = vsel %vm458, %v1622, %v1623
      %v1625 = vrot.slane %v1508, 1
      %v1626 = vsel %vm458, %v1623, %v1625
      %v1627 = vrot.slane %v1509, 1
      %v1628 = vrot.slane %v1510, 1
      %v1629 = vsel %vm458, %v1627, %v1628
      %v1630 = vrot.slane %v1511, 1
      %v1631 = vsel %vm458, %v1628, %v1630
      %v1632 = vrot.slane %v1512, 1
      %v1633 = vrot.slane %v1513, 1
      %v1634 = vsel %vm458, %v1632, %v1633
      %v1635 = vrot.slane %v1514, 1
      %v1636 = vsel %vm458, %v1633, %v1635
      %v1637 = vrot.slane %v1515, 1
      %v1638 = vrot.slane %v1516, 1
      %v1639 = vsel %vm458, %v1637, %v1638
      %v1640 = vrot.slane %v1517, 1
      %v1641 = vsel %vm458, %v1638, %v1640
      %v1642 = vrot.slane %v1518, 1
      %v1643 = vrot.slane %v1519, 1
      %v1644 = vsel %vm458, %v1642, %v1643
      %v1645 = vrot.slane %v1520, 1
      %v1646 = vsel %vm458, %v1643, %v1645
      %v1647 = vrot.slane %v1521, 1
      %v1648 = vrot.slane %v1522, 1
      %v1649 = vsel %vm458, %v1647, %v1648
      %v1650 = vrot.slane %v1523, 1
      %v1651 = vsel %vm458, %v1648, %v1650
      %v1684 = vadd.f32 %v1440, %v1574
      %v1685 = vadd.f32 %v1441, %v1576
      %v1686 = vadd.f32 %v1442, %v1579
      %v1687 = vadd.f32 %v1443, %v1581
      %v1688 = vadd.f32 %v1444, %v1584
      %v1689 = vadd.f32 %v1445, %v1586
      %v1690 = vadd.f32 %v1446, %v1589
      %v1691 = vadd.f32 %v1447, %v1591
      %v1692 = vadd.f32 %v1448, %v1594
      %v1693 = vadd.f32 %v1449, %v1596
      %v1694 = vadd.f32 %v1450, %v1599
      %v1695 = vadd.f32 %v1451, %v1601
      %v1696 = vadd.f32 %v1452, %v1604
      %v1697 = vadd.f32 %v1453, %v1606
      %v1698 = vadd.f32 %v1454, %v1609
      %v1699 = vadd.f32 %v1455, %v1611
      %v1700 = vadd.f32 %v1456, %v1614
      %v1701 = vadd.f32 %v1457, %v1616
      %v1702 = vadd.f32 %v1458, %v1619
      %v1703 = vadd.f32 %v1459, %v1621
      %v1704 = vadd.f32 %v1460, %v1624
      %v1705 = vadd.f32 %v1461, %v1626
      %v1706 = vadd.f32 %v1462, %v1629
      %v1707 = vadd.f32 %v1463, %v1631
      %v1708 = vadd.f32 %v1464, %v1634
      %v1709 = vadd.f32 %v1465, %v1636
      %v1710 = vadd.f32 %v1466, %v1639
      %v1711 = vadd.f32 %v1467, %v1641
      %v1712 = vadd.f32 %v1468, %v1644
      %v1713 = vadd.f32 %v1469, %v1646
      %v1714 = vadd.f32 %v1470, %v1649
      %v1715 = vadd.f32 %v1471, %v1651
      %v1716 = vlaneseq
      %v1717 = vshrl.u32 %v1716, 7
      %v1718 = vsub.s32 0, %v1717
      %v1719 = vrot.slane %v289, %v1718
      %v1720 = vmul.f32 %v240, %v1719
      %v1721 = vmul.f32 %v241, %v1719
      %v1722 = vmul.f32 %v242, %v1719
      %v1723 = vmul.f32 %v243, %v1719
      %v1724 = vmul.f32 %v244, %v1719
      %v1725 = vmul.f32 %v245, %v1719
      %v1726 = vmul.f32 %v246, %v1719
      %v1727 = vmul.f32 %v247, %v1719
      %v1728 = vmul.f32 %v248, %v1719
      %v1729 = vmul.f32 %v249, %v1719
      %v1730 = vmul.f32 %v250, %v1719
      %v1731 = vmul.f32 %v251, %v1719
      %v1732 = vmul.f32 %v252, %v1719
      %v1733 = vmul.f32 %v253, %v1719
      %v1734 = vmul.f32 %v254, %v1719
      %v1735 = vmul.f32 %v255, %v1719
      %v1736 = vmul.f32 %v256, %v1719
      %v1737 = vmul.f32 %v257, %v1719
      %v1738 = vmul.f32 %v258, %v1719
      %v1739 = vmul.f32 %v259, %v1719
      %v1740 = vmul.f32 %v260, %v1719
      %v1741 = vmul.f32 %v261, %v1719
      %v1742 = vmul.f32 %v262, %v1719
      %v1743 = vmul.f32 %v263, %v1719
      %v1744 = vmul.f32 %v264, %v1719
      %v1745 = vmul.f32 %v265, %v1719
      %v1746 = vmul.f32 %v266, %v1719
      %v1747 = vmul.f32 %v267, %v1719
      %v1748 = vmul.f32 %v268, %v1719
      %v1749 = vmul.f32 %v269, %v1719
      %v1750 = vmul.f32 %v270, %v1719
      %v1751 = vmul.f32 %v271, %v1719
      %v1752 = vmul.f32 %v272, %v1719
      %v1753 = vmul.f32 %v273, %v1719
      %v1754 = vmul.f32 %v274, %v1719
      %v1755 = vmul.f32 %v275, %v1719
      %v1756 = vmul.f32 %v276, %v1719
      %v1757 = vmul.f32 %v277, %v1719
      %v1758 = vmul.f32 %v278, %v1719
      %v1759 = vmul.f32 %v279, %v1719
      %v1760 = vmul.f32 %v280, %v1719
      %v1761 = vmul.f32 %v281, %v1719
      %v1762 = vmul.f32 %v282, %v1719
      %v1763 = vmul.f32 %v283, %v1719
      %v1764 = vmul.f32 %v284, %v1719
      %v1765 = vmul.f32 %v285, %v1719
      %v1766 = vmul.f32 %v286, %v1719
      %v1767 = vmul.f32 %v287, %v1719
      %v1816 = vrot.slane %v1720, 2
      %v1817 = vrot.slane %v1721, 2
      %v1818 = vsel %vm703, %v1816, %v1817
      %v1819 = vrot.slane %v1722, 2
      %v1820 = vsel %vm703, %v1817, %v1819
      %v1821 = vrot.slane %v1723, 2
      %v1822 = vrot.slane %v1724, 2
      %v1823 = vsel %vm703, %v1821, %v1822
      %v1824 = vrot.slane %v1725, 2
      %v1825 = vsel %vm703, %v1822, %v1824
      %v1826 = vrot.slane %v1726, 2
      %v1827 = vrot.slane %v1727, 2
      %v1828 = vsel %vm703, %v1826, %v1827
      %v1829 = vrot.slane %v1728, 2
      %v1830 = vsel %vm703, %v1827, %v1829
      %v1831 = vrot.slane %v1729, 2
      %v1832 = vrot.slane %v1730, 2
      %v1833 = vsel %vm703, %v1831, %v1832
      %v1834 = vrot.slane %v1731, 2
      %v1835 = vsel %vm703, %v1832, %v1834
      %v1836 = vrot.slane %v1732, 2
      %v1837 = vrot.slane %v1733, 2
      %v1838 = vsel %vm703, %v1836, %v1837
      %v1839 = vrot.slane %v1734, 2
      %v1840 = vsel %vm703, %v1837, %v1839
      %v1841 = vrot.slane %v1735, 2
      %v1842 = vrot.slane %v1736, 2
      %v1843 = vsel %vm703, %v1841, %v1842
      %v1844 = vrot.slane %v1737, 2
      %v1845 = vsel %vm703, %v1842, %v1844
      %v1846 = vrot.slane %v1738, 2
      %v1847 = vrot.slane %v1739, 2
      %v1848 = vsel %vm703, %v1846, %v1847
      %v1849 = vrot.slane %v1740, 2
      %v1850 = vsel %vm703, %v1847, %v1849
      %v1851 = vrot.slane %v1741, 2
      %v1852 = vrot.slane %v1742, 2
      %v1853 = vsel %vm703, %v1851, %v1852
      %v1854 = vrot.slane %v1743, 2
      %v1855 = vsel %vm703, %v1852, %v1854
      %v1856 = vrot.slane %v1744, 2
      %v1857 = vrot.slane %v1745, 2
      %v1858 = vsel %vm703, %v1856, %v1857
      %v1859 = vrot.slane %v1746, 2
      %v1860 = vsel %vm703, %v1857, %v1859
      %v1861 = vrot.slane %v1747, 2
      %v1862 = vrot.slane %v1748, 2
      %v1863 = vsel %vm703, %v1861, %v1862
      %v1864 = vrot.slane %v1749, 2
      %v1865 = vsel %vm703, %v1862, %v1864
      %v1866 = vrot.slane %v1750, 2
      %v1867 = vrot.slane %v1751, 2
      %v1868 = vsel %vm703, %v1866, %v1867
      %v1869 = vrot.slane %v1752, 2
      %v1870 = vsel %vm703, %v1867, %v1869
      %v1871 = vrot.slane %v1753, 2
      %v1872 = vrot.slane %v1754, 2
      %v1873 = vsel %vm703, %v1871, %v1872
      %v1874 = vrot.slane %v1755, 2
      %v1875 = vsel %vm703, %v1872, %v1874
      %v1876 = vrot.slane %v1756, 2
      %v1877 = vrot.slane %v1757, 2
      %v1878 = vsel %vm703, %v1876, %v1877
      %v1879 = vrot.slane %v1758, 2
      %v1880 = vsel %vm703, %v1877, %v1879
      %v1881 = vrot.slane %v1759, 2
      %v1882 = vrot.slane %v1760, 2
      %v1883 = vsel %vm703, %v1881, %v1882
      %v1884 = vrot.slane %v1761, 2
      %v1885 = vsel %vm703, %v1882, %v1884
      %v1886 = vrot.slane %v1762, 2
      %v1887 = vrot.slane %v1763, 2
      %v1888 = vsel %vm703, %v1886, %v1887
      %v1889 = vrot.slane %v1764, 2
      %v1890 = vsel %vm703, %v1887, %v1889
      %v1891 = vrot.slane %v1765, 2
      %v1892 = vrot.slane %v1766, 2
      %v1893 = vsel %vm703, %v1891, %v1892
      %v1894 = vrot.slane %v1767, 2
      %v1895 = vsel %vm703, %v1892, %v1894
      %v1928 = vadd.f32 %v1684, %v1818
      %v1929 = vadd.f32 %v1685, %v1820
      %v1930 = vadd.f32 %v1686, %v1823
      %v1931 = vadd.f32 %v1687, %v1825
      %v1932 = vadd.f32 %v1688, %v1828
      %v1933 = vadd.f32 %v1689, %v1830
      %v1934 = vadd.f32 %v1690, %v1833
      %v1935 = vadd.f32 %v1691, %v1835
      %v1936 = vadd.f32 %v1692, %v1838
      %v1937 = vadd.f32 %v1693, %v1840
      %v1938 = vadd.f32 %v1694, %v1843
      %v1939 = vadd.f32 %v1695, %v1845
      %v1940 = vadd.f32 %v1696, %v1848
      %v1941 = vadd.f32 %v1697, %v1850
      %v1942 = vadd.f32 %v1698, %v1853
      %v1943 = vadd.f32 %v1699, %v1855
      %v1944 = vadd.f32 %v1700, %v1858
      %v1945 = vadd.f32 %v1701, %v1860
      %v1946 = vadd.f32 %v1702, %v1863
      %v1947 = vadd.f32 %v1703, %v1865
      %v1948 = vadd.f32 %v1704, %v1868
      %v1949 = vadd.f32 %v1705, %v1870
      %v1950 = vadd.f32 %v1706, %v1873
      %v1951 = vadd.f32 %v1707, %v1875
      %v1952 = vadd.f32 %v1708, %v1878
      %v1953 = vadd.f32 %v1709, %v1880
      %v1954 = vadd.f32 %v1710, %v1883
      %v1955 = vadd.f32 %v1711, %v1885
      %v1956 = vadd.f32 %v1712, %v1888
      %v1957 = vadd.f32 %v1713, %v1890
      %v1958 = vadd.f32 %v1714, %v1893
      %v1959 = vadd.f32 %v1715, %v1895
      %v1960 = vld [vmem:[%s2] sm:$0x1]
      %v1962 = vlaneseq
      %v1963 = vshrl.u32 %v1962, 7
      %v1964 = vsub.s32 0, %v1963
      %v1965 = vrot.slane %v1960, %v1964
      %v1967 = vmul.f32 %v1928, %v1965
      %v1968 = vmul.f32 %v1929, %v1965
      %v1969 = vmul.f32 %v1930, %v1965
      %v1970 = vmul.f32 %v1931, %v1965
      %v1971 = vmul.f32 %v1932, %v1965
      %v1972 = vmul.f32 %v1933, %v1965
      %v1973 = vmul.f32 %v1934, %v1965
      %v1974 = vmul.f32 %v1935, %v1965
      %v1975 = vmul.f32 %v1936, %v1965
      %v1976 = vmul.f32 %v1937, %v1965
      %v1977 = vmul.f32 %v1938, %v1965
      %v1978 = vmul.f32 %v1939, %v1965
      %v1979 = vmul.f32 %v1940, %v1965
      %v1980 = vmul.f32 %v1941, %v1965
      %v1981 = vmul.f32 %v1942, %v1965
      %v1982 = vmul.f32 %v1943, %v1965
      %v1983 = vmul.f32 %v1944, %v1965
      %v1984 = vmul.f32 %v1945, %v1965
      %v1985 = vmul.f32 %v1946, %v1965
      %v1986 = vmul.f32 %v1947, %v1965
      %v1987 = vmul.f32 %v1948, %v1965
      %v1988 = vmul.f32 %v1949, %v1965
      %v1989 = vmul.f32 %v1950, %v1965
      %v1990 = vmul.f32 %v1951, %v1965
      %v1991 = vmul.f32 %v1952, %v1965
      %v1992 = vmul.f32 %v1953, %v1965
      %v1993 = vmul.f32 %v1954, %v1965
      %v1994 = vmul.f32 %v1955, %v1965
      %v1995 = vmul.f32 %v1956, %v1965
      %v1996 = vmul.f32 %v1957, %v1965
      %v1997 = vmul.f32 %v1958, %v1965
      %v1998 = vmul.f32 %v1959, %v1965
      %v1999 = vld [vmem:[%s3] sm:$0x1]
      %v2001 = vlaneseq
      %v2002 = vshrl.u32 %v2001, 7
      %v2003 = vsub.s32 0, %v2002
      %v2004 = vrot.slane %v1999, %v2003
      %v2006 = vadd.f32 %v1967, %v2004
      %v2007 = vadd.f32 %v1968, %v2004
      %v2008 = vadd.f32 %v1969, %v2004
      %v2009 = vadd.f32 %v1970, %v2004
      %v2010 = vadd.f32 %v1971, %v2004
      %v2011 = vadd.f32 %v1972, %v2004
      %v2012 = vadd.f32 %v1973, %v2004
      %v2013 = vadd.f32 %v1974, %v2004
      %v2014 = vadd.f32 %v1975, %v2004
      %v2015 = vadd.f32 %v1976, %v2004
      %v2016 = vadd.f32 %v1977, %v2004
      %v2017 = vadd.f32 %v1978, %v2004
      %v2018 = vadd.f32 %v1979, %v2004
      %v2019 = vadd.f32 %v1980, %v2004
      %v2020 = vadd.f32 %v1981, %v2004
      %v2021 = vadd.f32 %v1982, %v2004
      %v2022 = vadd.f32 %v1983, %v2004
      %v2023 = vadd.f32 %v1984, %v2004
      %v2024 = vadd.f32 %v1985, %v2004
      %v2025 = vadd.f32 %v1986, %v2004
      %v2026 = vadd.f32 %v1987, %v2004
      %v2027 = vadd.f32 %v1988, %v2004
      %v2028 = vadd.f32 %v1989, %v2004
      %v2029 = vadd.f32 %v1990, %v2004
      %v2030 = vadd.f32 %v1991, %v2004
      %v2031 = vadd.f32 %v1992, %v2004
      %v2032 = vadd.f32 %v1993, %v2004
      %v2033 = vadd.f32 %v1994, %v2004
      %v2034 = vadd.f32 %v1995, %v2004
      %v2035 = vadd.f32 %v1996, %v2004
      %v2036 = vadd.f32 %v1997, %v2004
      %v2037 = vadd.f32 %v1998, %v2004
      %v2038 = vmax.f32 %v2006, 0.0
      %v2039 = vmax.f32 %v2007, 0.0
      %v2040 = vmax.f32 %v2008, 0.0
      %v2041 = vmax.f32 %v2009, 0.0
      %v2042 = vmax.f32 %v2010, 0.0
      %v2043 = vmax.f32 %v2011, 0.0
      %v2044 = vmax.f32 %v2012, 0.0
      %v2045 = vmax.f32 %v2013, 0.0
      %v2046 = vmax.f32 %v2014, 0.0
      %v2047 = vmax.f32 %v2015, 0.0
      %v2048 = vmax.f32 %v2016, 0.0
      %v2049 = vmax.f32 %v2017, 0.0
      %v2050 = vmax.f32 %v2018, 0.0
      %v2051 = vmax.f32 %v2019, 0.0
      %v2052 = vmax.f32 %v2020, 0.0
      %v2053 = vmax.f32 %v2021, 0.0
      %v2054 = vmax.f32 %v2022, 0.0
      %v2055 = vmax.f32 %v2023, 0.0
      %v2056 = vmax.f32 %v2024, 0.0
      %v2057 = vmax.f32 %v2025, 0.0
      %v2058 = vmax.f32 %v2026, 0.0
      %v2059 = vmax.f32 %v2027, 0.0
      %v2060 = vmax.f32 %v2028, 0.0
      %v2061 = vmax.f32 %v2029, 0.0
      %v2062 = vmax.f32 %v2030, 0.0
      %v2063 = vmax.f32 %v2031, 0.0
      %v2064 = vmax.f32 %v2032, 0.0
      %v2065 = vmax.f32 %v2033, 0.0
      %v2066 = vmax.f32 %v2034, 0.0
      %v2067 = vmax.f32 %v2035, 0.0
      %v2068 = vmax.f32 %v2036, 0.0
      %v2069 = vmax.f32 %v2037, 0.0
      %vm2070 = vcmask 261120
      %2071 = vst.msk [vmem:[%s230] sm:$0xff] %vm2070, %v2038
      %2072 = vst.msk [vmem:[%s230 + $0x8] sm:$0xff] %vm2070, %v2039
      %2073 = vst.msk [vmem:[%s230 + $0x10] sm:$0xff] %vm2070, %v2040
      %2074 = vst.msk [vmem:[%s230 + $0x18] sm:$0xff] %vm2070, %v2041
      %2075 = vst.msk [vmem:[%s230 + $0x20] sm:$0xff] %vm2070, %v2042
      %2076 = vst.msk [vmem:[%s230 + $0x28] sm:$0xff] %vm2070, %v2043
      %2077 = vst.msk [vmem:[%s230 + $0x30] sm:$0xff] %vm2070, %v2044
      %2078 = vst.msk [vmem:[%s230 + $0x38] sm:$0xff] %vm2070, %v2045
      %2079 = vst.msk [vmem:[%s230 + $0x40] sm:$0xff] %vm2070, %v2046
      %2080 = vst.msk [vmem:[%s230 + $0x48] sm:$0xff] %vm2070, %v2047
      %2081 = vst.msk [vmem:[%s230 + $0x50] sm:$0xff] %vm2070, %v2048
      %2082 = vst.msk [vmem:[%s230 + $0x58] sm:$0xff] %vm2070, %v2049
      %2083 = vst.msk [vmem:[%s230 + $0x60] sm:$0xff] %vm2070, %v2050
      %2084 = vst.msk [vmem:[%s230 + $0x68] sm:$0xff] %vm2070, %v2051
      %2085 = vst.msk [vmem:[%s230 + $0x70] sm:$0xff] %vm2070, %v2052
      %2086 = vst.msk [vmem:[%s230 + $0x78] sm:$0xff] %vm2070, %v2053
      %2087 = vst.msk [vmem:[%s230 + $0x80] sm:$0xff] %vm2070, %v2054
      %2088 = vst.msk [vmem:[%s230 + $0x88] sm:$0xff] %vm2070, %v2055
      %2089 = vst.msk [vmem:[%s230 + $0x90] sm:$0xff] %vm2070, %v2056
      %2090 = vst.msk [vmem:[%s230 + $0x98] sm:$0xff] %vm2070, %v2057
      %2091 = vst.msk [vmem:[%s230 + $0xa0] sm:$0xff] %vm2070, %v2058
      %2092 = vst.msk [vmem:[%s230 + $0xa8] sm:$0xff] %vm2070, %v2059
      %2093 = vst.msk [vmem:[%s230 + $0xb0] sm:$0xff] %vm2070, %v2060
      %2094 = vst.msk [vmem:[%s230 + $0xb8] sm:$0xff] %vm2070, %v2061
      %2095 = vst.msk [vmem:[%s230 + $0xc0] sm:$0xff] %vm2070, %v2062
      %2096 = vst.msk [vmem:[%s230 + $0xc8] sm:$0xff] %vm2070, %v2063
      %2097 = vst.msk [vmem:[%s230 + $0xd0] sm:$0xff] %vm2070, %v2064
      %2098 = vst.msk [vmem:[%s230 + $0xd8] sm:$0xff] %vm2070, %v2065
      %2099 = vst.msk [vmem:[%s230 + $0xe0] sm:$0xff] %vm2070, %v2066
      %2100 = vst.msk [vmem:[%s230 + $0xe8] sm:$0xff] %vm2070, %v2067
      %2101 = vst.msk [vmem:[%s230 + $0xf0] sm:$0xff] %vm2070, %v2068
      %2102 = vst.msk [vmem:[%s230 + $0xf8] sm:$0xff] %vm2070, %v2069
      %v2103 = vsel %vm2070, %v2038, 0.0
      %v2104 = vsel %vm2070, %v2040, 0.0
      %v2105 = vadd.f32 %v2103, %v2104
      %v2106 = vsel %vm2070, %v2042, 0.0
      %v2107 = vadd.f32 %v2105, %v2106
      %v2108 = vsel %vm2070, %v2044, 0.0
      %v2109 = vadd.f32 %v2107, %v2108
      %v2110 = vsel %vm2070, %v2046, 0.0
      %v2111 = vadd.f32 %v2109, %v2110
      %v2112 = vsel %vm2070, %v2048, 0.0
      %v2113 = vadd.f32 %v2111, %v2112
      %v2114 = vsel %vm2070, %v2050, 0.0
      %v2115 = vadd.f32 %v2113, %v2114
      %v2116 = vsel %vm2070, %v2052, 0.0
      %v2117 = vadd.f32 %v2115, %v2116
      %v2118 = vsel %vm2070, %v2054, 0.0
      %v2119 = vadd.f32 %v2117, %v2118
      %v2120 = vsel %vm2070, %v2056, 0.0
      %v2121 = vadd.f32 %v2119, %v2120
      %v2122 = vsel %vm2070, %v2058, 0.0
      %v2123 = vadd.f32 %v2121, %v2122
      %v2124 = vsel %vm2070, %v2060, 0.0
      %v2125 = vadd.f32 %v2123, %v2124
      %v2126 = vsel %vm2070, %v2062, 0.0
      %v2127 = vadd.f32 %v2125, %v2126
      %v2128 = vsel %vm2070, %v2064, 0.0
      %v2129 = vadd.f32 %v2127, %v2128
      %v2130 = vsel %vm2070, %v2066, 0.0
      %v2131 = vadd.f32 %v2129, %v2130
      %v2132 = vsel %vm2070, %v2068, 0.0
      %v2133 = vadd.f32 %v2131, %v2132
      %v2134 = vsel %vm2070, %v2039, 0.0
      %v2135 = vsel %vm2070, %v2041, 0.0
      %v2136 = vadd.f32 %v2134, %v2135
      %v2137 = vsel %vm2070, %v2043, 0.0
      %v2138 = vadd.f32 %v2136, %v2137
      %v2139 = vsel %vm2070, %v2045, 0.0
      %v2140 = vadd.f32 %v2138, %v2139
      %v2141 = vsel %vm2070, %v2047, 0.0
      %v2142 = vadd.f32 %v2140, %v2141
      %v2143 = vsel %vm2070, %v2049, 0.0
      %v2144 = vadd.f32 %v2142, %v2143
      %v2145 = vsel %vm2070, %v2051, 0.0
      %v2146 = vadd.f32 %v2144, %v2145
      %v2147 = vsel %vm2070, %v2053, 0.0
      %v2148 = vadd.f32 %v2146, %v2147
      %v2149 = vsel %vm2070, %v2055, 0.0
      %v2150 = vadd.f32 %v2148, %v2149
      %v2151 = vsel %vm2070, %v2057, 0.0
      %v2152 = vadd.f32 %v2150, %v2151
      %v2153 = vsel %vm2070, %v2059, 0.0
      %v2154 = vadd.f32 %v2152, %v2153
      %v2155 = vsel %vm2070, %v2061, 0.0
      %v2156 = vadd.f32 %v2154, %v2155
      %v2157 = vsel %vm2070, %v2063, 0.0
      %v2158 = vadd.f32 %v2156, %v2157
      %v2159 = vsel %vm2070, %v2065, 0.0
      %v2160 = vadd.f32 %v2158, %v2159
      %v2161 = vsel %vm2070, %v2067, 0.0
      %v2162 = vadd.f32 %v2160, %v2161
      %v2163 = vsel %vm2070, %v2069, 0.0
      %v2164 = vadd.f32 %v2162, %v2163
      %v2165 = vsel %vm2070, %v2133, 0.0
      %v2166 = vsel %vm2070, %v2164, 0.0
      %v2167 = vadd.f32 %v2165, %v2166
      %v2168 = vrot.slane %v2167, 4
      %v2169 = vadd.f32 %v2167, %v2168
      %v2170 = vrot.slane %v2169, 2
      %v2171 = vadd.f32 %v2169, %v2170
      %v2172 = vrot.slane %v2171, 1
      %v2173 = vadd.f32 %v2171, %v2172
      %v2174 = vmul.f32 %v2173, 0.00390625
      %vm2175 = vcmask 253952
      %2176 = vst.msk [vmem:[%s233] sm:$0x1] %vm2175, %v2174
      %p2177 = scmp.lt.s32.totalorder %s17, 1
      %s2178 = scalar_select %p2177, %s17, 1
      %s2179 = smul.addr %s2178, 32
      %s2180 = smul.addr %s2179, 8
      %s2181 = scalar_lea.vmem %s4, %s2180
      %p2182 = scmp.lt.s32.totalorder %s17, 1
      %s2183 = scalar_select %p2182, %s17, 1
      %s2184 = scalar_lea.vmem %s5, %s2183
      // Predicated region
      $region37: #{mbconv_forward.5} parent=35 // pred_check
        %p2185 = pneg %p124
      $region38: #{mbconv_forward.5} parent=35 // pred_check_branch
        %2187 = sbr.rel (%p2185) target = $region40
      $region39: #{mbconv_forward.5} parent=35 // pred_region
        _
      $region40: #{mbconv_forward.5} parent=35 // pred_fallthru
        _
      // Predicated region
      $region41: #{mbconv_forward.5} parent=35 // pred_check
        %p2188 = pneg %p150
      $region42: #{mbconv_forward.5} parent=35 // pred_check_branch
        %2190 = sbr.rel (%p2188) target = $region44
      $region43: #{mbconv_forward.5} parent=35 // pred_region
        _
      $region44: #{mbconv_forward.5} parent=35 // pred_fallthru
        _
    $region36: #{mbconv_forward.5} parent=5 // pred_fallthru
      _
    %p2191 = scmp.le.s32.totalorder 2, %s12
    // Predicated region
    $region45: #{mbconv_forward.5} parent=5 // pred_check
      %p2192 = pneg %p2191
    $region46: #{mbconv_forward.5} parent=5 // pred_check_branch
      %2194 = sbr.rel (%p2192) target = $region48
    $region47: #{mbconv_forward.5} parent=5 // pred_region
      %s2195 = ssub.s32 %s12, 2
      // Predicated region
      $region49: #{mbconv_forward.5} parent=47 // pred_check
        %p2196 = pneg %p130
      $region50: #{mbconv_forward.5} parent=47 // pred_check_branch
        %2198 = sbr.rel (%p2196) target = $region52
      $region51: #{mbconv_forward.5} parent=47 // pred_region
        %p2199 = scmp.lt.s32.totalorder %s18, 1
        %s2200 = scalar_select %p2199, %s18, 1
        %s2201 = smul.addr %s2200, 32
        %s2202 = smul.addr %s2201, 8
        %s2203 = scalar_lea.vmem %s4, %s2202
      $region52: #{mbconv_forward.5} parent=47 // pred_fallthru
        _
      // Predicated region
      $region53: #{mbconv_forward.5} parent=47 // pred_check
        %p2204 = pneg %p156
      $region54: #{mbconv_forward.5} parent=47 // pred_check_branch
        %2206 = sbr.rel (%p2204) target = $region56
      $region55: #{mbconv_forward.5} parent=47 // pred_region
        %p2207 = scmp.lt.s32.totalorder %s18, 1
        %s2208 = scalar_select %p2207, %s18, 1
        %s2209 = scalar_lea.vmem %s5, %s2208
      $region56: #{mbconv_forward.5} parent=47 // pred_fallthru
        _
    $region48: #{mbconv_forward.5} parent=5 // pred_fallthru
      _
  $region6: #{mbconv_forward.5} parent=0 // loop_footer
    %s16 = sadd.s32 1, %s12
  $region7: #{mbconv_forward.5} parent=0 // loop_footer_branch
    %11 = sbr.rel target = $region3
  $region8: #{mbconv_forward.5} parent=0 // loop_exit
    _

</llo_original>
